<compile_context>
chip_gen: v7x
topology: tpu7x:2x2x1
jax: 0.10.0
libtpu: 0.0.40
codegen_flags: <defaults>
</compile_context>

<pallas_src>
import math
import numpy as np
import jax
import jax.numpy as jnp
from jax import lax
from jax.experimental import pallas as pl
from jax.experimental.pallas import tpu as pltpu

# ----------------------------- config (small) --------------------------------
INPUT_FEATURES = 16        # F
TIME_DIM       = 8         # T
BATCH          = 2         # B
RES_CNN_CH     = 32        # res_cnn_input_channels == res_cnn_output_channels
NUM_RES_CNN    = 1
BI_RNN_INPUT   = 32
BI_RNN_HIDDEN  = 32
NUM_RNN        = 1
CL_INPUT       = 2 * BI_RNN_HIDDEN
NUM_CLASSES    = 10

F = INPUT_FEATURES
T = TIME_DIM
B = BATCH
C = RES_CNN_CH
H = BI_RNN_HIDDEN
RNN_IN = BI_RNN_INPUT
N = B * T * F              # 256 lanes: lane s = b*T*F + t*F + f
S = T * F                  # 128 per-batch spatial size
G_VIEW = (C * F) // S      # channels per torch-view row (= 4)


# --------------------------- trace-time constants -----------------------------
def _conv_tap_masks() -> np.ndarray:
    """(9, N) 0/1 masks: tap (dt, df) is valid iff (t+dt, f+df) stays in-bounds."""
    s = np.arange(N)
    f = s % F
    t = (s // F) % T
    rows = []
    for dt in (-1, 0, 1):
        for df in (-1, 0, 1):
            ok = (f + df >= 0) & (f + df < F) & (t + dt >= 0) & (t + dt < T)
            rows.append(ok.astype(np.float32))
    return np.stack(rows, axis=0)


def _group_mean_matrix() -> np.ndarray:
    """(N, N): pool[s, s'] = 1/F iff s and s' are in the same length-F feature group."""
    return np.kron(np.eye(N // F, dtype=np.float32),
                   np.full((F, F), 1.0 / F, dtype=np.float32))


def _view_select_matrix() -> np.ndarray:
    """(C, C): sel @ act_b puts channel (G_VIEW*t2 + j) into row (j*T + t2)."""
    sel = np.zeros((C, C), dtype=np.float32)
    for j in range(G_VIEW):
        for t2 in range(T):
            sel[j * T + t2, G_VIEW * t2 + j] = 1.0
    return sel


_MASKS = _conv_tap_masks()
_POOL = _group_mean_matrix()
_VIEWSEL = _view_select_matrix()


def _gelu(v):
    # tanh-approximate GELU (see TODO above)
    return 0.5 * v * (1.0 + jnp.tanh(0.7978845608028654 * (v + 0.044715 * v * v * v)))


# ------------------------------ fused Pallas kernel ---------------------------
def speech_model_kernel(
        x_ref,          # (1, N)        input, lane s = b*T*F + t*F + f
        masks_ref,      # (9, N)        3x3 tap boundary masks
        pool_ref,       # (N, N)        feature-group mean matrix
        viewsel_ref,    # (C, C)        channel selection for torch .view
        cnn_w_ref,      # (C, 9)        first conv (Cin=1), tap-major columns
        cnn_b_ref,      # (C, 1)
        res_w_ref,      # (C, 9*C)      residual conv (shared by both applications)
        res_b_ref,      # (C, 1)
        res_g_ref,      # (1, N)        LN gamma tiled across lanes
        res_beta_ref,   # (1, N)
        lin_w_ref,      # (C*F, RNN_IN)
        lin_b_ref,      # (1, RNN_IN)
        rnn_g_ref,      # (1, RNN_IN)
        rnn_beta_ref,   # (1, RNN_IN)
        wih_f_ref,      # (RNN_IN, 3H)
        bih_f_ref,      # (1, 3H)
        wih_b_ref,      # (RNN_IN, 3H)
        bih_b_ref,      # (1, 3H)
        whh_blk_ref,    # (2H, 6H)      block-diag [whh_f ; whh_b]
        bhh_ref,        # (1, 6H)
        cl_w1_ref,      # (2H, 2H//2)
        cl_b1_ref,      # (1, 2H//2)
        cl_w2_ref,      # (2H//2, NUM_CLASSES)
        cl_b2_ref,      # (1, NUM_CLASSES)
        out_ref,        # (B, T, NUM_CLASSES)
):
    f32 = jnp.float32
    masks = masks_ref[...]
    pool = pool_ref[...]
    res_g = res_g_ref[...]
    res_beta = res_beta_ref[...]

    def conv3x3(x2d, w9, brow):
        # x2d: (Cin, N).  3x3 / stride 1 / pad 1 conv over the (t, f) grid flattened
        # (together with batch) into the lane dim.  Single MXU contraction (K=9*Cin).
        taps = []
        k = 0
        for dt in (-1, 0, 1):
            for df in (-1, 0, 1):
                sh = (dt * F + df) % N
                if sh == 0:
                    shifted = x2d
                else:
                    shifted = jnp.concatenate([x2d[:, sh:], x2d[:, :sh]], axis=1)
                taps.append(shifted * masks[k:k + 1, :])
                k += 1
        xcol = jnp.concatenate(taps, axis=0)                       # (9*Cin, N)
        return jnp.dot(w9, xcol, preferred_element_type=f32) + brow

    def ln_gelu_features(a):
        # LayerNorm over each length-F feature group of the lane dim, then GELU.
        mu = jnp.dot(a, pool, preferred_element_type=f32)
        cen = a - mu
        var = jnp.dot(cen * cen, pool, preferred_element_type=f32)
        y = cen * lax.rsqrt(var + 1e-5) * res_g + res_beta
        return _gelu(y)

    # ---- cnn front-end (Conv2d(1, 32, 3, 1, 1)) ------------------------------
    act = conv3x3(x_ref[...], cnn_w_ref[...], cnn_b_ref[...])      # (C, N)

    # ---- ResidualCNN block (conv & norm modules shared inside the block) -----
    res_w = res_w_ref[...]
    res_b = res_b_ref[...]
    residue = act
    h = ln_gelu_features(act)                                      # dropout: identity
    h = conv3x3(h, res_w, res_b)
    h = ln_gelu_features(h)                                        # dropout: identity
    h = conv3x3(h, res_w, res_b)
    act = h + residue                                              # (C, N)

    # ---- torch `.view(B, T, C*F)` on contiguous NCHW memory ------------------
    viewsel = viewsel_ref[...]
    rows = []
    for b in range(B):
        act_b = act[:, b * S:(b + 1) * S]                          # (C, T*F)
        perm = jnp.dot(viewsel, act_b, preferred_element_type=f32)
        segs = [perm[j * T:(j + 1) * T, :] for j in range(G_VIEW)]
        rows.append(jnp.concatenate(segs, axis=1))                 # (T, C*F)
    lin_in = jnp.concatenate(rows, axis=0)                         # (B*T, C*F), row = b*T + t

    # ---- Linear to RNN input --------------------------------------------------
    xg = jnp.dot(lin_in, lin_w_ref[...], preferred_element_type=f32) + lin_b_ref[...]

    # ---- BidirectionalGRU block ----------------------------------------------
    mu = jnp.mean(xg, axis=-1, keepdims=True)
    var = jnp.mean((xg - mu) ** 2, axis=-1, keepdims=True)
    xg = (xg - mu) * lax.rsqrt(var + 1e-5) * rnn_g_ref[...] + rnn_beta_ref[...]
    xg = _gelu(xg)                                                 # (B*T, RNN_IN)

    # hoisted input projections (outside the serial recurrence)
    gi_f = jnp.dot(xg, wih_f_ref[...], preferred_element_type=f32) + bih_f_ref[...]
    gi_b = jnp.dot(xg, wih_b_ref[...], preferred_element_type=f32) + bih_b_ref[...]

    whh_blk = whh_blk_ref[...]
    bhh = bhh_ref[...]

    def gru_gates(gi, gh, h_prev):
        # PyTorch gate order [r, z, n]
        r = jax.nn.sigmoid(gi[:, 0:H] + gh[:, 0:H])
        z = jax.nn.sigmoid(gi[:, H:2 * H] + gh[:, H:2 * H])
        n = jnp.tanh(gi[:, 2 * H:3 * H] + r * gh[:, 2 * H:3 * H])
        return (1.0 - z) * n + z * h_prev

    h_f = jnp.zeros((B, H), f32)
    h_b = jnp.zeros((B, H), f32)
    outs_f = []      # forward state at time i        (iteration i)
    outs_b = []      # backward state at time T-1-i   (iteration i)
    for i in range(T):      # fully unrolled; both directions interleaved per step
        h_cat = jnp.concatenate([h_f, h_b], axis=1)                # (B, 2H)
        gh_all = jnp.dot(h_cat, whh_blk, preferred_element_type=f32) + bhh
        gif_t = jnp.concatenate(
            [gi_f[b * T + i:b * T + i + 1, :] for b in range(B)], axis=0)
        gib_t = jnp.concatenate(
            [gi_b[b * T + (T - 1 - i):b * T + (T - 1 - i) + 1, :] for b in range(B)],
            axis=0)
        h_f = gru_gates(gif_t, gh_all[:, 0:3 * H], h_f)
        h_b = gru_gates(gib_t, gh_all[:, 3 * H:6 * H], h_b)
        outs_f.append(h_f)
        outs_b.append(h_b)
    outs_b = outs_b[::-1]                                          # now indexed by time t

    blocks = []
    for b in range(B):
        hf_b = jnp.concatenate([outs_f[t][b:b + 1, :] for t in range(T)], axis=0)
        hb_b = jnp.concatenate([outs_b[t][b:b + 1, :] for t in range(T)], axis=0)
        blocks.append(jnp.concatenate([hf_b, hb_b], axis=1))       # (T, 2H)
    gru_out = jnp.concatenate(blocks, axis=0)                      # (B*T, 2H); dropout: identity

    # ---- classifier -----------------------------------------------------------
    h1 = _gelu(jnp.dot(gru_out, cl_w1_ref[...], preferred_element_type=f32)
               + cl_b1_ref[...])                                   # dropout: identity
    logits = (jnp.dot(h1, cl_w2_ref[...], preferred_element_type=f32)
              + cl_b2_ref[...])                                    # (B*T, NUM_CLASSES)

    for b in range(B):
        out_ref[b] = logits[b * T:(b + 1) * T, :].astype(out_ref.dtype)


# --------------------------------- wrapper ------------------------------------
def forward(x, params):
    assert x.shape == (B, 1, T, F)
    assert len(params['res_cnn']) == NUM_RES_CNN == 1
    assert len(params['rnn']) == NUM_RNN == 1
    assert G_VIEW * T == C and (C * F) % S == 0

    blk = params['res_cnn'][0]
    rnn = params['rnn'][0]

    # kernel-ready parameter repacking (tiny, one-time XLA ops)
    cnn_w9 = jnp.transpose(params['cnn_w'], (0, 2, 3, 1)).reshape(C, 9)
    cnn_b = params['cnn_b'].reshape(C, 1)
    res_w9 = jnp.transpose(blk['w'], (0, 2, 3, 1)).reshape(C, 9 * C)
    res_b = blk['bias'].reshape(C, 1)
    res_g = jnp.tile(blk['g'], N // F).reshape(1, N)
    res_beta = jnp.tile(blk['b'], N // F).reshape(1, N)

    zero = jnp.zeros((H, 3 * H), jnp.float32)
    whh_blk = jnp.concatenate(
        [jnp.concatenate([rnn['whh_f_t'], zero], axis=1),
         jnp.concatenate([zero, rnn['whh_b_t']], axis=1)], axis=0)  # (2H, 6H)
    bhh = jnp.concatenate([rnn['bhh_f'], rnn['bhh_b']]).reshape(1, 6 * H)

    args = (
        x.reshape(1, N),                      # (Cin=1, B*T*F): row-major b,t,f order
        jnp.asarray(_MASKS), jnp.asarray(_POOL), jnp.asarray(_VIEWSEL),
        cnn_w9, cnn_b, res_w9, res_b, res_g, res_beta,
        params['lin_w_t'], params['lin_b'].reshape(1, RNN_IN),
        rnn['g'].reshape(1, RNN_IN), rnn['b'].reshape(1, RNN_IN),
        rnn['wih_f_t'], rnn['bih_f'].reshape(1, 3 * H),
        rnn['wih_b_t'], rnn['bih_b'].reshape(1, 3 * H),
        whh_blk, bhh,
        params['cl_w1_t'], params['cl_b1'].reshape(1, CL_INPUT // 2),
        params['cl_w2_t'], params['cl_b2'].reshape(1, NUM_CLASSES),
    )
    vmem = pl.BlockSpec(memory_space=pltpu.MemorySpace.VMEM)
    return pl.pallas_call(
        speech_model_kernel,
        in_specs=[vmem] * len(args),
        out_specs=vmem,
        out_shape=jax.ShapeDtypeStruct((B, T, NUM_CLASSES), jnp.float32),
    )(*args)


# ------------------------- pure-JAX reference (checking) ----------------------
def reference_forward(x, params):
    def ln(a, g, b):
        mu = jnp.mean(a, axis=-1, keepdims=True)
        var = jnp.mean((a - mu) ** 2, axis=-1, keepdims=True)
        return (a - mu) / jnp.sqrt(var + 1e-5) * g + b

    def conv3x3_ref(a, w, bias):
        ap = jnp.pad(a, ((0, 0), (0, 0), (1, 1), (1, 1)))
        out = jnp.zeros((a.shape[0], w.shape[0], T, F), jnp.float32)
        for kh in range(3):
            for kw in range(3):
                out = out + jnp.einsum('bcij,oc->boij',
                                       ap[:, :, kh:kh + T, kw:kw + F], w[:, :, kh, kw])
        return out + bias.reshape(1, -1, 1, 1)

    blk = params['res_cnn'][0]
    rnn = params['rnn'][0]

    out = conv3x3_ref(x, params['cnn_w'], params['cnn_b'])
    residue = out
    h = _gelu(ln(out, blk['g'], blk['b']))
    h = conv3x3_ref(h, blk['w'], blk['bias'])
    h = _gelu(ln(h, blk['g'], blk['b']))
    h = conv3x3_ref(h, blk['w'], blk['bias'])
    out = h + residue
    out = out.reshape(B, T, C * F)
    out = out @ params['lin_w_t'] + params['lin_b']

    h = _gelu(ln(out, rnn['g'], rnn['b']))

    def gru_dir(xs, wih, whh, bih, bhh, reverse):
        hs = [None] * T
        hp = jnp.zeros((B, H), jnp.float32)
        order = range(T - 1, -1, -1) if reverse else range(T)
        for t in order:
            gi = xs[:, t, :] @ wih + bih
            gh = hp @ whh + bhh
            r = jax.nn.sigmoid(gi[:, :H] + gh[:, :H])
            z = jax.nn.sigmoid(gi[:, H:2 * H] + gh[:, H:2 * H])
            n = jnp.tanh(gi[:, 2 * H:] + r * gh[:, 2 * H:])
            hp = (1.0 - z) * n + z * hp
            hs[t] = hp
        return jnp.stack(hs, axis=1)

    of = gru_dir(h, rnn['wih_f_t'], rnn['whh_f_t'], rnn['bih_f'], rnn['bhh_f'], False)
    ob = gru_dir(h, rnn['wih_b_t'], rnn['whh_b_t'], rnn['bih_b'], rnn['bhh_b'], True)
    gr = jnp.concatenate([of, ob], axis=-1)

    h1 = _gelu(gr @ params['cl_w1_t'] + params['cl_b1'])
    return h1 @ params['cl_w2_t'] + params['cl_b2']


# ------------------------------ parameter init --------------------------------
def init_params(key):
    keys = iter(jax.random.split(key, 64))

    def u(shape, fan_in):
        s = 1.0 / math.sqrt(fan_in)
        return jax.random.uniform(next(keys), shape, jnp.float32, -s, s)

    p = {}
    p['cnn_w'] = u((C, 1, 3, 3), 1 * 9)
    p['cnn_b'] = u((C,), 1 * 9)

    p['res_cnn'] = [dict(
        g=jnp.ones((F,), jnp.float32),
        b=jnp.zeros((F,), jnp.float32),
        w=u((C, C, 3, 3), C * 9),
        bias=u((C,), C * 9),
    ) for _ in range(NUM_RES_CNN)]

    p['lin_w_t'] = u((C * F, RNN_IN), C * F)      # stored transposed (in, out)
    p['lin_b'] = u((RNN_IN,), C * F)

    p['rnn'] = []
    din = RNN_IN
    for _ in range(NUM_RNN):
        blk = dict(g=jnp.ones((din,), jnp.float32),
                   b=jnp.zeros((din,), jnp.float32))
        for d in ('f', 'b'):
            blk[f'wih_{d}_t'] = u((din, 3 * H), H)
            blk[f'whh_{d}_t'] = u((H, 3 * H), H)
            blk[f'bih_{d}'] = u((3 * H,), H)
            blk[f'bhh_{d}'] = u((3 * H,), H)
        p['rnn'].append(blk)
        din = 2 * H

    p['cl_w1_t'] = u((CL_INPUT, CL_INPUT // 2), CL_INPUT)
    p['cl_b1'] = u((CL_INPUT // 2,), CL_INPUT)
    p['cl_w2_t'] = u((CL_INPUT // 2, NUM_CLASSES), CL_INPUT // 2)
    p['cl_b2'] = u((NUM_CLASSES,), CL_INPUT // 2)
    return p


# ------------------------------------ main -------------------------------------
if __name__ == "__main__":
    key = jax.random.PRNGKey(0)
    kx, kp = jax.random.split(key)
    x = jax.random.normal(kx, (BATCH, 1, TIME_DIM, INPUT_FEATURES), jnp.float32)
    params = init_params(kp)

    out = jax.jit(forward)(x, params)
    out = jax.block_until_ready(out)
    assert out.shape == (BATCH, TIME_DIM, NUM_CLASSES), out.shape
    assert bool(jnp.all(jnp.isfinite(out)))

    ref = jax.block_until_ready(jax.jit(reference_forward)(x, params))
    max_err = float(jnp.max(jnp.abs(out - ref)))
    assert max_err < 1e-3, f"kernel/reference mismatch: {max_err}"

    print("KERNEL_OK")
</pallas_src>

<mosaic_0001>
module attributes {stable_mosaic.version = 11 : i64} {
  func.func @speech_model_kernel(%arg0: memref<1x256xf32, #tpu.memory_space<vmem>>, %arg1: memref<9x256xf32, #tpu.memory_space<vmem>>, %arg2: memref<256x256xf32, #tpu.memory_space<vmem>>, %arg3: memref<32x32xf32, #tpu.memory_space<vmem>>, %arg4: memref<32x9xf32, #tpu.memory_space<vmem>>, %arg5: memref<32x1xf32, #tpu.memory_space<vmem>>, %arg6: memref<32x288xf32, #tpu.memory_space<vmem>>, %arg7: memref<32x1xf32, #tpu.memory_space<vmem>>, %arg8: memref<1x256xf32, #tpu.memory_space<vmem>>, %arg9: memref<1x256xf32, #tpu.memory_space<vmem>>, %arg10: memref<512x32xf32, #tpu.memory_space<vmem>>, %arg11: memref<1x32xf32, #tpu.memory_space<vmem>>, %arg12: memref<1x32xf32, #tpu.memory_space<vmem>>, %arg13: memref<1x32xf32, #tpu.memory_space<vmem>>, %arg14: memref<32x96xf32, #tpu.memory_space<vmem>>, %arg15: memref<1x96xf32, #tpu.memory_space<vmem>>, %arg16: memref<32x96xf32, #tpu.memory_space<vmem>>, %arg17: memref<1x96xf32, #tpu.memory_space<vmem>>, %arg18: memref<64x192xf32, #tpu.memory_space<vmem>>, %arg19: memref<1x192xf32, #tpu.memory_space<vmem>>, %arg20: memref<64x32xf32, #tpu.memory_space<vmem>>, %arg21: memref<1x32xf32, #tpu.memory_space<vmem>>, %arg22: memref<32x10xf32, #tpu.memory_space<vmem>>, %arg23: memref<1x10xf32, #tpu.memory_space<vmem>>, %arg24: memref<2x8x10xf32, #tpu.memory_space<vmem>>) attributes {dimension_semantics = [], scalar_prefetch = 0 : i64, scratch_operands = 0 : i64, tpu.core_type = #tpu.core_type<tc>} {
    %c0 = arith.constant 0 : index
    %c0_0 = arith.constant 0 : index
    %0 = vector.load %arg1[%c0, %c0_0] : memref<9x256xf32, #tpu.memory_space<vmem>>, vector<9x256xf32>
    %c0_1 = arith.constant 0 : index
    %c0_2 = arith.constant 0 : index
    %1 = vector.load %arg2[%c0_1, %c0_2] : memref<256x256xf32, #tpu.memory_space<vmem>>, vector<256x256xf32>
    %c0_3 = arith.constant 0 : index
    %c0_4 = arith.constant 0 : index
    %2 = vector.load %arg8[%c0_3, %c0_4] : memref<1x256xf32, #tpu.memory_space<vmem>>, vector<1x256xf32>
    %c0_5 = arith.constant 0 : index
    %c0_6 = arith.constant 0 : index
    %3 = vector.load %arg9[%c0_5, %c0_6] : memref<1x256xf32, #tpu.memory_space<vmem>>, vector<1x256xf32>
    %c0_7 = arith.constant 0 : index
    %c0_8 = arith.constant 0 : index
    %4 = vector.load %arg0[%c0_7, %c0_8] : memref<1x256xf32, #tpu.memory_space<vmem>>, vector<1x256xf32>
    %c0_9 = arith.constant 0 : index
    %c0_10 = arith.constant 0 : index
    %5 = vector.load %arg4[%c0_9, %c0_10] : memref<32x9xf32, #tpu.memory_space<vmem>>, vector<32x9xf32>
    %c0_11 = arith.constant 0 : index
    %c0_12 = arith.constant 0 : index
    %6 = vector.load %arg5[%c0_11, %c0_12] : memref<32x1xf32, #tpu.memory_space<vmem>>, vector<32x1xf32>
    %7 = vector.extract_strided_slice %4 {offsets = [0, 239], sizes = [1, 17], strides = [1, 1]} : vector<1x256xf32> to vector<1x17xf32>
    %8 = vector.extract_strided_slice %4 {offsets = [0, 0], sizes = [1, 239], strides = [1, 1]} : vector<1x256xf32> to vector<1x239xf32>
    %9 = tpu.concatenate %7, %8 in 1 : vector<1x17xf32>, vector<1x239xf32> -> vector<1x256xf32>
    %10 = vector.extract_strided_slice %0 {offsets = [0, 0], sizes = [1, 256], strides = [1, 1]} : vector<9x256xf32> to vector<1x256xf32>
    %11 = arith.mulf %9, %10 : vector<1x256xf32>
    %12 = vector.extract_strided_slice %4 {offsets = [0, 240], sizes = [1, 16], strides = [1, 1]} : vector<1x256xf32> to vector<1x16xf32>
    %13 = vector.extract_strided_slice %4 {offsets = [0, 0], sizes = [1, 240], strides = [1, 1]} : vector<1x256xf32> to vector<1x240xf32>
    %14 = tpu.concatenate %12, %13 in 1 : vector<1x16xf32>, vector<1x240xf32> -> vector<1x256xf32>
    %15 = vector.extract_strided_slice %0 {offsets = [1, 0], sizes = [1, 256], strides = [1, 1]} : vector<9x256xf32> to vector<1x256xf32>
    %16 = arith.mulf %14, %15 : vector<1x256xf32>
    %17 = vector.extract_strided_slice %4 {offsets = [0, 241], sizes = [1, 15], strides = [1, 1]} : vector<1x256xf32> to vector<1x15xf32>
    %18 = vector.extract_strided_slice %4 {offsets = [0, 0], sizes = [1, 241], strides = [1, 1]} : vector<1x256xf32> to vector<1x241xf32>
    %19 = tpu.concatenate %17, %18 in 1 : vector<1x15xf32>, vector<1x241xf32> -> vector<1x256xf32>
    %20 = vector.extract_strided_slice %0 {offsets = [2, 0], sizes = [1, 256], strides = [1, 1]} : vector<9x256xf32> to vector<1x256xf32>
    %21 = arith.mulf %19, %20 : vector<1x256xf32>
    %22 = vector.extract_strided_slice %4 {offsets = [0, 255], sizes = [1, 1], strides = [1, 1]} : vector<1x256xf32> to vector<1x1xf32>
    %23 = vector.extract_strided_slice %4 {offsets = [0, 0], sizes = [1, 255], strides = [1, 1]} : vector<1x256xf32> to vector<1x255xf32>
    %24 = tpu.concatenate %22, %23 in 1 : vector<1x1xf32>, vector<1x255xf32> -> vector<1x256xf32>
    %25 = vector.extract_strided_slice %0 {offsets = [3, 0], sizes = [1, 256], strides = [1, 1]} : vector<9x256xf32> to vector<1x256xf32>
    %26 = arith.mulf %24, %25 : vector<1x256xf32>
    %27 = vector.extract_strided_slice %0 {offsets = [4, 0], sizes = [1, 256], strides = [1, 1]} : vector<9x256xf32> to vector<1x256xf32>
    %28 = arith.mulf %4, %27 : vector<1x256xf32>
    %29 = vector.extract_strided_slice %4 {offsets = [0, 1], sizes = [1, 255], strides = [1, 1]} : vector<1x256xf32> to vector<1x255xf32>
    %30 = vector.extract_strided_slice %4 {offsets = [0, 0], sizes = [1, 1], strides = [1, 1]} : vector<1x256xf32> to vector<1x1xf32>
    %31 = tpu.concatenate %29, %30 in 1 : vector<1x255xf32>, vector<1x1xf32> -> vector<1x256xf32>
    %32 = vector.extract_strided_slice %0 {offsets = [5, 0], sizes = [1, 256], strides = [1, 1]} : vector<9x256xf32> to vector<1x256xf32>
    %33 = arith.mulf %31, %32 : vector<1x256xf32>
    %34 = vector.extract_strided_slice %4 {offsets = [0, 15], sizes = [1, 241], strides = [1, 1]} : vector<1x256xf32> to vector<1x241xf32>
    %35 = vector.extract_strided_slice %4 {offsets = [0, 0], sizes = [1, 15], strides = [1, 1]} : vector<1x256xf32> to vector<1x15xf32>
    %36 = tpu.concatenate %34, %35 in 1 : vector<1x241xf32>, vector<1x15xf32> -> vector<1x256xf32>
    %37 = vector.extract_strided_slice %0 {offsets = [6, 0], sizes = [1, 256], strides = [1, 1]} : vector<9x256xf32> to vector<1x256xf32>
    %38 = arith.mulf %36, %37 : vector<1x256xf32>
    %39 = vector.extract_strided_slice %4 {offsets = [0, 16], sizes = [1, 240], strides = [1, 1]} : vector<1x256xf32> to vector<1x240xf32>
    %40 = vector.extract_strided_slice %4 {offsets = [0, 0], sizes = [1, 16], strides = [1, 1]} : vector<1x256xf32> to vector<1x16xf32>
    %41 = tpu.concatenate %39, %40 in 1 : vector<1x240xf32>, vector<1x16xf32> -> vector<1x256xf32>
    %42 = vector.extract_strided_slice %0 {offsets = [7, 0], sizes = [1, 256], strides = [1, 1]} : vector<9x256xf32> to vector<1x256xf32>
    %43 = arith.mulf %41, %42 : vector<1x256xf32>
    %44 = vector.extract_strided_slice %4 {offsets = [0, 17], sizes = [1, 239], strides = [1, 1]} : vector<1x256xf32> to vector<1x239xf32>
    %45 = vector.extract_strided_slice %4 {offsets = [0, 0], sizes = [1, 17], strides = [1, 1]} : vector<1x256xf32> to vector<1x17xf32>
    %46 = tpu.concatenate %44, %45 in 1 : vector<1x239xf32>, vector<1x17xf32> -> vector<1x256xf32>
    %47 = vector.extract_strided_slice %0 {offsets = [8, 0], sizes = [1, 256], strides = [1, 1]} : vector<9x256xf32> to vector<1x256xf32>
    %48 = arith.mulf %46, %47 : vector<1x256xf32>
    %49 = tpu.concatenate %11, %16, %21, %26, %28, %33, %38, %43, %48 in 0 : vector<1x256xf32>, vector<1x256xf32>, vector<1x256xf32>, vector<1x256xf32>, vector<1x256xf32>, vector<1x256xf32>, vector<1x256xf32>, vector<1x256xf32>, vector<1x256xf32> -> vector<9x256xf32>
    %cst = arith.constant dense<0.000000e+00> : vector<32x256xf32>
    %50 = tpu.matmul %5, %49, %cst {dimension_numbers = #tpu.dot_dimension_numbers<[1], [0], [0], [1], [0, 0, 1, 1], [], []>} : vector<32x9xf32>, vector<9x256xf32>, vector<32x256xf32> -> vector<32x256xf32>
    %51 = vector.broadcast %6 : vector<32x1xf32> to vector<32x256xf32>
    %52 = arith.addf %50, %51 : vector<32x256xf32>
    %c0_13 = arith.constant 0 : index
    %c0_14 = arith.constant 0 : index
    %53 = vector.load %arg6[%c0_13, %c0_14] : memref<32x288xf32, #tpu.memory_space<vmem>>, vector<32x288xf32>
    %c0_15 = arith.constant 0 : index
    %c0_16 = arith.constant 0 : index
    %54 = vector.load %arg7[%c0_15, %c0_16] : memref<32x1xf32, #tpu.memory_space<vmem>>, vector<32x1xf32>
    %cst_17 = arith.constant dense<0.000000e+00> : vector<32x256xf32>
    %55 = tpu.matmul %52, %1, %cst_17 {dimension_numbers = #tpu.dot_dimension_numbers<[1], [0], [0], [1], [0, 0, 1, 1], [], []>} : vector<32x256xf32>, vector<256x256xf32>, vector<32x256xf32> -> vector<32x256xf32>
    %56 = arith.subf %52, %55 : vector<32x256xf32>
    %57 = arith.mulf %56, %56 : vector<32x256xf32>
    %cst_18 = arith.constant dense<0.000000e+00> : vector<32x256xf32>
    %58 = tpu.matmul %57, %1, %cst_18 {dimension_numbers = #tpu.dot_dimension_numbers<[1], [0], [0], [1], [0, 0, 1, 1], [], []>} : vector<32x256xf32>, vector<256x256xf32>, vector<32x256xf32> -> vector<32x256xf32>
    %cst_19 = arith.constant 9.99999974E-6 : f32
    %59 = vector.broadcast %cst_19 : f32 to vector<32x256xf32>
    %60 = arith.addf %58, %59 : vector<32x256xf32>
    %61 = math.rsqrt %60 : vector<32x256xf32>
    %62 = arith.mulf %56, %61 : vector<32x256xf32>
    %63 = vector.broadcast %2 : vector<1x256xf32> to vector<32x256xf32>
    %64 = arith.mulf %62, %63 : vector<32x256xf32>
    %65 = vector.broadcast %3 : vector<1x256xf32> to vector<32x256xf32>
    %66 = arith.addf %64, %65 : vector<32x256xf32>
    %cst_20 = arith.constant 5.000000e-01 : f32
    %67 = vector.broadcast %cst_20 : f32 to vector<32x256xf32>
    %68 = arith.mulf %67, %66 : vector<32x256xf32>
    %cst_21 = arith.constant 4.471500e-02 : f32
    %69 = vector.broadcast %cst_21 : f32 to vector<32x256xf32>
    %70 = arith.mulf %69, %66 : vector<32x256xf32>
    %71 = arith.mulf %70, %66 : vector<32x256xf32>
    %72 = arith.mulf %71, %66 : vector<32x256xf32>
    %73 = arith.addf %66, %72 : vector<32x256xf32>
    %cst_22 = arith.constant 0.797884583 : f32
    %74 = vector.broadcast %cst_22 : f32 to vector<32x256xf32>
    %75 = arith.mulf %74, %73 : vector<32x256xf32>
    %76 = math.tanh %75 : vector<32x256xf32>
    %cst_23 = arith.constant 1.000000e+00 : f32
    %77 = vector.broadcast %cst_23 : f32 to vector<32x256xf32>
    %78 = arith.addf %77, %76 : vector<32x256xf32>
    %79 = arith.mulf %68, %78 : vector<32x256xf32>
    %80 = vector.extract_strided_slice %79 {offsets = [0, 239], sizes = [32, 17], strides = [1, 1]} : vector<32x256xf32> to vector<32x17xf32>
    %81 = vector.extract_strided_slice %79 {offsets = [0, 0], sizes = [32, 239], strides = [1, 1]} : vector<32x256xf32> to vector<32x239xf32>
    %82 = tpu.concatenate %80, %81 in 1 : vector<32x17xf32>, vector<32x239xf32> -> vector<32x256xf32>
    %83 = vector.extract_strided_slice %0 {offsets = [0, 0], sizes = [1, 256], strides = [1, 1]} : vector<9x256xf32> to vector<1x256xf32>
    %84 = vector.broadcast %83 : vector<1x256xf32> to vector<32x256xf32>
    %85 = arith.mulf %82, %84 : vector<32x256xf32>
    %86 = vector.extract_strided_slice %79 {offsets = [0, 240], sizes = [32, 16], strides = [1, 1]} : vector<32x256xf32> to vector<32x16xf32>
    %87 = vector.extract_strided_slice %79 {offsets = [0, 0], sizes = [32, 240], strides = [1, 1]} : vector<32x256xf32> to vector<32x240xf32>
    %88 = tpu.concatenate %86, %87 in 1 : vector<32x16xf32>, vector<32x240xf32> -> vector<32x256xf32>
    %89 = vector.extract_strided_slice %0 {offsets = [1, 0], sizes = [1, 256], strides = [1, 1]} : vector<9x256xf32> to vector<1x256xf32>
    %90 = vector.broadcast %89 : vector<1x256xf32> to vector<32x256xf32>
    %91 = arith.mulf %88, %90 : vector<32x256xf32>
    %92 = vector.extract_strided_slice %79 {offsets = [0, 241], sizes = [32, 15], strides = [1, 1]} : vector<32x256xf32> to vector<32x15xf32>
    %93 = vector.extract_strided_slice %79 {offsets = [0, 0], sizes = [32, 241], strides = [1, 1]} : vector<32x256xf32> to vector<32x241xf32>
    %94 = tpu.concatenate %92, %93 in 1 : vector<32x15xf32>, vector<32x241xf32> -> vector<32x256xf32>
    %95 = vector.extract_strided_slice %0 {offsets = [2, 0], sizes = [1, 256], strides = [1, 1]} : vector<9x256xf32> to vector<1x256xf32>
    %96 = vector.broadcast %95 : vector<1x256xf32> to vector<32x256xf32>
    %97 = arith.mulf %94, %96 : vector<32x256xf32>
    %98 = vector.extract_strided_slice %79 {offsets = [0, 255], sizes = [32, 1], strides = [1, 1]} : vector<32x256xf32> to vector<32x1xf32>
    %99 = vector.extract_strided_slice %79 {offsets = [0, 0], sizes = [32, 255], strides = [1, 1]} : vector<32x256xf32> to vector<32x255xf32>
    %100 = tpu.concatenate %98, %99 in 1 : vector<32x1xf32>, vector<32x255xf32> -> vector<32x256xf32>
    %101 = vector.extract_strided_slice %0 {offsets = [3, 0], sizes = [1, 256], strides = [1, 1]} : vector<9x256xf32> to vector<1x256xf32>
    %102 = vector.broadcast %101 : vector<1x256xf32> to vector<32x256xf32>
    %103 = arith.mulf %100, %102 : vector<32x256xf32>
    %104 = vector.extract_strided_slice %0 {offsets = [4, 0], sizes = [1, 256], strides = [1, 1]} : vector<9x256xf32> to vector<1x256xf32>
    %105 = vector.broadcast %104 : vector<1x256xf32> to vector<32x256xf32>
    %106 = arith.mulf %79, %105 : vector<32x256xf32>
    %107 = vector.extract_strided_slice %79 {offsets = [0, 1], sizes = [32, 255], strides = [1, 1]} : vector<32x256xf32> to vector<32x255xf32>
    %108 = vector.extract_strided_slice %79 {offsets = [0, 0], sizes = [32, 1], strides = [1, 1]} : vector<32x256xf32> to vector<32x1xf32>
    %109 = tpu.concatenate %107, %108 in 1 : vector<32x255xf32>, vector<32x1xf32> -> vector<32x256xf32>
    %110 = vector.extract_strided_slice %0 {offsets = [5, 0], sizes = [1, 256], strides = [1, 1]} : vector<9x256xf32> to vector<1x256xf32>
    %111 = vector.broadcast %110 : vector<1x256xf32> to vector<32x256xf32>
    %112 = arith.mulf %109, %111 : vector<32x256xf32>
    %113 = vector.extract_strided_slice %79 {offsets = [0, 15], sizes = [32, 241], strides = [1, 1]} : vector<32x256xf32> to vector<32x241xf32>
    %114 = vector.extract_strided_slice %79 {offsets = [0, 0], sizes = [32, 15], strides = [1, 1]} : vector<32x256xf32> to vector<32x15xf32>
    %115 = tpu.concatenate %113, %114 in 1 : vector<32x241xf32>, vector<32x15xf32> -> vector<32x256xf32>
    %116 = vector.extract_strided_slice %0 {offsets = [6, 0], sizes = [1, 256], strides = [1, 1]} : vector<9x256xf32> to vector<1x256xf32>
    %117 = vector.broadcast %116 : vector<1x256xf32> to vector<32x256xf32>
    %118 = arith.mulf %115, %117 : vector<32x256xf32>
    %119 = vector.extract_strided_slice %79 {offsets = [0, 16], sizes = [32, 240], strides = [1, 1]} : vector<32x256xf32> to vector<32x240xf32>
    %120 = vector.extract_strided_slice %79 {offsets = [0, 0], sizes = [32, 16], strides = [1, 1]} : vector<32x256xf32> to vector<32x16xf32>
    %121 = tpu.concatenate %119, %120 in 1 : vector<32x240xf32>, vector<32x16xf32> -> vector<32x256xf32>
    %122 = vector.extract_strided_slice %0 {offsets = [7, 0], sizes = [1, 256], strides = [1, 1]} : vector<9x256xf32> to vector<1x256xf32>
    %123 = vector.broadcast %122 : vector<1x256xf32> to vector<32x256xf32>
    %124 = arith.mulf %121, %123 : vector<32x256xf32>
    %125 = vector.extract_strided_slice %79 {offsets = [0, 17], sizes = [32, 239], strides = [1, 1]} : vector<32x256xf32> to vector<32x239xf32>
    %126 = vector.extract_strided_slice %79 {offsets = [0, 0], sizes = [32, 17], strides = [1, 1]} : vector<32x256xf32> to vector<32x17xf32>
    %127 = tpu.concatenate %125, %126 in 1 : vector<32x239xf32>, vector<32x17xf32> -> vector<32x256xf32>
    %128 = vector.extract_strided_slice %0 {offsets = [8, 0], sizes = [1, 256], strides = [1, 1]} : vector<9x256xf32> to vector<1x256xf32>
    %129 = vector.broadcast %128 : vector<1x256xf32> to vector<32x256xf32>
    %130 = arith.mulf %127, %129 : vector<32x256xf32>
    %131 = tpu.concatenate %85, %91, %97, %103, %106, %112, %118, %124, %130 in 0 : vector<32x256xf32>, vector<32x256xf32>, vector<32x256xf32>, vector<32x256xf32>, vector<32x256xf32>, vector<32x256xf32>, vector<32x256xf32>, vector<32x256xf32>, vector<32x256xf32> -> vector<288x256xf32>
    %cst_24 = arith.constant dense<0.000000e+00> : vector<32x256xf32>
    %132 = tpu.matmul %53, %131, %cst_24 {dimension_numbers = #tpu.dot_dimension_numbers<[1], [0], [0], [1], [0, 0, 1, 1], [], []>} : vector<32x288xf32>, vector<288x256xf32>, vector<32x256xf32> -> vector<32x256xf32>
    %133 = vector.broadcast %54 : vector<32x1xf32> to vector<32x256xf32>
    %134 = arith.addf %132, %133 : vector<32x256xf32>
    %cst_25 = arith.constant dense<0.000000e+00> : vector<32x256xf32>
    %135 = tpu.matmul %134, %1, %cst_25 {dimension_numbers = #tpu.dot_dimension_numbers<[1], [0], [0], [1], [0, 0, 1, 1], [], []>} : vector<32x256xf32>, vector<256x256xf32>, vector<32x256xf32> -> vector<32x256xf32>
    %136 = arith.subf %134, %135 : vector<32x256xf32>
    %137 = arith.mulf %136, %136 : vector<32x256xf32>
    %cst_26 = arith.constant dense<0.000000e+00> : vector<32x256xf32>
    %138 = tpu.matmul %137, %1, %cst_26 {dimension_numbers = #tpu.dot_dimension_numbers<[1], [0], [0], [1], [0, 0, 1, 1], [], []>} : vector<32x256xf32>, vector<256x256xf32>, vector<32x256xf32> -> vector<32x256xf32>
    %cst_27 = arith.constant 9.99999974E-6 : f32
    %139 = vector.broadcast %cst_27 : f32 to vector<32x256xf32>
    %140 = arith.addf %138, %139 : vector<32x256xf32>
    %141 = math.rsqrt %140 : vector<32x256xf32>
    %142 = arith.mulf %136, %141 : vector<32x256xf32>
    %143 = vector.broadcast %2 : vector<1x256xf32> to vector<32x256xf32>
    %144 = arith.mulf %142, %143 : vector<32x256xf32>
    %145 = vector.broadcast %3 : vector<1x256xf32> to vector<32x256xf32>
    %146 = arith.addf %144, %145 : vector<32x256xf32>
    %cst_28 = arith.constant 5.000000e-01 : f32
    %147 = vector.broadcast %cst_28 : f32 to vector<32x256xf32>
    %148 = arith.mulf %147, %146 : vector<32x256xf32>
    %cst_29 = arith.constant 4.471500e-02 : f32
    %149 = vector.broadcast %cst_29 : f32 to vector<32x256xf32>
    %150 = arith.mulf %149, %146 : vector<32x256xf32>
    %151 = arith.mulf %150, %146 : vector<32x256xf32>
    %152 = arith.mulf %151, %146 : vector<32x256xf32>
    %153 = arith.addf %146, %152 : vector<32x256xf32>
    %cst_30 = arith.constant 0.797884583 : f32
    %154 = vector.broadcast %cst_30 : f32 to vector<32x256xf32>
    %155 = arith.mulf %154, %153 : vector<32x256xf32>
    %156 = math.tanh %155 : vector<32x256xf32>
    %cst_31 = arith.constant 1.000000e+00 : f32
    %157 = vector.broadcast %cst_31 : f32 to vector<32x256xf32>
    %158 = arith.addf %157, %156 : vector<32x256xf32>
    %159 = arith.mulf %148, %158 : vector<32x256xf32>
    %160 = vector.extract_strided_slice %159 {offsets = [0, 239], sizes = [32, 17], strides = [1, 1]} : vector<32x256xf32> to vector<32x17xf32>
    %161 = vector.extract_strided_slice %159 {offsets = [0, 0], sizes = [32, 239], strides = [1, 1]} : vector<32x256xf32> to vector<32x239xf32>
    %162 = tpu.concatenate %160, %161 in 1 : vector<32x17xf32>, vector<32x239xf32> -> vector<32x256xf32>
    %163 = vector.extract_strided_slice %0 {offsets = [0, 0], sizes = [1, 256], strides = [1, 1]} : vector<9x256xf32> to vector<1x256xf32>
    %164 = vector.broadcast %163 : vector<1x256xf32> to vector<32x256xf32>
    %165 = arith.mulf %162, %164 : vector<32x256xf32>
    %166 = vector.extract_strided_slice %159 {offsets = [0, 240], sizes = [32, 16], strides = [1, 1]} : vector<32x256xf32> to vector<32x16xf32>
    %167 = vector.extract_strided_slice %159 {offsets = [0, 0], sizes = [32, 240], strides = [1, 1]} : vector<32x256xf32> to vector<32x240xf32>
    %168 = tpu.concatenate %166, %167 in 1 : vector<32x16xf32>, vector<32x240xf32> -> vector<32x256xf32>
    %169 = vector.extract_strided_slice %0 {offsets = [1, 0], sizes = [1, 256], strides = [1, 1]} : vector<9x256xf32> to vector<1x256xf32>
    %170 = vector.broadcast %169 : vector<1x256xf32> to vector<32x256xf32>
    %171 = arith.mulf %168, %170 : vector<32x256xf32>
    %172 = vector.extract_strided_slice %159 {offsets = [0, 241], sizes = [32, 15], strides = [1, 1]} : vector<32x256xf32> to vector<32x15xf32>
    %173 = vector.extract_strided_slice %159 {offsets = [0, 0], sizes = [32, 241], strides = [1, 1]} : vector<32x256xf32> to vector<32x241xf32>
    %174 = tpu.concatenate %172, %173 in 1 : vector<32x15xf32>, vector<32x241xf32> -> vector<32x256xf32>
    %175 = vector.extract_strided_slice %0 {offsets = [2, 0], sizes = [1, 256], strides = [1, 1]} : vector<9x256xf32> to vector<1x256xf32>
    %176 = vector.broadcast %175 : vector<1x256xf32> to vector<32x256xf32>
    %177 = arith.mulf %174, %176 : vector<32x256xf32>
    %178 = vector.extract_strided_slice %159 {offsets = [0, 255], sizes = [32, 1], strides = [1, 1]} : vector<32x256xf32> to vector<32x1xf32>
    %179 = vector.extract_strided_slice %159 {offsets = [0, 0], sizes = [32, 255], strides = [1, 1]} : vector<32x256xf32> to vector<32x255xf32>
    %180 = tpu.concatenate %178, %179 in 1 : vector<32x1xf32>, vector<32x255xf32> -> vector<32x256xf32>
    %181 = vector.extract_strided_slice %0 {offsets = [3, 0], sizes = [1, 256], strides = [1, 1]} : vector<9x256xf32> to vector<1x256xf32>
    %182 = vector.broadcast %181 : vector<1x256xf32> to vector<32x256xf32>
    %183 = arith.mulf %180, %182 : vector<32x256xf32>
    %184 = vector.extract_strided_slice %0 {offsets = [4, 0], sizes = [1, 256], strides = [1, 1]} : vector<9x256xf32> to vector<1x256xf32>
    %185 = vector.broadcast %184 : vector<1x256xf32> to vector<32x256xf32>
    %186 = arith.mulf %159, %185 : vector<32x256xf32>
    %187 = vector.extract_strided_slice %159 {offsets = [0, 1], sizes = [32, 255], strides = [1, 1]} : vector<32x256xf32> to vector<32x255xf32>
    %188 = vector.extract_strided_slice %159 {offsets = [0, 0], sizes = [32, 1], strides = [1, 1]} : vector<32x256xf32> to vector<32x1xf32>
    %189 = tpu.concatenate %187, %188 in 1 : vector<32x255xf32>, vector<32x1xf32> -> vector<32x256xf32>
    %190 = vector.extract_strided_slice %0 {offsets = [5, 0], sizes = [1, 256], strides = [1, 1]} : vector<9x256xf32> to vector<1x256xf32>
    %191 = vector.broadcast %190 : vector<1x256xf32> to vector<32x256xf32>
    %192 = arith.mulf %189, %191 : vector<32x256xf32>
    %193 = vector.extract_strided_slice %159 {offsets = [0, 15], sizes = [32, 241], strides = [1, 1]} : vector<32x256xf32> to vector<32x241xf32>
    %194 = vector.extract_strided_slice %159 {offsets = [0, 0], sizes = [32, 15], strides = [1, 1]} : vector<32x256xf32> to vector<32x15xf32>
    %195 = tpu.concatenate %193, %194 in 1 : vector<32x241xf32>, vector<32x15xf32> -> vector<32x256xf32>
    %196 = vector.extract_strided_slice %0 {offsets = [6, 0], sizes = [1, 256], strides = [1, 1]} : vector<9x256xf32> to vector<1x256xf32>
    %197 = vector.broadcast %196 : vector<1x256xf32> to vector<32x256xf32>
    %198 = arith.mulf %195, %197 : vector<32x256xf32>
    %199 = vector.extract_strided_slice %159 {offsets = [0, 16], sizes = [32, 240], strides = [1, 1]} : vector<32x256xf32> to vector<32x240xf32>
    %200 = vector.extract_strided_slice %159 {offsets = [0, 0], sizes = [32, 16], strides = [1, 1]} : vector<32x256xf32> to vector<32x16xf32>
    %201 = tpu.concatenate %199, %200 in 1 : vector<32x240xf32>, vector<32x16xf32> -> vector<32x256xf32>
    %202 = vector.extract_strided_slice %0 {offsets = [7, 0], sizes = [1, 256], strides = [1, 1]} : vector<9x256xf32> to vector<1x256xf32>
    %203 = vector.broadcast %202 : vector<1x256xf32> to vector<32x256xf32>
    %204 = arith.mulf %201, %203 : vector<32x256xf32>
    %205 = vector.extract_strided_slice %159 {offsets = [0, 17], sizes = [32, 239], strides = [1, 1]} : vector<32x256xf32> to vector<32x239xf32>
    %206 = vector.extract_strided_slice %159 {offsets = [0, 0], sizes = [32, 17], strides = [1, 1]} : vector<32x256xf32> to vector<32x17xf32>
    %207 = tpu.concatenate %205, %206 in 1 : vector<32x239xf32>, vector<32x17xf32> -> vector<32x256xf32>
    %208 = vector.extract_strided_slice %0 {offsets = [8, 0], sizes = [1, 256], strides = [1, 1]} : vector<9x256xf32> to vector<1x256xf32>
    %209 = vector.broadcast %208 : vector<1x256xf32> to vector<32x256xf32>
    %210 = arith.mulf %207, %209 : vector<32x256xf32>
    %211 = tpu.concatenate %165, %171, %177, %183, %186, %192, %198, %204, %210 in 0 : vector<32x256xf32>, vector<32x256xf32>, vector<32x256xf32>, vector<32x256xf32>, vector<32x256xf32>, vector<32x256xf32>, vector<32x256xf32>, vector<32x256xf32>, vector<32x256xf32> -> vector<288x256xf32>
    %cst_32 = arith.constant dense<0.000000e+00> : vector<32x256xf32>
    %212 = tpu.matmul %53, %211, %cst_32 {dimension_numbers = #tpu.dot_dimension_numbers<[1], [0], [0], [1], [0, 0, 1, 1], [], []>} : vector<32x288xf32>, vector<288x256xf32>, vector<32x256xf32> -> vector<32x256xf32>
    %213 = vector.broadcast %54 : vector<32x1xf32> to vector<32x256xf32>
    %214 = arith.addf %212, %213 : vector<32x256xf32>
    %215 = arith.addf %214, %52 : vector<32x256xf32>
    %c0_33 = arith.constant 0 : index
    %c0_34 = arith.constant 0 : index
    %216 = vector.load %arg3[%c0_33, %c0_34] : memref<32x32xf32, #tpu.memory_space<vmem>>, vector<32x32xf32>
    %217 = vector.extract_strided_slice %215 {offsets = [0, 0], sizes = [32, 128], strides = [1, 1]} : vector<32x256xf32> to vector<32x128xf32>
    %cst_35 = arith.constant dense<0.000000e+00> : vector<32x128xf32>
    %218 = tpu.matmul %216, %217, %cst_35 {dimension_numbers = #tpu.dot_dimension_numbers<[1], [0], [0], [1], [0, 0, 1, 1], [], []>} : vector<32x32xf32>, vector<32x128xf32>, vector<32x128xf32> -> vector<32x128xf32>
    %219 = vector.extract_strided_slice %218 {offsets = [0, 0], sizes = [8, 128], strides = [1, 1]} : vector<32x128xf32> to vector<8x128xf32>
    %220 = vector.extract_strided_slice %218 {offsets = [8, 0], sizes = [8, 128], strides = [1, 1]} : vector<32x128xf32> to vector<8x128xf32>
    %221 = vector.extract_strided_slice %218 {offsets = [16, 0], sizes = [8, 128], strides = [1, 1]} : vector<32x128xf32> to vector<8x128xf32>
    %222 = vector.extract_strided_slice %218 {offsets = [24, 0], sizes = [8, 128], strides = [1, 1]} : vector<32x128xf32> to vector<8x128xf32>
    %223 = tpu.concatenate %219, %220, %221, %222 in 1 : vector<8x128xf32>, vector<8x128xf32>, vector<8x128xf32>, vector<8x128xf32> -> vector<8x512xf32>
    %224 = vector.extract_strided_slice %215 {offsets = [0, 128], sizes = [32, 128], strides = [1, 1]} : vector<32x256xf32> to vector<32x128xf32>
    %cst_36 = arith.constant dense<0.000000e+00> : vector<32x128xf32>
    %225 = tpu.matmul %216, %224, %cst_36 {dimension_numbers = #tpu.dot_dimension_numbers<[1], [0], [0], [1], [0, 0, 1, 1], [], []>} : vector<32x32xf32>, vector<32x128xf32>, vector<32x128xf32> -> vector<32x128xf32>
    %226 = vector.extract_strided_slice %225 {offsets = [0, 0], sizes = [8, 128], strides = [1, 1]} : vector<32x128xf32> to vector<8x128xf32>
    %227 = vector.extract_strided_slice %225 {offsets = [8, 0], sizes = [8, 128], strides = [1, 1]} : vector<32x128xf32> to vector<8x128xf32>
    %228 = vector.extract_strided_slice %225 {offsets = [16, 0], sizes = [8, 128], strides = [1, 1]} : vector<32x128xf32> to vector<8x128xf32>
    %229 = vector.extract_strided_slice %225 {offsets = [24, 0], sizes = [8, 128], strides = [1, 1]} : vector<32x128xf32> to vector<8x128xf32>
    %230 = tpu.concatenate %226, %227, %228, %229 in 1 : vector<8x128xf32>, vector<8x128xf32>, vector<8x128xf32>, vector<8x128xf32> -> vector<8x512xf32>
    %231 = tpu.concatenate %223, %230 in 0 : vector<8x512xf32>, vector<8x512xf32> -> vector<16x512xf32>
    %c0_37 = arith.constant 0 : index
    %c0_38 = arith.constant 0 : index
    %232 = vector.load %arg10[%c0_37, %c0_38] : memref<512x32xf32, #tpu.memory_space<vmem>>, vector<512x32xf32>
    %cst_39 = arith.constant dense<0.000000e+00> : vector<16x32xf32>
    %233 = tpu.matmul %231, %232, %cst_39 {dimension_numbers = #tpu.dot_dimension_numbers<[1], [0], [0], [1], [0, 0, 1, 1], [], []>} : vector<16x512xf32>, vector<512x32xf32>, vector<16x32xf32> -> vector<16x32xf32>
    %c0_40 = arith.constant 0 : index
    %c0_41 = arith.constant 0 : index
    %234 = vector.load %arg11[%c0_40, %c0_41] : memref<1x32xf32, #tpu.memory_space<vmem>>, vector<1x32xf32>
    %235 = vector.broadcast %234 : vector<1x32xf32> to vector<16x32xf32>
    %236 = arith.addf %233, %235 : vector<16x32xf32>
    %cst_42 = arith.constant dense<0.000000e+00> : vector<16xf32>
    %237 = vector.multi_reduction <add>, %236, %cst_42 [1] : vector<16x32xf32> to vector<16xf32>
    %238 = vector.shape_cast %237 : vector<16xf32> to vector<16x1xf32>
    %cst_43 = arith.constant 3.200000e+01 : f32
    %239 = vector.broadcast %cst_43 : f32 to vector<16x1xf32>
    %240 = arith.divf %238, %239 : vector<16x1xf32>
    %241 = vector.broadcast %240 : vector<16x1xf32> to vector<16x32xf32>
    %242 = arith.subf %236, %241 : vector<16x32xf32>
    %243 = arith.mulf %242, %242 : vector<16x32xf32>
    %cst_44 = arith.constant dense<0.000000e+00> : vector<16xf32>
    %244 = vector.multi_reduction <add>, %243, %cst_44 [1] : vector<16x32xf32> to vector<16xf32>
    %245 = vector.shape_cast %244 : vector<16xf32> to vector<16x1xf32>
    %cst_45 = arith.constant 3.200000e+01 : f32
    %246 = vector.broadcast %cst_45 : f32 to vector<16x1xf32>
    %247 = arith.divf %245, %246 : vector<16x1xf32>
    %248 = vector.broadcast %240 : vector<16x1xf32> to vector<16x32xf32>
    %249 = arith.subf %236, %248 : vector<16x32xf32>
    %cst_46 = arith.constant 9.99999974E-6 : f32
    %250 = vector.broadcast %cst_46 : f32 to vector<16x1xf32>
    %251 = arith.addf %247, %250 : vector<16x1xf32>
    %252 = math.rsqrt %251 : vector<16x1xf32>
    %253 = vector.broadcast %252 : vector<16x1xf32> to vector<16x32xf32>
    %254 = arith.mulf %249, %253 : vector<16x32xf32>
    %c0_47 = arith.constant 0 : index
    %c0_48 = arith.constant 0 : index
    %255 = vector.load %arg12[%c0_47, %c0_48] : memref<1x32xf32, #tpu.memory_space<vmem>>, vector<1x32xf32>
    %256 = vector.broadcast %255 : vector<1x32xf32> to vector<16x32xf32>
    %257 = arith.mulf %254, %256 : vector<16x32xf32>
    %c0_49 = arith.constant 0 : index
    %c0_50 = arith.constant 0 : index
    %258 = vector.load %arg13[%c0_49, %c0_50] : memref<1x32xf32, #tpu.memory_space<vmem>>, vector<1x32xf32>
    %259 = vector.broadcast %258 : vector<1x32xf32> to vector<16x32xf32>
    %260 = arith.addf %257, %259 : vector<16x32xf32>
    %cst_51 = arith.constant 5.000000e-01 : f32
    %261 = vector.broadcast %cst_51 : f32 to vector<16x32xf32>
    %262 = arith.mulf %261, %260 : vector<16x32xf32>
    %cst_52 = arith.constant 4.471500e-02 : f32
    %263 = vector.broadcast %cst_52 : f32 to vector<16x32xf32>
    %264 = arith.mulf %263, %260 : vector<16x32xf32>
    %265 = arith.mulf %264, %260 : vector<16x32xf32>
    %266 = arith.mulf %265, %260 : vector<16x32xf32>
    %267 = arith.addf %260, %266 : vector<16x32xf32>
    %cst_53 = arith.constant 0.797884583 : f32
    %268 = vector.broadcast %cst_53 : f32 to vector<16x32xf32>
    %269 = arith.mulf %268, %267 : vector<16x32xf32>
    %270 = math.tanh %269 : vector<16x32xf32>
    %cst_54 = arith.constant 1.000000e+00 : f32
    %271 = vector.broadcast %cst_54 : f32 to vector<16x32xf32>
    %272 = arith.addf %271, %270 : vector<16x32xf32>
    %273 = arith.mulf %262, %272 : vector<16x32xf32>
    %c0_55 = arith.constant 0 : index
    %c0_56 = arith.constant 0 : index
    %274 = vector.load %arg14[%c0_55, %c0_56] : memref<32x96xf32, #tpu.memory_space<vmem>>, vector<32x96xf32>
    %cst_57 = arith.constant dense<0.000000e+00> : vector<16x96xf32>
    %275 = tpu.matmul %273, %274, %cst_57 {dimension_numbers = #tpu.dot_dimension_numbers<[1], [0], [0], [1], [0, 0, 1, 1], [], []>} : vector<16x32xf32>, vector<32x96xf32>, vector<16x96xf32> -> vector<16x96xf32>
    %c0_58 = arith.constant 0 : index
    %c0_59 = arith.constant 0 : index
    %276 = vector.load %arg15[%c0_58, %c0_59] : memref<1x96xf32, #tpu.memory_space<vmem>>, vector<1x96xf32>
    %277 = vector.broadcast %276 : vector<1x96xf32> to vector<16x96xf32>
    %278 = arith.addf %275, %277 : vector<16x96xf32>
    %c0_60 = arith.constant 0 : index
    %c0_61 = arith.constant 0 : index
    %279 = vector.load %arg16[%c0_60, %c0_61] : memref<32x96xf32, #tpu.memory_space<vmem>>, vector<32x96xf32>
    %cst_62 = arith.constant dense<0.000000e+00> : vector<16x96xf32>
    %280 = tpu.matmul %273, %279, %cst_62 {dimension_numbers = #tpu.dot_dimension_numbers<[1], [0], [0], [1], [0, 0, 1, 1], [], []>} : vector<16x32xf32>, vector<32x96xf32>, vector<16x96xf32> -> vector<16x96xf32>
    %c0_63 = arith.constant 0 : index
    %c0_64 = arith.constant 0 : index
    %281 = vector.load %arg17[%c0_63, %c0_64] : memref<1x96xf32, #tpu.memory_space<vmem>>, vector<1x96xf32>
    %282 = vector.broadcast %281 : vector<1x96xf32> to vector<16x96xf32>
    %283 = arith.addf %280, %282 : vector<16x96xf32>
    %c0_65 = arith.constant 0 : index
    %c0_66 = arith.constant 0 : index
    %284 = vector.load %arg18[%c0_65, %c0_66] : memref<64x192xf32, #tpu.memory_space<vmem>>, vector<64x192xf32>
    %c0_67 = arith.constant 0 : index
    %c0_68 = arith.constant 0 : index
    %285 = vector.load %arg19[%c0_67, %c0_68] : memref<1x192xf32, #tpu.memory_space<vmem>>, vector<1x192xf32>
    %cst_69 = arith.constant 0.000000e+00 : f32
    %286 = vector.broadcast %cst_69 : f32 to vector<2x32xf32>
    %cst_70 = arith.constant 0.000000e+00 : f32
    %287 = vector.broadcast %cst_70 : f32 to vector<2x32xf32>
    %288 = tpu.concatenate %286, %287 in 1 : vector<2x32xf32>, vector<2x32xf32> -> vector<2x64xf32>
    %cst_71 = arith.constant dense<0.000000e+00> : vector<2x192xf32>
    %289 = tpu.matmul %288, %284, %cst_71 {dimension_numbers = #tpu.dot_dimension_numbers<[1], [0], [0], [1], [0, 0, 1, 1], [], []>} : vector<2x64xf32>, vector<64x192xf32>, vector<2x192xf32> -> vector<2x192xf32>
    %290 = vector.broadcast %285 : vector<1x192xf32> to vector<2x192xf32>
    %291 = arith.addf %289, %290 : vector<2x192xf32>
    %292 = vector.extract_strided_slice %278 {offsets = [0, 0], sizes = [1, 96], strides = [1, 1]} : vector<16x96xf32> to vector<1x96xf32>
    %293 = vector.extract_strided_slice %278 {offsets = [8, 0], sizes = [1, 96], strides = [1, 1]} : vector<16x96xf32> to vector<1x96xf32>
    %294 = tpu.concatenate %292, %293 in 0 : vector<1x96xf32>, vector<1x96xf32> -> vector<2x96xf32>
    %295 = vector.extract_strided_slice %283 {offsets = [7, 0], sizes = [1, 96], strides = [1, 1]} : vector<16x96xf32> to vector<1x96xf32>
    %296 = vector.extract_strided_slice %283 {offsets = [15, 0], sizes = [1, 96], strides = [1, 1]} : vector<16x96xf32> to vector<1x96xf32>
    %297 = tpu.concatenate %295, %296 in 0 : vector<1x96xf32>, vector<1x96xf32> -> vector<2x96xf32>
    %298 = vector.extract_strided_slice %291 {offsets = [0, 0], sizes = [2, 96], strides = [1, 1]} : vector<2x192xf32> to vector<2x96xf32>
    %299 = vector.extract_strided_slice %294 {offsets = [0, 0], sizes = [2, 32], strides = [1, 1]} : vector<2x96xf32> to vector<2x32xf32>
    %300 = vector.extract_strided_slice %298 {offsets = [0, 0], sizes = [2, 32], strides = [1, 1]} : vector<2x96xf32> to vector<2x32xf32>
    %301 = arith.addf %299, %300 : vector<2x32xf32>
    %302 = arith.negf %301 : vector<2x32xf32>
    %303 = math.exp %302 : vector<2x32xf32>
    %cst_72 = arith.constant 1.000000e+00 : f32
    %304 = vector.broadcast %cst_72 : f32 to vector<2x32xf32>
    %305 = arith.addf %304, %303 : vector<2x32xf32>
    %306 = arith.divf %304, %305 : vector<2x32xf32>
    %307 = vector.extract_strided_slice %294 {offsets = [0, 32], sizes = [2, 32], strides = [1, 1]} : vector<2x96xf32> to vector<2x32xf32>
    %308 = vector.extract_strided_slice %298 {offsets = [0, 32], sizes = [2, 32], strides = [1, 1]} : vector<2x96xf32> to vector<2x32xf32>
    %309 = arith.addf %307, %308 : vector<2x32xf32>
    %310 = arith.negf %309 : vector<2x32xf32>
    %311 = math.exp %310 : vector<2x32xf32>
    %cst_73 = arith.constant 1.000000e+00 : f32
    %312 = vector.broadcast %cst_73 : f32 to vector<2x32xf32>
    %313 = arith.addf %312, %311 : vector<2x32xf32>
    %314 = arith.divf %312, %313 : vector<2x32xf32>
    %315 = vector.extract_strided_slice %294 {offsets = [0, 64], sizes = [2, 32], strides = [1, 1]} : vector<2x96xf32> to vector<2x32xf32>
    %316 = vector.extract_strided_slice %298 {offsets = [0, 64], sizes = [2, 32], strides = [1, 1]} : vector<2x96xf32> to vector<2x32xf32>
    %317 = arith.mulf %306, %316 : vector<2x32xf32>
    %318 = arith.addf %315, %317 : vector<2x32xf32>
    %319 = math.tanh %318 : vector<2x32xf32>
    %cst_74 = arith.constant 1.000000e+00 : f32
    %320 = vector.broadcast %cst_74 : f32 to vector<2x32xf32>
    %321 = arith.subf %320, %314 : vector<2x32xf32>
    %322 = arith.mulf %321, %319 : vector<2x32xf32>
    %323 = arith.mulf %314, %286 : vector<2x32xf32>
    %324 = arith.addf %322, %323 : vector<2x32xf32>
    %325 = vector.extract_strided_slice %291 {offsets = [0, 96], sizes = [2, 96], strides = [1, 1]} : vector<2x192xf32> to vector<2x96xf32>
    %326 = vector.extract_strided_slice %297 {offsets = [0, 0], sizes = [2, 32], strides = [1, 1]} : vector<2x96xf32> to vector<2x32xf32>
    %327 = vector.extract_strided_slice %325 {offsets = [0, 0], sizes = [2, 32], strides = [1, 1]} : vector<2x96xf32> to vector<2x32xf32>
    %328 = arith.addf %326, %327 : vector<2x32xf32>
    %329 = arith.negf %328 : vector<2x32xf32>
    %330 = math.exp %329 : vector<2x32xf32>
    %cst_75 = arith.constant 1.000000e+00 : f32
    %331 = vector.broadcast %cst_75 : f32 to vector<2x32xf32>
    %332 = arith.addf %331, %330 : vector<2x32xf32>
    %333 = arith.divf %331, %332 : vector<2x32xf32>
    %334 = vector.extract_strided_slice %297 {offsets = [0, 32], sizes = [2, 32], strides = [1, 1]} : vector<2x96xf32> to vector<2x32xf32>
    %335 = vector.extract_strided_slice %325 {offsets = [0, 32], sizes = [2, 32], strides = [1, 1]} : vector<2x96xf32> to vector<2x32xf32>
    %336 = arith.addf %334, %335 : vector<2x32xf32>
    %337 = arith.negf %336 : vector<2x32xf32>
    %338 = math.exp %337 : vector<2x32xf32>
    %cst_76 = arith.constant 1.000000e+00 : f32
    %339 = vector.broadcast %cst_76 : f32 to vector<2x32xf32>
    %340 = arith.addf %339, %338 : vector<2x32xf32>
    %341 = arith.divf %339, %340 : vector<2x32xf32>
    %342 = vector.extract_strided_slice %297 {offsets = [0, 64], sizes = [2, 32], strides = [1, 1]} : vector<2x96xf32> to vector<2x32xf32>
    %343 = vector.extract_strided_slice %325 {offsets = [0, 64], sizes = [2, 32], strides = [1, 1]} : vector<2x96xf32> to vector<2x32xf32>
    %344 = arith.mulf %333, %343 : vector<2x32xf32>
    %345 = arith.addf %342, %344 : vector<2x32xf32>
    %346 = math.tanh %345 : vector<2x32xf32>
    %cst_77 = arith.constant 1.000000e+00 : f32
    %347 = vector.broadcast %cst_77 : f32 to vector<2x32xf32>
    %348 = arith.subf %347, %341 : vector<2x32xf32>
    %349 = arith.mulf %348, %346 : vector<2x32xf32>
    %350 = arith.mulf %341, %287 : vector<2x32xf32>
    %351 = arith.addf %349, %350 : vector<2x32xf32>
    %352 = tpu.concatenate %324, %351 in 1 : vector<2x32xf32>, vector<2x32xf32> -> vector<2x64xf32>
    %cst_78 = arith.constant dense<0.000000e+00> : vector<2x192xf32>
    %353 = tpu.matmul %352, %284, %cst_78 {dimension_numbers = #tpu.dot_dimension_numbers<[1], [0], [0], [1], [0, 0, 1, 1], [], []>} : vector<2x64xf32>, vector<64x192xf32>, vector<2x192xf32> -> vector<2x192xf32>
    %354 = vector.broadcast %285 : vector<1x192xf32> to vector<2x192xf32>
    %355 = arith.addf %353, %354 : vector<2x192xf32>
    %356 = vector.extract_strided_slice %278 {offsets = [1, 0], sizes = [1, 96], strides = [1, 1]} : vector<16x96xf32> to vector<1x96xf32>
    %357 = vector.extract_strided_slice %278 {offsets = [9, 0], sizes = [1, 96], strides = [1, 1]} : vector<16x96xf32> to vector<1x96xf32>
    %358 = tpu.concatenate %356, %357 in 0 : vector<1x96xf32>, vector<1x96xf32> -> vector<2x96xf32>
    %359 = vector.extract_strided_slice %283 {offsets = [6, 0], sizes = [1, 96], strides = [1, 1]} : vector<16x96xf32> to vector<1x96xf32>
    %360 = vector.extract_strided_slice %283 {offsets = [14, 0], sizes = [1, 96], strides = [1, 1]} : vector<16x96xf32> to vector<1x96xf32>
    %361 = tpu.concatenate %359, %360 in 0 : vector<1x96xf32>, vector<1x96xf32> -> vector<2x96xf32>
    %362 = vector.extract_strided_slice %355 {offsets = [0, 0], sizes = [2, 96], strides = [1, 1]} : vector<2x192xf32> to vector<2x96xf32>
    %363 = vector.extract_strided_slice %358 {offsets = [0, 0], sizes = [2, 32], strides = [1, 1]} : vector<2x96xf32> to vector<2x32xf32>
    %364 = vector.extract_strided_slice %362 {offsets = [0, 0], sizes = [2, 32], strides = [1, 1]} : vector<2x96xf32> to vector<2x32xf32>
    %365 = arith.addf %363, %364 : vector<2x32xf32>
    %366 = arith.negf %365 : vector<2x32xf32>
    %367 = math.exp %366 : vector<2x32xf32>
    %cst_79 = arith.constant 1.000000e+00 : f32
    %368 = vector.broadcast %cst_79 : f32 to vector<2x32xf32>
    %369 = arith.addf %368, %367 : vector<2x32xf32>
    %370 = arith.divf %368, %369 : vector<2x32xf32>
    %371 = vector.extract_strided_slice %358 {offsets = [0, 32], sizes = [2, 32], strides = [1, 1]} : vector<2x96xf32> to vector<2x32xf32>
    %372 = vector.extract_strided_slice %362 {offsets = [0, 32], sizes = [2, 32], strides = [1, 1]} : vector<2x96xf32> to vector<2x32xf32>
    %373 = arith.addf %371, %372 : vector<2x32xf32>
    %374 = arith.negf %373 : vector<2x32xf32>
    %375 = math.exp %374 : vector<2x32xf32>
    %cst_80 = arith.constant 1.000000e+00 : f32
    %376 = vector.broadcast %cst_80 : f32 to vector<2x32xf32>
    %377 = arith.addf %376, %375 : vector<2x32xf32>
    %378 = arith.divf %376, %377 : vector<2x32xf32>
    %379 = vector.extract_strided_slice %358 {offsets = [0, 64], sizes = [2, 32], strides = [1, 1]} : vector<2x96xf32> to vector<2x32xf32>
    %380 = vector.extract_strided_slice %362 {offsets = [0, 64], sizes = [2, 32], strides = [1, 1]} : vector<2x96xf32> to vector<2x32xf32>
    %381 = arith.mulf %370, %380 : vector<2x32xf32>
    %382 = arith.addf %379, %381 : vector<2x32xf32>
    %383 = math.tanh %382 : vector<2x32xf32>
    %cst_81 = arith.constant 1.000000e+00 : f32
    %384 = vector.broadcast %cst_81 : f32 to vector<2x32xf32>
    %385 = arith.subf %384, %378 : vector<2x32xf32>
    %386 = arith.mulf %385, %383 : vector<2x32xf32>
    %387 = arith.mulf %378, %324 : vector<2x32xf32>
    %388 = arith.addf %386, %387 : vector<2x32xf32>
    %389 = vector.extract_strided_slice %355 {offsets = [0, 96], sizes = [2, 96], strides = [1, 1]} : vector<2x192xf32> to vector<2x96xf32>
    %390 = vector.extract_strided_slice %361 {offsets = [0, 0], sizes = [2, 32], strides = [1, 1]} : vector<2x96xf32> to vector<2x32xf32>
    %391 = vector.extract_strided_slice %389 {offsets = [0, 0], sizes = [2, 32], strides = [1, 1]} : vector<2x96xf32> to vector<2x32xf32>
    %392 = arith.addf %390, %391 : vector<2x32xf32>
    %393 = arith.negf %392 : vector<2x32xf32>
    %394 = math.exp %393 : vector<2x32xf32>
    %cst_82 = arith.constant 1.000000e+00 : f32
    %395 = vector.broadcast %cst_82 : f32 to vector<2x32xf32>
    %396 = arith.addf %395, %394 : vector<2x32xf32>
    %397 = arith.divf %395, %396 : vector<2x32xf32>
    %398 = vector.extract_strided_slice %361 {offsets = [0, 32], sizes = [2, 32], strides = [1, 1]} : vector<2x96xf32> to vector<2x32xf32>
    %399 = vector.extract_strided_slice %389 {offsets = [0, 32], sizes = [2, 32], strides = [1, 1]} : vector<2x96xf32> to vector<2x32xf32>
    %400 = arith.addf %398, %399 : vector<2x32xf32>
    %401 = arith.negf %400 : vector<2x32xf32>
    %402 = math.exp %401 : vector<2x32xf32>
    %cst_83 = arith.constant 1.000000e+00 : f32
    %403 = vector.broadcast %cst_83 : f32 to vector<2x32xf32>
    %404 = arith.addf %403, %402 : vector<2x32xf32>
    %405 = arith.divf %403, %404 : vector<2x32xf32>
    %406 = vector.extract_strided_slice %361 {offsets = [0, 64], sizes = [2, 32], strides = [1, 1]} : vector<2x96xf32> to vector<2x32xf32>
    %407 = vector.extract_strided_slice %389 {offsets = [0, 64], sizes = [2, 32], strides = [1, 1]} : vector<2x96xf32> to vector<2x32xf32>
    %408 = arith.mulf %397, %407 : vector<2x32xf32>
    %409 = arith.addf %406, %408 : vector<2x32xf32>
    %410 = math.tanh %409 : vector<2x32xf32>
    %cst_84 = arith.constant 1.000000e+00 : f32
    %411 = vector.broadcast %cst_84 : f32 to vector<2x32xf32>
    %412 = arith.subf %411, %405 : vector<2x32xf32>
    %413 = arith.mulf %412, %410 : vector<2x32xf32>
    %414 = arith.mulf %405, %351 : vector<2x32xf32>
    %415 = arith.addf %413, %414 : vector<2x32xf32>
    %416 = tpu.concatenate %388, %415 in 1 : vector<2x32xf32>, vector<2x32xf32> -> vector<2x64xf32>
    %cst_85 = arith.constant dense<0.000000e+00> : vector<2x192xf32>
    %417 = tpu.matmul %416, %284, %cst_85 {dimension_numbers = #tpu.dot_dimension_numbers<[1], [0], [0], [1], [0, 0, 1, 1], [], []>} : vector<2x64xf32>, vector<64x192xf32>, vector<2x192xf32> -> vector<2x192xf32>
    %418 = vector.broadcast %285 : vector<1x192xf32> to vector<2x192xf32>
    %419 = arith.addf %417, %418 : vector<2x192xf32>
    %420 = vector.extract_strided_slice %278 {offsets = [2, 0], sizes = [1, 96], strides = [1, 1]} : vector<16x96xf32> to vector<1x96xf32>
    %421 = vector.extract_strided_slice %278 {offsets = [10, 0], sizes = [1, 96], strides = [1, 1]} : vector<16x96xf32> to vector<1x96xf32>
    %422 = tpu.concatenate %420, %421 in 0 : vector<1x96xf32>, vector<1x96xf32> -> vector<2x96xf32>
    %423 = vector.extract_strided_slice %283 {offsets = [5, 0], sizes = [1, 96], strides = [1, 1]} : vector<16x96xf32> to vector<1x96xf32>
    %424 = vector.extract_strided_slice %283 {offsets = [13, 0], sizes = [1, 96], strides = [1, 1]} : vector<16x96xf32> to vector<1x96xf32>
    %425 = tpu.concatenate %423, %424 in 0 : vector<1x96xf32>, vector<1x96xf32> -> vector<2x96xf32>
    %426 = vector.extract_strided_slice %419 {offsets = [0, 0], sizes = [2, 96], strides = [1, 1]} : vector<2x192xf32> to vector<2x96xf32>
    %427 = vector.extract_strided_slice %422 {offsets = [0, 0], sizes = [2, 32], strides = [1, 1]} : vector<2x96xf32> to vector<2x32xf32>
    %428 = vector.extract_strided_slice %426 {offsets = [0, 0], sizes = [2, 32], strides = [1, 1]} : vector<2x96xf32> to vector<2x32xf32>
    %429 = arith.addf %427, %428 : vector<2x32xf32>
    %430 = arith.negf %429 : vector<2x32xf32>
    %431 = math.exp %430 : vector<2x32xf32>
    %cst_86 = arith.constant 1.000000e+00 : f32
    %432 = vector.broadcast %cst_86 : f32 to vector<2x32xf32>
    %433 = arith.addf %432, %431 : vector<2x32xf32>
    %434 = arith.divf %432, %433 : vector<2x32xf32>
    %435 = vector.extract_strided_slice %422 {offsets = [0, 32], sizes = [2, 32], strides = [1, 1]} : vector<2x96xf32> to vector<2x32xf32>
    %436 = vector.extract_strided_slice %426 {offsets = [0, 32], sizes = [2, 32], strides = [1, 1]} : vector<2x96xf32> to vector<2x32xf32>
    %437 = arith.addf %435, %436 : vector<2x32xf32>
    %438 = arith.negf %437 : vector<2x32xf32>
    %439 = math.exp %438 : vector<2x32xf32>
    %cst_87 = arith.constant 1.000000e+00 : f32
    %440 = vector.broadcast %cst_87 : f32 to vector<2x32xf32>
    %441 = arith.addf %440, %439 : vector<2x32xf32>
    %442 = arith.divf %440, %441 : vector<2x32xf32>
    %443 = vector.extract_strided_slice %422 {offsets = [0, 64], sizes = [2, 32], strides = [1, 1]} : vector<2x96xf32> to vector<2x32xf32>
    %444 = vector.extract_strided_slice %426 {offsets = [0, 64], sizes = [2, 32], strides = [1, 1]} : vector<2x96xf32> to vector<2x32xf32>
    %445 = arith.mulf %434, %444 : vector<2x32xf32>
    %446 = arith.addf %443, %445 : vector<2x32xf32>
    %447 = math.tanh %446 : vector<2x32xf32>
    %cst_88 = arith.constant 1.000000e+00 : f32
    %448 = vector.broadcast %cst_88 : f32 to vector<2x32xf32>
    %449 = arith.subf %448, %442 : vector<2x32xf32>
    %450 = arith.mulf %449, %447 : vector<2x32xf32>
    %451 = arith.mulf %442, %388 : vector<2x32xf32>
    %452 = arith.addf %450, %451 : vector<2x32xf32>
    %453 = vector.extract_strided_slice %419 {offsets = [0, 96], sizes = [2, 96], strides = [1, 1]} : vector<2x192xf32> to vector<2x96xf32>
    %454 = vector.extract_strided_slice %425 {offsets = [0, 0], sizes = [2, 32], strides = [1, 1]} : vector<2x96xf32> to vector<2x32xf32>
    %455 = vector.extract_strided_slice %453 {offsets = [0, 0], sizes = [2, 32], strides = [1, 1]} : vector<2x96xf32> to vector<2x32xf32>
    %456 = arith.addf %454, %455 : vector<2x32xf32>
    %457 = arith.negf %456 : vector<2x32xf32>
    %458 = math.exp %457 : vector<2x32xf32>
    %cst_89 = arith.constant 1.000000e+00 : f32
    %459 = vector.broadcast %cst_89 : f32 to vector<2x32xf32>
    %460 = arith.addf %459, %458 : vector<2x32xf32>
    %461 = arith.divf %459, %460 : vector<2x32xf32>
    %462 = vector.extract_strided_slice %425 {offsets = [0, 32], sizes = [2, 32], strides = [1, 1]} : vector<2x96xf32> to vector<2x32xf32>
    %463 = vector.extract_strided_slice %453 {offsets = [0, 32], sizes = [2, 32], strides = [1, 1]} : vector<2x96xf32> to vector<2x32xf32>
    %464 = arith.addf %462, %463 : vector<2x32xf32>
    %465 = arith.negf %464 : vector<2x32xf32>
    %466 = math.exp %465 : vector<2x32xf32>
    %cst_90 = arith.constant 1.000000e+00 : f32
    %467 = vector.broadcast %cst_90 : f32 to vector<2x32xf32>
    %468 = arith.addf %467, %466 : vector<2x32xf32>
    %469 = arith.divf %467, %468 : vector<2x32xf32>
    %470 = vector.extract_strided_slice %425 {offsets = [0, 64], sizes = [2, 32], strides = [1, 1]} : vector<2x96xf32> to vector<2x32xf32>
    %471 = vector.extract_strided_slice %453 {offsets = [0, 64], sizes = [2, 32], strides = [1, 1]} : vector<2x96xf32> to vector<2x32xf32>
    %472 = arith.mulf %461, %471 : vector<2x32xf32>
    %473 = arith.addf %470, %472 : vector<2x32xf32>
    %474 = math.tanh %473 : vector<2x32xf32>
    %cst_91 = arith.constant 1.000000e+00 : f32
    %475 = vector.broadcast %cst_91 : f32 to vector<2x32xf32>
    %476 = arith.subf %475, %469 : vector<2x32xf32>
    %477 = arith.mulf %476, %474 : vector<2x32xf32>
    %478 = arith.mulf %469, %415 : vector<2x32xf32>
    %479 = arith.addf %477, %478 : vector<2x32xf32>
    %480 = tpu.concatenate %452, %479 in 1 : vector<2x32xf32>, vector<2x32xf32> -> vector<2x64xf32>
    %cst_92 = arith.constant dense<0.000000e+00> : vector<2x192xf32>
    %481 = tpu.matmul %480, %284, %cst_92 {dimension_numbers = #tpu.dot_dimension_numbers<[1], [0], [0], [1], [0, 0, 1, 1], [], []>} : vector<2x64xf32>, vector<64x192xf32>, vector<2x192xf32> -> vector<2x192xf32>
    %482 = vector.broadcast %285 : vector<1x192xf32> to vector<2x192xf32>
    %483 = arith.addf %481, %482 : vector<2x192xf32>
    %484 = vector.extract_strided_slice %278 {offsets = [3, 0], sizes = [1, 96], strides = [1, 1]} : vector<16x96xf32> to vector<1x96xf32>
    %485 = vector.extract_strided_slice %278 {offsets = [11, 0], sizes = [1, 96], strides = [1, 1]} : vector<16x96xf32> to vector<1x96xf32>
    %486 = tpu.concatenate %484, %485 in 0 : vector<1x96xf32>, vector<1x96xf32> -> vector<2x96xf32>
    %487 = vector.extract_strided_slice %283 {offsets = [4, 0], sizes = [1, 96], strides = [1, 1]} : vector<16x96xf32> to vector<1x96xf32>
    %488 = vector.extract_strided_slice %283 {offsets = [12, 0], sizes = [1, 96], strides = [1, 1]} : vector<16x96xf32> to vector<1x96xf32>
    %489 = tpu.concatenate %487, %488 in 0 : vector<1x96xf32>, vector<1x96xf32> -> vector<2x96xf32>
    %490 = vector.extract_strided_slice %483 {offsets = [0, 0], sizes = [2, 96], strides = [1, 1]} : vector<2x192xf32> to vector<2x96xf32>
    %491 = vector.extract_strided_slice %486 {offsets = [0, 0], sizes = [2, 32], strides = [1, 1]} : vector<2x96xf32> to vector<2x32xf32>
    %492 = vector.extract_strided_slice %490 {offsets = [0, 0], sizes = [2, 32], strides = [1, 1]} : vector<2x96xf32> to vector<2x32xf32>
    %493 = arith.addf %491, %492 : vector<2x32xf32>
    %494 = arith.negf %493 : vector<2x32xf32>
    %495 = math.exp %494 : vector<2x32xf32>
    %cst_93 = arith.constant 1.000000e+00 : f32
    %496 = vector.broadcast %cst_93 : f32 to vector<2x32xf32>
    %497 = arith.addf %496, %495 : vector<2x32xf32>
    %498 = arith.divf %496, %497 : vector<2x32xf32>
    %499 = vector.extract_strided_slice %486 {offsets = [0, 32], sizes = [2, 32], strides = [1, 1]} : vector<2x96xf32> to vector<2x32xf32>
    %500 = vector.extract_strided_slice %490 {offsets = [0, 32], sizes = [2, 32], strides = [1, 1]} : vector<2x96xf32> to vector<2x32xf32>
    %501 = arith.addf %499, %500 : vector<2x32xf32>
    %502 = arith.negf %501 : vector<2x32xf32>
    %503 = math.exp %502 : vector<2x32xf32>
    %cst_94 = arith.constant 1.000000e+00 : f32
    %504 = vector.broadcast %cst_94 : f32 to vector<2x32xf32>
    %505 = arith.addf %504, %503 : vector<2x32xf32>
    %506 = arith.divf %504, %505 : vector<2x32xf32>
    %507 = vector.extract_strided_slice %486 {offsets = [0, 64], sizes = [2, 32], strides = [1, 1]} : vector<2x96xf32> to vector<2x32xf32>
    %508 = vector.extract_strided_slice %490 {offsets = [0, 64], sizes = [2, 32], strides = [1, 1]} : vector<2x96xf32> to vector<2x32xf32>
    %509 = arith.mulf %498, %508 : vector<2x32xf32>
    %510 = arith.addf %507, %509 : vector<2x32xf32>
    %511 = math.tanh %510 : vector<2x32xf32>
    %cst_95 = arith.constant 1.000000e+00 : f32
    %512 = vector.broadcast %cst_95 : f32 to vector<2x32xf32>
    %513 = arith.subf %512, %506 : vector<2x32xf32>
    %514 = arith.mulf %513, %511 : vector<2x32xf32>
    %515 = arith.mulf %506, %452 : vector<2x32xf32>
    %516 = arith.addf %514, %515 : vector<2x32xf32>
    %517 = vector.extract_strided_slice %483 {offsets = [0, 96], sizes = [2, 96], strides = [1, 1]} : vector<2x192xf32> to vector<2x96xf32>
    %518 = vector.extract_strided_slice %489 {offsets = [0, 0], sizes = [2, 32], strides = [1, 1]} : vector<2x96xf32> to vector<2x32xf32>
    %519 = vector.extract_strided_slice %517 {offsets = [0, 0], sizes = [2, 32], strides = [1, 1]} : vector<2x96xf32> to vector<2x32xf32>
    %520 = arith.addf %518, %519 : vector<2x32xf32>
    %521 = arith.negf %520 : vector<2x32xf32>
    %522 = math.exp %521 : vector<2x32xf32>
    %cst_96 = arith.constant 1.000000e+00 : f32
    %523 = vector.broadcast %cst_96 : f32 to vector<2x32xf32>
    %524 = arith.addf %523, %522 : vector<2x32xf32>
    %525 = arith.divf %523, %524 : vector<2x32xf32>
    %526 = vector.extract_strided_slice %489 {offsets = [0, 32], sizes = [2, 32], strides = [1, 1]} : vector<2x96xf32> to vector<2x32xf32>
    %527 = vector.extract_strided_slice %517 {offsets = [0, 32], sizes = [2, 32], strides = [1, 1]} : vector<2x96xf32> to vector<2x32xf32>
    %528 = arith.addf %526, %527 : vector<2x32xf32>
    %529 = arith.negf %528 : vector<2x32xf32>
    %530 = math.exp %529 : vector<2x32xf32>
    %cst_97 = arith.constant 1.000000e+00 : f32
    %531 = vector.broadcast %cst_97 : f32 to vector<2x32xf32>
    %532 = arith.addf %531, %530 : vector<2x32xf32>
    %533 = arith.divf %531, %532 : vector<2x32xf32>
    %534 = vector.extract_strided_slice %489 {offsets = [0, 64], sizes = [2, 32], strides = [1, 1]} : vector<2x96xf32> to vector<2x32xf32>
    %535 = vector.extract_strided_slice %517 {offsets = [0, 64], sizes = [2, 32], strides = [1, 1]} : vector<2x96xf32> to vector<2x32xf32>
    %536 = arith.mulf %525, %535 : vector<2x32xf32>
    %537 = arith.addf %534, %536 : vector<2x32xf32>
    %538 = math.tanh %537 : vector<2x32xf32>
    %cst_98 = arith.constant 1.000000e+00 : f32
    %539 = vector.broadcast %cst_98 : f32 to vector<2x32xf32>
    %540 = arith.subf %539, %533 : vector<2x32xf32>
    %541 = arith.mulf %540, %538 : vector<2x32xf32>
    %542 = arith.mulf %533, %479 : vector<2x32xf32>
    %543 = arith.addf %541, %542 : vector<2x32xf32>
    %544 = tpu.concatenate %516, %543 in 1 : vector<2x32xf32>, vector<2x32xf32> -> vector<2x64xf32>
    %cst_99 = arith.constant dense<0.000000e+00> : vector<2x192xf32>
    %545 = tpu.matmul %544, %284, %cst_99 {dimension_numbers = #tpu.dot_dimension_numbers<[1], [0], [0], [1], [0, 0, 1, 1], [], []>} : vector<2x64xf32>, vector<64x192xf32>, vector<2x192xf32> -> vector<2x192xf32>
    %546 = vector.broadcast %285 : vector<1x192xf32> to vector<2x192xf32>
    %547 = arith.addf %545, %546 : vector<2x192xf32>
    %548 = vector.extract_strided_slice %278 {offsets = [4, 0], sizes = [1, 96], strides = [1, 1]} : vector<16x96xf32> to vector<1x96xf32>
    %549 = vector.extract_strided_slice %278 {offsets = [12, 0], sizes = [1, 96], strides = [1, 1]} : vector<16x96xf32> to vector<1x96xf32>
    %550 = tpu.concatenate %548, %549 in 0 : vector<1x96xf32>, vector<1x96xf32> -> vector<2x96xf32>
    %551 = vector.extract_strided_slice %283 {offsets = [3, 0], sizes = [1, 96], strides = [1, 1]} : vector<16x96xf32> to vector<1x96xf32>
    %552 = vector.extract_strided_slice %283 {offsets = [11, 0], sizes = [1, 96], strides = [1, 1]} : vector<16x96xf32> to vector<1x96xf32>
    %553 = tpu.concatenate %551, %552 in 0 : vector<1x96xf32>, vector<1x96xf32> -> vector<2x96xf32>
    %554 = vector.extract_strided_slice %547 {offsets = [0, 0], sizes = [2, 96], strides = [1, 1]} : vector<2x192xf32> to vector<2x96xf32>
    %555 = vector.extract_strided_slice %550 {offsets = [0, 0], sizes = [2, 32], strides = [1, 1]} : vector<2x96xf32> to vector<2x32xf32>
    %556 = vector.extract_strided_slice %554 {offsets = [0, 0], sizes = [2, 32], strides = [1, 1]} : vector<2x96xf32> to vector<2x32xf32>
    %557 = arith.addf %555, %556 : vector<2x32xf32>
    %558 = arith.negf %557 : vector<2x32xf32>
    %559 = math.exp %558 : vector<2x32xf32>
    %cst_100 = arith.constant 1.000000e+00 : f32
    %560 = vector.broadcast %cst_100 : f32 to vector<2x32xf32>
    %561 = arith.addf %560, %559 : vector<2x32xf32>
    %562 = arith.divf %560, %561 : vector<2x32xf32>
    %563 = vector.extract_strided_slice %550 {offsets = [0, 32], sizes = [2, 32], strides = [1, 1]} : vector<2x96xf32> to vector<2x32xf32>
    %564 = vector.extract_strided_slice %554 {offsets = [0, 32], sizes = [2, 32], strides = [1, 1]} : vector<2x96xf32> to vector<2x32xf32>
    %565 = arith.addf %563, %564 : vector<2x32xf32>
    %566 = arith.negf %565 : vector<2x32xf32>
    %567 = math.exp %566 : vector<2x32xf32>
    %cst_101 = arith.constant 1.000000e+00 : f32
    %568 = vector.broadcast %cst_101 : f32 to vector<2x32xf32>
    %569 = arith.addf %568, %567 : vector<2x32xf32>
    %570 = arith.divf %568, %569 : vector<2x32xf32>
    %571 = vector.extract_strided_slice %550 {offsets = [0, 64], sizes = [2, 32], strides = [1, 1]} : vector<2x96xf32> to vector<2x32xf32>
    %572 = vector.extract_strided_slice %554 {offsets = [0, 64], sizes = [2, 32], strides = [1, 1]} : vector<2x96xf32> to vector<2x32xf32>
    %573 = arith.mulf %562, %572 : vector<2x32xf32>
    %574 = arith.addf %571, %573 : vector<2x32xf32>
    %575 = math.tanh %574 : vector<2x32xf32>
    %cst_102 = arith.constant 1.000000e+00 : f32
    %576 = vector.broadcast %cst_102 : f32 to vector<2x32xf32>
    %577 = arith.subf %576, %570 : vector<2x32xf32>
    %578 = arith.mulf %577, %575 : vector<2x32xf32>
    %579 = arith.mulf %570, %516 : vector<2x32xf32>
    %580 = arith.addf %578, %579 : vector<2x32xf32>
    %581 = vector.extract_strided_slice %547 {offsets = [0, 96], sizes = [2, 96], strides = [1, 1]} : vector<2x192xf32> to vector<2x96xf32>
    %582 = vector.extract_strided_slice %553 {offsets = [0, 0], sizes = [2, 32], strides = [1, 1]} : vector<2x96xf32> to vector<2x32xf32>
    %583 = vector.extract_strided_slice %581 {offsets = [0, 0], sizes = [2, 32], strides = [1, 1]} : vector<2x96xf32> to vector<2x32xf32>
    %584 = arith.addf %582, %583 : vector<2x32xf32>
    %585 = arith.negf %584 : vector<2x32xf32>
    %586 = math.exp %585 : vector<2x32xf32>
    %cst_103 = arith.constant 1.000000e+00 : f32
    %587 = vector.broadcast %cst_103 : f32 to vector<2x32xf32>
    %588 = arith.addf %587, %586 : vector<2x32xf32>
    %589 = arith.divf %587, %588 : vector<2x32xf32>
    %590 = vector.extract_strided_slice %553 {offsets = [0, 32], sizes = [2, 32], strides = [1, 1]} : vector<2x96xf32> to vector<2x32xf32>
    %591 = vector.extract_strided_slice %581 {offsets = [0, 32], sizes = [2, 32], strides = [1, 1]} : vector<2x96xf32> to vector<2x32xf32>
    %592 = arith.addf %590, %591 : vector<2x32xf32>
    %593 = arith.negf %592 : vector<2x32xf32>
    %594 = math.exp %593 : vector<2x32xf32>
    %cst_104 = arith.constant 1.000000e+00 : f32
    %595 = vector.broadcast %cst_104 : f32 to vector<2x32xf32>
    %596 = arith.addf %595, %594 : vector<2x32xf32>
    %597 = arith.divf %595, %596 : vector<2x32xf32>
    %598 = vector.extract_strided_slice %553 {offsets = [0, 64], sizes = [2, 32], strides = [1, 1]} : vector<2x96xf32> to vector<2x32xf32>
    %599 = vector.extract_strided_slice %581 {offsets = [0, 64], sizes = [2, 32], strides = [1, 1]} : vector<2x96xf32> to vector<2x32xf32>
    %600 = arith.mulf %589, %599 : vector<2x32xf32>
    %601 = arith.addf %598, %600 : vector<2x32xf32>
    %602 = math.tanh %601 : vector<2x32xf32>
    %cst_105 = arith.constant 1.000000e+00 : f32
    %603 = vector.broadcast %cst_105 : f32 to vector<2x32xf32>
    %604 = arith.subf %603, %597 : vector<2x32xf32>
    %605 = arith.mulf %604, %602 : vector<2x32xf32>
    %606 = arith.mulf %597, %543 : vector<2x32xf32>
    %607 = arith.addf %605, %606 : vector<2x32xf32>
    %608 = tpu.concatenate %580, %607 in 1 : vector<2x32xf32>, vector<2x32xf32> -> vector<2x64xf32>
    %cst_106 = arith.constant dense<0.000000e+00> : vector<2x192xf32>
    %609 = tpu.matmul %608, %284, %cst_106 {dimension_numbers = #tpu.dot_dimension_numbers<[1], [0], [0], [1], [0, 0, 1, 1], [], []>} : vector<2x64xf32>, vector<64x192xf32>, vector<2x192xf32> -> vector<2x192xf32>
    %610 = vector.broadcast %285 : vector<1x192xf32> to vector<2x192xf32>
    %611 = arith.addf %609, %610 : vector<2x192xf32>
    %612 = vector.extract_strided_slice %278 {offsets = [5, 0], sizes = [1, 96], strides = [1, 1]} : vector<16x96xf32> to vector<1x96xf32>
    %613 = vector.extract_strided_slice %278 {offsets = [13, 0], sizes = [1, 96], strides = [1, 1]} : vector<16x96xf32> to vector<1x96xf32>
    %614 = tpu.concatenate %612, %613 in 0 : vector<1x96xf32>, vector<1x96xf32> -> vector<2x96xf32>
    %615 = vector.extract_strided_slice %283 {offsets = [2, 0], sizes = [1, 96], strides = [1, 1]} : vector<16x96xf32> to vector<1x96xf32>
    %616 = vector.extract_strided_slice %283 {offsets = [10, 0], sizes = [1, 96], strides = [1, 1]} : vector<16x96xf32> to vector<1x96xf32>
    %617 = tpu.concatenate %615, %616 in 0 : vector<1x96xf32>, vector<1x96xf32> -> vector<2x96xf32>
    %618 = vector.extract_strided_slice %611 {offsets = [0, 0], sizes = [2, 96], strides = [1, 1]} : vector<2x192xf32> to vector<2x96xf32>
    %619 = vector.extract_strided_slice %614 {offsets = [0, 0], sizes = [2, 32], strides = [1, 1]} : vector<2x96xf32> to vector<2x32xf32>
    %620 = vector.extract_strided_slice %618 {offsets = [0, 0], sizes = [2, 32], strides = [1, 1]} : vector<2x96xf32> to vector<2x32xf32>
    %621 = arith.addf %619, %620 : vector<2x32xf32>
    %622 = arith.negf %621 : vector<2x32xf32>
    %623 = math.exp %622 : vector<2x32xf32>
    %cst_107 = arith.constant 1.000000e+00 : f32
    %624 = vector.broadcast %cst_107 : f32 to vector<2x32xf32>
    %625 = arith.addf %624, %623 : vector<2x32xf32>
    %626 = arith.divf %624, %625 : vector<2x32xf32>
    %627 = vector.extract_strided_slice %614 {offsets = [0, 32], sizes = [2, 32], strides = [1, 1]} : vector<2x96xf32> to vector<2x32xf32>
    %628 = vector.extract_strided_slice %618 {offsets = [0, 32], sizes = [2, 32], strides = [1, 1]} : vector<2x96xf32> to vector<2x32xf32>
    %629 = arith.addf %627, %628 : vector<2x32xf32>
    %630 = arith.negf %629 : vector<2x32xf32>
    %631 = math.exp %630 : vector<2x32xf32>
    %cst_108 = arith.constant 1.000000e+00 : f32
    %632 = vector.broadcast %cst_108 : f32 to vector<2x32xf32>
    %633 = arith.addf %632, %631 : vector<2x32xf32>
    %634 = arith.divf %632, %633 : vector<2x32xf32>
    %635 = vector.extract_strided_slice %614 {offsets = [0, 64], sizes = [2, 32], strides = [1, 1]} : vector<2x96xf32> to vector<2x32xf32>
    %636 = vector.extract_strided_slice %618 {offsets = [0, 64], sizes = [2, 32], strides = [1, 1]} : vector<2x96xf32> to vector<2x32xf32>
    %637 = arith.mulf %626, %636 : vector<2x32xf32>
    %638 = arith.addf %635, %637 : vector<2x32xf32>
    %639 = math.tanh %638 : vector<2x32xf32>
    %cst_109 = arith.constant 1.000000e+00 : f32
    %640 = vector.broadcast %cst_109 : f32 to vector<2x32xf32>
    %641 = arith.subf %640, %634 : vector<2x32xf32>
    %642 = arith.mulf %641, %639 : vector<2x32xf32>
    %643 = arith.mulf %634, %580 : vector<2x32xf32>
    %644 = arith.addf %642, %643 : vector<2x32xf32>
    %645 = vector.extract_strided_slice %611 {offsets = [0, 96], sizes = [2, 96], strides = [1, 1]} : vector<2x192xf32> to vector<2x96xf32>
    %646 = vector.extract_strided_slice %617 {offsets = [0, 0], sizes = [2, 32], strides = [1, 1]} : vector<2x96xf32> to vector<2x32xf32>
    %647 = vector.extract_strided_slice %645 {offsets = [0, 0], sizes = [2, 32], strides = [1, 1]} : vector<2x96xf32> to vector<2x32xf32>
    %648 = arith.addf %646, %647 : vector<2x32xf32>
    %649 = arith.negf %648 : vector<2x32xf32>
    %650 = math.exp %649 : vector<2x32xf32>
    %cst_110 = arith.constant 1.000000e+00 : f32
    %651 = vector.broadcast %cst_110 : f32 to vector<2x32xf32>
    %652 = arith.addf %651, %650 : vector<2x32xf32>
    %653 = arith.divf %651, %652 : vector<2x32xf32>
    %654 = vector.extract_strided_slice %617 {offsets = [0, 32], sizes = [2, 32], strides = [1, 1]} : vector<2x96xf32> to vector<2x32xf32>
    %655 = vector.extract_strided_slice %645 {offsets = [0, 32], sizes = [2, 32], strides = [1, 1]} : vector<2x96xf32> to vector<2x32xf32>
    %656 = arith.addf %654, %655 : vector<2x32xf32>
    %657 = arith.negf %656 : vector<2x32xf32>
    %658 = math.exp %657 : vector<2x32xf32>
    %cst_111 = arith.constant 1.000000e+00 : f32
    %659 = vector.broadcast %cst_111 : f32 to vector<2x32xf32>
    %660 = arith.addf %659, %658 : vector<2x32xf32>
    %661 = arith.divf %659, %660 : vector<2x32xf32>
    %662 = vector.extract_strided_slice %617 {offsets = [0, 64], sizes = [2, 32], strides = [1, 1]} : vector<2x96xf32> to vector<2x32xf32>
    %663 = vector.extract_strided_slice %645 {offsets = [0, 64], sizes = [2, 32], strides = [1, 1]} : vector<2x96xf32> to vector<2x32xf32>
    %664 = arith.mulf %653, %663 : vector<2x32xf32>
    %665 = arith.addf %662, %664 : vector<2x32xf32>
    %666 = math.tanh %665 : vector<2x32xf32>
    %cst_112 = arith.constant 1.000000e+00 : f32
    %667 = vector.broadcast %cst_112 : f32 to vector<2x32xf32>
    %668 = arith.subf %667, %661 : vector<2x32xf32>
    %669 = arith.mulf %668, %666 : vector<2x32xf32>
    %670 = arith.mulf %661, %607 : vector<2x32xf32>
    %671 = arith.addf %669, %670 : vector<2x32xf32>
    %672 = tpu.concatenate %644, %671 in 1 : vector<2x32xf32>, vector<2x32xf32> -> vector<2x64xf32>
    %cst_113 = arith.constant dense<0.000000e+00> : vector<2x192xf32>
    %673 = tpu.matmul %672, %284, %cst_113 {dimension_numbers = #tpu.dot_dimension_numbers<[1], [0], [0], [1], [0, 0, 1, 1], [], []>} : vector<2x64xf32>, vector<64x192xf32>, vector<2x192xf32> -> vector<2x192xf32>
    %674 = vector.broadcast %285 : vector<1x192xf32> to vector<2x192xf32>
    %675 = arith.addf %673, %674 : vector<2x192xf32>
    %676 = vector.extract_strided_slice %278 {offsets = [6, 0], sizes = [1, 96], strides = [1, 1]} : vector<16x96xf32> to vector<1x96xf32>
    %677 = vector.extract_strided_slice %278 {offsets = [14, 0], sizes = [1, 96], strides = [1, 1]} : vector<16x96xf32> to vector<1x96xf32>
    %678 = tpu.concatenate %676, %677 in 0 : vector<1x96xf32>, vector<1x96xf32> -> vector<2x96xf32>
    %679 = vector.extract_strided_slice %283 {offsets = [1, 0], sizes = [1, 96], strides = [1, 1]} : vector<16x96xf32> to vector<1x96xf32>
    %680 = vector.extract_strided_slice %283 {offsets = [9, 0], sizes = [1, 96], strides = [1, 1]} : vector<16x96xf32> to vector<1x96xf32>
    %681 = tpu.concatenate %679, %680 in 0 : vector<1x96xf32>, vector<1x96xf32> -> vector<2x96xf32>
    %682 = vector.extract_strided_slice %675 {offsets = [0, 0], sizes = [2, 96], strides = [1, 1]} : vector<2x192xf32> to vector<2x96xf32>
    %683 = vector.extract_strided_slice %678 {offsets = [0, 0], sizes = [2, 32], strides = [1, 1]} : vector<2x96xf32> to vector<2x32xf32>
    %684 = vector.extract_strided_slice %682 {offsets = [0, 0], sizes = [2, 32], strides = [1, 1]} : vector<2x96xf32> to vector<2x32xf32>
    %685 = arith.addf %683, %684 : vector<2x32xf32>
    %686 = arith.negf %685 : vector<2x32xf32>
    %687 = math.exp %686 : vector<2x32xf32>
    %cst_114 = arith.constant 1.000000e+00 : f32
    %688 = vector.broadcast %cst_114 : f32 to vector<2x32xf32>
    %689 = arith.addf %688, %687 : vector<2x32xf32>
    %690 = arith.divf %688, %689 : vector<2x32xf32>
    %691 = vector.extract_strided_slice %678 {offsets = [0, 32], sizes = [2, 32], strides = [1, 1]} : vector<2x96xf32> to vector<2x32xf32>
    %692 = vector.extract_strided_slice %682 {offsets = [0, 32], sizes = [2, 32], strides = [1, 1]} : vector<2x96xf32> to vector<2x32xf32>
    %693 = arith.addf %691, %692 : vector<2x32xf32>
    %694 = arith.negf %693 : vector<2x32xf32>
    %695 = math.exp %694 : vector<2x32xf32>
    %cst_115 = arith.constant 1.000000e+00 : f32
    %696 = vector.broadcast %cst_115 : f32 to vector<2x32xf32>
    %697 = arith.addf %696, %695 : vector<2x32xf32>
    %698 = arith.divf %696, %697 : vector<2x32xf32>
    %699 = vector.extract_strided_slice %678 {offsets = [0, 64], sizes = [2, 32], strides = [1, 1]} : vector<2x96xf32> to vector<2x32xf32>
    %700 = vector.extract_strided_slice %682 {offsets = [0, 64], sizes = [2, 32], strides = [1, 1]} : vector<2x96xf32> to vector<2x32xf32>
    %701 = arith.mulf %690, %700 : vector<2x32xf32>
    %702 = arith.addf %699, %701 : vector<2x32xf32>
    %703 = math.tanh %702 : vector<2x32xf32>
    %cst_116 = arith.constant 1.000000e+00 : f32
    %704 = vector.broadcast %cst_116 : f32 to vector<2x32xf32>
    %705 = arith.subf %704, %698 : vector<2x32xf32>
    %706 = arith.mulf %705, %703 : vector<2x32xf32>
    %707 = arith.mulf %698, %644 : vector<2x32xf32>
    %708 = arith.addf %706, %707 : vector<2x32xf32>
    %709 = vector.extract_strided_slice %675 {offsets = [0, 96], sizes = [2, 96], strides = [1, 1]} : vector<2x192xf32> to vector<2x96xf32>
    %710 = vector.extract_strided_slice %681 {offsets = [0, 0], sizes = [2, 32], strides = [1, 1]} : vector<2x96xf32> to vector<2x32xf32>
    %711 = vector.extract_strided_slice %709 {offsets = [0, 0], sizes = [2, 32], strides = [1, 1]} : vector<2x96xf32> to vector<2x32xf32>
    %712 = arith.addf %710, %711 : vector<2x32xf32>
    %713 = arith.negf %712 : vector<2x32xf32>
    %714 = math.exp %713 : vector<2x32xf32>
    %cst_117 = arith.constant 1.000000e+00 : f32
    %715 = vector.broadcast %cst_117 : f32 to vector<2x32xf32>
    %716 = arith.addf %715, %714 : vector<2x32xf32>
    %717 = arith.divf %715, %716 : vector<2x32xf32>
    %718 = vector.extract_strided_slice %681 {offsets = [0, 32], sizes = [2, 32], strides = [1, 1]} : vector<2x96xf32> to vector<2x32xf32>
    %719 = vector.extract_strided_slice %709 {offsets = [0, 32], sizes = [2, 32], strides = [1, 1]} : vector<2x96xf32> to vector<2x32xf32>
    %720 = arith.addf %718, %719 : vector<2x32xf32>
    %721 = arith.negf %720 : vector<2x32xf32>
    %722 = math.exp %721 : vector<2x32xf32>
    %cst_118 = arith.constant 1.000000e+00 : f32
    %723 = vector.broadcast %cst_118 : f32 to vector<2x32xf32>
    %724 = arith.addf %723, %722 : vector<2x32xf32>
    %725 = arith.divf %723, %724 : vector<2x32xf32>
    %726 = vector.extract_strided_slice %681 {offsets = [0, 64], sizes = [2, 32], strides = [1, 1]} : vector<2x96xf32> to vector<2x32xf32>
    %727 = vector.extract_strided_slice %709 {offsets = [0, 64], sizes = [2, 32], strides = [1, 1]} : vector<2x96xf32> to vector<2x32xf32>
    %728 = arith.mulf %717, %727 : vector<2x32xf32>
    %729 = arith.addf %726, %728 : vector<2x32xf32>
    %730 = math.tanh %729 : vector<2x32xf32>
    %cst_119 = arith.constant 1.000000e+00 : f32
    %731 = vector.broadcast %cst_119 : f32 to vector<2x32xf32>
    %732 = arith.subf %731, %725 : vector<2x32xf32>
    %733 = arith.mulf %732, %730 : vector<2x32xf32>
    %734 = arith.mulf %725, %671 : vector<2x32xf32>
    %735 = arith.addf %733, %734 : vector<2x32xf32>
    %736 = tpu.concatenate %708, %735 in 1 : vector<2x32xf32>, vector<2x32xf32> -> vector<2x64xf32>
    %cst_120 = arith.constant dense<0.000000e+00> : vector<2x192xf32>
    %737 = tpu.matmul %736, %284, %cst_120 {dimension_numbers = #tpu.dot_dimension_numbers<[1], [0], [0], [1], [0, 0, 1, 1], [], []>} : vector<2x64xf32>, vector<64x192xf32>, vector<2x192xf32> -> vector<2x192xf32>
    %738 = vector.broadcast %285 : vector<1x192xf32> to vector<2x192xf32>
    %739 = arith.addf %737, %738 : vector<2x192xf32>
    %740 = vector.extract_strided_slice %278 {offsets = [7, 0], sizes = [1, 96], strides = [1, 1]} : vector<16x96xf32> to vector<1x96xf32>
    %741 = vector.extract_strided_slice %278 {offsets = [15, 0], sizes = [1, 96], strides = [1, 1]} : vector<16x96xf32> to vector<1x96xf32>
    %742 = tpu.concatenate %740, %741 in 0 : vector<1x96xf32>, vector<1x96xf32> -> vector<2x96xf32>
    %743 = vector.extract_strided_slice %283 {offsets = [0, 0], sizes = [1, 96], strides = [1, 1]} : vector<16x96xf32> to vector<1x96xf32>
    %744 = vector.extract_strided_slice %283 {offsets = [8, 0], sizes = [1, 96], strides = [1, 1]} : vector<16x96xf32> to vector<1x96xf32>
    %745 = tpu.concatenate %743, %744 in 0 : vector<1x96xf32>, vector<1x96xf32> -> vector<2x96xf32>
    %746 = vector.extract_strided_slice %739 {offsets = [0, 0], sizes = [2, 96], strides = [1, 1]} : vector<2x192xf32> to vector<2x96xf32>
    %747 = vector.extract_strided_slice %742 {offsets = [0, 0], sizes = [2, 32], strides = [1, 1]} : vector<2x96xf32> to vector<2x32xf32>
    %748 = vector.extract_strided_slice %746 {offsets = [0, 0], sizes = [2, 32], strides = [1, 1]} : vector<2x96xf32> to vector<2x32xf32>
    %749 = arith.addf %747, %748 : vector<2x32xf32>
    %750 = arith.negf %749 : vector<2x32xf32>
    %751 = math.exp %750 : vector<2x32xf32>
    %cst_121 = arith.constant 1.000000e+00 : f32
    %752 = vector.broadcast %cst_121 : f32 to vector<2x32xf32>
    %753 = arith.addf %752, %751 : vector<2x32xf32>
    %754 = arith.divf %752, %753 : vector<2x32xf32>
    %755 = vector.extract_strided_slice %742 {offsets = [0, 32], sizes = [2, 32], strides = [1, 1]} : vector<2x96xf32> to vector<2x32xf32>
    %756 = vector.extract_strided_slice %746 {offsets = [0, 32], sizes = [2, 32], strides = [1, 1]} : vector<2x96xf32> to vector<2x32xf32>
    %757 = arith.addf %755, %756 : vector<2x32xf32>
    %758 = arith.negf %757 : vector<2x32xf32>
    %759 = math.exp %758 : vector<2x32xf32>
    %cst_122 = arith.constant 1.000000e+00 : f32
    %760 = vector.broadcast %cst_122 : f32 to vector<2x32xf32>
    %761 = arith.addf %760, %759 : vector<2x32xf32>
    %762 = arith.divf %760, %761 : vector<2x32xf32>
    %763 = vector.extract_strided_slice %742 {offsets = [0, 64], sizes = [2, 32], strides = [1, 1]} : vector<2x96xf32> to vector<2x32xf32>
    %764 = vector.extract_strided_slice %746 {offsets = [0, 64], sizes = [2, 32], strides = [1, 1]} : vector<2x96xf32> to vector<2x32xf32>
    %765 = arith.mulf %754, %764 : vector<2x32xf32>
    %766 = arith.addf %763, %765 : vector<2x32xf32>
    %767 = math.tanh %766 : vector<2x32xf32>
    %cst_123 = arith.constant 1.000000e+00 : f32
    %768 = vector.broadcast %cst_123 : f32 to vector<2x32xf32>
    %769 = arith.subf %768, %762 : vector<2x32xf32>
    %770 = arith.mulf %769, %767 : vector<2x32xf32>
    %771 = arith.mulf %762, %708 : vector<2x32xf32>
    %772 = arith.addf %770, %771 : vector<2x32xf32>
    %773 = vector.extract_strided_slice %739 {offsets = [0, 96], sizes = [2, 96], strides = [1, 1]} : vector<2x192xf32> to vector<2x96xf32>
    %774 = vector.extract_strided_slice %745 {offsets = [0, 0], sizes = [2, 32], strides = [1, 1]} : vector<2x96xf32> to vector<2x32xf32>
    %775 = vector.extract_strided_slice %773 {offsets = [0, 0], sizes = [2, 32], strides = [1, 1]} : vector<2x96xf32> to vector<2x32xf32>
    %776 = arith.addf %774, %775 : vector<2x32xf32>
    %777 = arith.negf %776 : vector<2x32xf32>
    %778 = math.exp %777 : vector<2x32xf32>
    %cst_124 = arith.constant 1.000000e+00 : f32
    %779 = vector.broadcast %cst_124 : f32 to vector<2x32xf32>
    %780 = arith.addf %779, %778 : vector<2x32xf32>
    %781 = arith.divf %779, %780 : vector<2x32xf32>
    %782 = vector.extract_strided_slice %745 {offsets = [0, 32], sizes = [2, 32], strides = [1, 1]} : vector<2x96xf32> to vector<2x32xf32>
    %783 = vector.extract_strided_slice %773 {offsets = [0, 32], sizes = [2, 32], strides = [1, 1]} : vector<2x96xf32> to vector<2x32xf32>
    %784 = arith.addf %782, %783 : vector<2x32xf32>
    %785 = arith.negf %784 : vector<2x32xf32>
    %786 = math.exp %785 : vector<2x32xf32>
    %cst_125 = arith.constant 1.000000e+00 : f32
    %787 = vector.broadcast %cst_125 : f32 to vector<2x32xf32>
    %788 = arith.addf %787, %786 : vector<2x32xf32>
    %789 = arith.divf %787, %788 : vector<2x32xf32>
    %790 = vector.extract_strided_slice %745 {offsets = [0, 64], sizes = [2, 32], strides = [1, 1]} : vector<2x96xf32> to vector<2x32xf32>
    %791 = vector.extract_strided_slice %773 {offsets = [0, 64], sizes = [2, 32], strides = [1, 1]} : vector<2x96xf32> to vector<2x32xf32>
    %792 = arith.mulf %781, %791 : vector<2x32xf32>
    %793 = arith.addf %790, %792 : vector<2x32xf32>
    %794 = math.tanh %793 : vector<2x32xf32>
    %cst_126 = arith.constant 1.000000e+00 : f32
    %795 = vector.broadcast %cst_126 : f32 to vector<2x32xf32>
    %796 = arith.subf %795, %789 : vector<2x32xf32>
    %797 = arith.mulf %796, %794 : vector<2x32xf32>
    %798 = arith.mulf %789, %735 : vector<2x32xf32>
    %799 = arith.addf %797, %798 : vector<2x32xf32>
    %800 = vector.extract_strided_slice %324 {offsets = [0, 0], sizes = [1, 32], strides = [1, 1]} : vector<2x32xf32> to vector<1x32xf32>
    %801 = vector.extract_strided_slice %388 {offsets = [0, 0], sizes = [1, 32], strides = [1, 1]} : vector<2x32xf32> to vector<1x32xf32>
    %802 = vector.extract_strided_slice %452 {offsets = [0, 0], sizes = [1, 32], strides = [1, 1]} : vector<2x32xf32> to vector<1x32xf32>
    %803 = vector.extract_strided_slice %516 {offsets = [0, 0], sizes = [1, 32], strides = [1, 1]} : vector<2x32xf32> to vector<1x32xf32>
    %804 = vector.extract_strided_slice %580 {offsets = [0, 0], sizes = [1, 32], strides = [1, 1]} : vector<2x32xf32> to vector<1x32xf32>
    %805 = vector.extract_strided_slice %644 {offsets = [0, 0], sizes = [1, 32], strides = [1, 1]} : vector<2x32xf32> to vector<1x32xf32>
    %806 = vector.extract_strided_slice %708 {offsets = [0, 0], sizes = [1, 32], strides = [1, 1]} : vector<2x32xf32> to vector<1x32xf32>
    %807 = vector.extract_strided_slice %772 {offsets = [0, 0], sizes = [1, 32], strides = [1, 1]} : vector<2x32xf32> to vector<1x32xf32>
    %808 = tpu.concatenate %800, %801, %802, %803, %804, %805, %806, %807 in 0 : vector<1x32xf32>, vector<1x32xf32>, vector<1x32xf32>, vector<1x32xf32>, vector<1x32xf32>, vector<1x32xf32>, vector<1x32xf32>, vector<1x32xf32> -> vector<8x32xf32>
    %809 = vector.extract_strided_slice %799 {offsets = [0, 0], sizes = [1, 32], strides = [1, 1]} : vector<2x32xf32> to vector<1x32xf32>
    %810 = vector.extract_strided_slice %735 {offsets = [0, 0], sizes = [1, 32], strides = [1, 1]} : vector<2x32xf32> to vector<1x32xf32>
    %811 = vector.extract_strided_slice %671 {offsets = [0, 0], sizes = [1, 32], strides = [1, 1]} : vector<2x32xf32> to vector<1x32xf32>
    %812 = vector.extract_strided_slice %607 {offsets = [0, 0], sizes = [1, 32], strides = [1, 1]} : vector<2x32xf32> to vector<1x32xf32>
    %813 = vector.extract_strided_slice %543 {offsets = [0, 0], sizes = [1, 32], strides = [1, 1]} : vector<2x32xf32> to vector<1x32xf32>
    %814 = vector.extract_strided_slice %479 {offsets = [0, 0], sizes = [1, 32], strides = [1, 1]} : vector<2x32xf32> to vector<1x32xf32>
    %815 = vector.extract_strided_slice %415 {offsets = [0, 0], sizes = [1, 32], strides = [1, 1]} : vector<2x32xf32> to vector<1x32xf32>
    %816 = vector.extract_strided_slice %351 {offsets = [0, 0], sizes = [1, 32], strides = [1, 1]} : vector<2x32xf32> to vector<1x32xf32>
    %817 = tpu.concatenate %809, %810, %811, %812, %813, %814, %815, %816 in 0 : vector<1x32xf32>, vector<1x32xf32>, vector<1x32xf32>, vector<1x32xf32>, vector<1x32xf32>, vector<1x32xf32>, vector<1x32xf32>, vector<1x32xf32> -> vector<8x32xf32>
    %818 = tpu.concatenate %808, %817 in 1 : vector<8x32xf32>, vector<8x32xf32> -> vector<8x64xf32>
    %819 = vector.extract_strided_slice %324 {offsets = [1, 0], sizes = [1, 32], strides = [1, 1]} : vector<2x32xf32> to vector<1x32xf32>
    %820 = vector.extract_strided_slice %388 {offsets = [1, 0], sizes = [1, 32], strides = [1, 1]} : vector<2x32xf32> to vector<1x32xf32>
    %821 = vector.extract_strided_slice %452 {offsets = [1, 0], sizes = [1, 32], strides = [1, 1]} : vector<2x32xf32> to vector<1x32xf32>
    %822 = vector.extract_strided_slice %516 {offsets = [1, 0], sizes = [1, 32], strides = [1, 1]} : vector<2x32xf32> to vector<1x32xf32>
    %823 = vector.extract_strided_slice %580 {offsets = [1, 0], sizes = [1, 32], strides = [1, 1]} : vector<2x32xf32> to vector<1x32xf32>
    %824 = vector.extract_strided_slice %644 {offsets = [1, 0], sizes = [1, 32], strides = [1, 1]} : vector<2x32xf32> to vector<1x32xf32>
    %825 = vector.extract_strided_slice %708 {offsets = [1, 0], sizes = [1, 32], strides = [1, 1]} : vector<2x32xf32> to vector<1x32xf32>
    %826 = vector.extract_strided_slice %772 {offsets = [1, 0], sizes = [1, 32], strides = [1, 1]} : vector<2x32xf32> to vector<1x32xf32>
    %827 = tpu.concatenate %819, %820, %821, %822, %823, %824, %825, %826 in 0 : vector<1x32xf32>, vector<1x32xf32>, vector<1x32xf32>, vector<1x32xf32>, vector<1x32xf32>, vector<1x32xf32>, vector<1x32xf32>, vector<1x32xf32> -> vector<8x32xf32>
    %828 = vector.extract_strided_slice %799 {offsets = [1, 0], sizes = [1, 32], strides = [1, 1]} : vector<2x32xf32> to vector<1x32xf32>
    %829 = vector.extract_strided_slice %735 {offsets = [1, 0], sizes = [1, 32], strides = [1, 1]} : vector<2x32xf32> to vector<1x32xf32>
    %830 = vector.extract_strided_slice %671 {offsets = [1, 0], sizes = [1, 32], strides = [1, 1]} : vector<2x32xf32> to vector<1x32xf32>
    %831 = vector.extract_strided_slice %607 {offsets = [1, 0], sizes = [1, 32], strides = [1, 1]} : vector<2x32xf32> to vector<1x32xf32>
    %832 = vector.extract_strided_slice %543 {offsets = [1, 0], sizes = [1, 32], strides = [1, 1]} : vector<2x32xf32> to vector<1x32xf32>
    %833 = vector.extract_strided_slice %479 {offsets = [1, 0], sizes = [1, 32], strides = [1, 1]} : vector<2x32xf32> to vector<1x32xf32>
    %834 = vector.extract_strided_slice %415 {offsets = [1, 0], sizes = [1, 32], strides = [1, 1]} : vector<2x32xf32> to vector<1x32xf32>
    %835 = vector.extract_strided_slice %351 {offsets = [1, 0], sizes = [1, 32], strides = [1, 1]} : vector<2x32xf32> to vector<1x32xf32>
    %836 = tpu.concatenate %828, %829, %830, %831, %832, %833, %834, %835 in 0 : vector<1x32xf32>, vector<1x32xf32>, vector<1x32xf32>, vector<1x32xf32>, vector<1x32xf32>, vector<1x32xf32>, vector<1x32xf32>, vector<1x32xf32> -> vector<8x32xf32>
    %837 = tpu.concatenate %827, %836 in 1 : vector<8x32xf32>, vector<8x32xf32> -> vector<8x64xf32>
    %838 = tpu.concatenate %818, %837 in 0 : vector<8x64xf32>, vector<8x64xf32> -> vector<16x64xf32>
    %c0_127 = arith.constant 0 : index
    %c0_128 = arith.constant 0 : index
    %839 = vector.load %arg20[%c0_127, %c0_128] : memref<64x32xf32, #tpu.memory_space<vmem>>, vector<64x32xf32>
    %cst_129 = arith.constant dense<0.000000e+00> : vector<16x32xf32>
    %840 = tpu.matmul %838, %839, %cst_129 {dimension_numbers = #tpu.dot_dimension_numbers<[1], [0], [0], [1], [0, 0, 1, 1], [], []>} : vector<16x64xf32>, vector<64x32xf32>, vector<16x32xf32> -> vector<16x32xf32>
    %c0_130 = arith.constant 0 : index
    %c0_131 = arith.constant 0 : index
    %841 = vector.load %arg21[%c0_130, %c0_131] : memref<1x32xf32, #tpu.memory_space<vmem>>, vector<1x32xf32>
    %842 = vector.broadcast %841 : vector<1x32xf32> to vector<16x32xf32>
    %843 = arith.addf %840, %842 : vector<16x32xf32>
    %cst_132 = arith.constant 5.000000e-01 : f32
    %844 = vector.broadcast %cst_132 : f32 to vector<16x32xf32>
    %845 = arith.mulf %844, %843 : vector<16x32xf32>
    %cst_133 = arith.constant 4.471500e-02 : f32
    %846 = vector.broadcast %cst_133 : f32 to vector<16x32xf32>
    %847 = arith.mulf %846, %843 : vector<16x32xf32>
    %848 = arith.mulf %847, %843 : vector<16x32xf32>
    %849 = arith.mulf %848, %843 : vector<16x32xf32>
    %850 = arith.addf %843, %849 : vector<16x32xf32>
    %cst_134 = arith.constant 0.797884583 : f32
    %851 = vector.broadcast %cst_134 : f32 to vector<16x32xf32>
    %852 = arith.mulf %851, %850 : vector<16x32xf32>
    %853 = math.tanh %852 : vector<16x32xf32>
    %cst_135 = arith.constant 1.000000e+00 : f32
    %854 = vector.broadcast %cst_135 : f32 to vector<16x32xf32>
    %855 = arith.addf %854, %853 : vector<16x32xf32>
    %856 = arith.mulf %845, %855 : vector<16x32xf32>
    %c0_136 = arith.constant 0 : index
    %c0_137 = arith.constant 0 : index
    %857 = vector.load %arg22[%c0_136, %c0_137] : memref<32x10xf32, #tpu.memory_space<vmem>>, vector<32x10xf32>
    %cst_138 = arith.constant dense<0.000000e+00> : vector<16x10xf32>
    %858 = tpu.matmul %856, %857, %cst_138 {dimension_numbers = #tpu.dot_dimension_numbers<[1], [0], [0], [1], [0, 0, 1, 1], [], []>} : vector<16x32xf32>, vector<32x10xf32>, vector<16x10xf32> -> vector<16x10xf32>
    %c0_139 = arith.constant 0 : index
    %c0_140 = arith.constant 0 : index
    %859 = vector.load %arg23[%c0_139, %c0_140] : memref<1x10xf32, #tpu.memory_space<vmem>>, vector<1x10xf32>
    %860 = vector.broadcast %859 : vector<1x10xf32> to vector<16x10xf32>
    %861 = arith.addf %858, %860 : vector<16x10xf32>
    %862 = vector.extract_strided_slice %861 {offsets = [0, 0], sizes = [8, 10], strides = [1, 1]} : vector<16x10xf32> to vector<8x10xf32>
    %c0_141 = arith.constant 0 : index
    %c0_142 = arith.constant 0 : index
    %c0_143 = arith.constant 0 : index
    %863 = vector.load %arg24[%c0_141, %c0_142, %c0_143] : memref<2x8x10xf32, #tpu.memory_space<vmem>>, vector<1x8x10xf32>
    %864 = vector.shape_cast %863 : vector<1x8x10xf32> to vector<8x10xf32>
    %865 = vector.shape_cast %862 : vector<8x10xf32> to vector<1x8x10xf32>
    tpu.vector_store %arg24[%c0_141, %c0_142, %c0_143], %865 {strides = array<i32>} : memref<2x8x10xf32, #tpu.memory_space<vmem>>, vector<1x8x10xf32>,
    %866 = vector.extract_strided_slice %861 {offsets = [8, 0], sizes = [8, 10], strides = [1, 1]} : vector<16x10xf32> to vector<8x10xf32>
    %c1 = arith.constant 1 : index
    %c0_144 = arith.constant 0 : index
    %c0_145 = arith.constant 0 : index
    %867 = vector.load %arg24[%c1, %c0_144, %c0_145] : memref<2x8x10xf32, #tpu.memory_space<vmem>>, vector<1x8x10xf32>
    %868 = vector.shape_cast %867 : vector<1x8x10xf32> to vector<8x10xf32>
    %869 = vector.shape_cast %866 : vector<8x10xf32> to vector<1x8x10xf32>
    tpu.vector_store %arg24[%c1, %c0_144, %c0_145], %869 {strides = array<i32>} : memref<2x8x10xf32, #tpu.memory_space<vmem>>, vector<1x8x10xf32>,
    return
  }
}

</mosaic_0001>

<llo_original>
// kernel: tile.18
$region0: #{tile.18}
  #allocation0 [shape = 's32[1]{0}', space=sflag, size = 0x4, scoped, tag = 'scoped memory for tile.18']
  %s0 = inlined_call_operand.vmem [shape: f32[16], index: 0, kind: input, shape index: {}]
  %s1 = inlined_call_operand.vmem [shape: f32[16,16], index: 1, kind: output, shape index: {}]
  // Predicated region
  $region2: #{tile.18} parent=0 // pred_check
    _
  $region3: #{tile.18} parent=0 // pred_check_branch
    %3 = sbr.rel (0) target = $region5
  $region4: #{tile.18} parent=0 // pred_region
    _
  $region5: #{tile.18} parent=0 // pred_fallthru
    _
  %v4 = vld [vmem:[%s0] ss:$0 sm:$0xff]
  %5 = vst [vmem:[%s1] sm:$0xff] %v4
  %s6 = scalar_lea.vmem %s1, 8
  %7 = vst [vmem:[%s6] sm:$0xff] %v4

// kernel: tile.19
$region0: #{tile.19}
  %s0 = inlined_call_operand.vmem [shape: f32[16,16], index: 0, kind: input, shape index: {}]
  %s1 = inlined_call_operand.vmem [shape: f32[1,256], index: 1, kind: output, shape index: {}]
  $region1: #{tile.19} parent=0
    #allocation0 [shape = 'u8[8192]{0}', space=vmem, size = 0x2000, scoped, tag = 'scoped mem for output reshape']
    %s2 = smov 3
    %v3 = vld [vmem:[%s0] ss:$8 sm:%s2]
    %vm4 = vcmask 130048
    %5 = vst.msk [vmem:[#allocation0] ss:$8 sm:$0x3] %vm4, %v3
    %s6 = scalar_lea.vmem %s0, 7
    %s7 = smov 3
    %v8 = vld [vmem:[%s6] ss:$8 sm:%s7]
    %9 = vrot.lane.b32.xlu0 %v8, 112
    %v10 = vpop.permute.xlu0 %9
    %vm11 = vcmask 1048448
    %12 = vst.msk [vmem:[#allocation0] ss:$8 sm:$0x3] %vm11, %v10
    %s13 = scalar_lea.vmem %s0, 6
    %s14 = smov 3
    %v15 = vld [vmem:[%s13] ss:$8 sm:%s14]
    %16 = vrot.lane.b32.xlu0 %v15, 96
    %v17 = vpop.permute.xlu0 %16
    %vm18 = vcmask 917248
    %19 = vst.msk [vmem:[#allocation0] ss:$8 sm:$0x3] %vm18, %v17
    %s20 = scalar_lea.vmem %s0, 5
    %s21 = smov 3
    %v22 = vld [vmem:[%s20] ss:$8 sm:%s21]
    %23 = vrot.lane.b32.xlu0 %v22, 80
    %v24 = vpop.permute.xlu0 %23
    %vm25 = vcmask 786048
    %26 = vst.msk [vmem:[#allocation0] ss:$8 sm:$0x3] %vm25, %v24
    %s27 = scalar_lea.vmem %s0, 4
    %s28 = smov 3
    %v29 = vld [vmem:[%s27] ss:$8 sm:%s28]
    %30 = vrot.lane.b32.xlu0 %v29, 64
    %v31 = vpop.permute.xlu0 %30
    %vm32 = vcmask 654848
    %33 = vst.msk [vmem:[#allocation0] ss:$8 sm:$0x3] %vm32, %v31
    %s34 = scalar_lea.vmem %s0, 3
    %s35 = smov 3
    %v36 = vld [vmem:[%s34] ss:$8 sm:%s35]
    %37 = vrot.lane.b32.xlu0 %v36, 48
    %v38 = vpop.permute.xlu0 %37
    %vm39 = vcmask 523648
    %40 = vst.msk [vmem:[#allocation0] ss:$8 sm:$0x3] %vm39, %v38
    %s41 = scalar_lea.vmem %s0, 2
    %s42 = smov 3
    %v43 = vld [vmem:[%s41] ss:$8 sm:%s42]
    %44 = vrot.lane.b32.xlu0 %v43, 32
    %v45 = vpop.permute.xlu0 %44
    %vm46 = vcmask 392448
    %47 = vst.msk [vmem:[#allocation0] ss:$8 sm:$0x3] %vm46, %v45
    %s48 = scalar_lea.vmem %s0, 1
    %s49 = smov 3
    %v50 = vld [vmem:[%s48] ss:$8 sm:%s49]
    %51 = vrot.lane.b32.xlu0 %v50, 16
    %v52 = vpop.permute.xlu0 %51
    %vm53 = vcmask 261248
    %54 = vst.msk [vmem:[#allocation0] ss:$8 sm:$0x3] %vm53, %v52
    %s56 = sshllo.u32 0, 1
    %v58 = vld [vmem:[#allocation0] sm:%s56]
    %s59 = sshllo.u32 0, 1
    %60 = vst [vmem:[%s1] sm:%s59] %v58
    %s61 = scalar_lea.vmem [#allocation0], 8
    %v62 = vld [vmem:[%s61] sm:%s56]
    %s63 = sshllo.u32 0, 1
    %s64 = scalar_lea.vmem %s1, 1
    %65 = vst [vmem:[%s64] sm:%s63] %v62

// kernel: forward.1
$region0: #{forward.1}
  #allocation0 [shape = 'u32[]', space=smem, size = 0x4, offset = 0x4, fixed_abs, tag = 'smem constant byte address 0x4 - core index']
  #allocation1 [shape = 'u32[144,128]{1,0:T(1,128)}', space=vmem, size = 0x12000, scoped, tag = 'internal scratch']
  %s0 = inlined_call_operand.vmem [shape: f32[1,256], index: 0, kind: input, shape index: {}]
  %s1 = inlined_call_operand.vmem [shape: f32[9,256], index: 1, kind: input, shape index: {}]
  %s2 = inlined_call_operand.vmem [shape: f32[256,256], index: 2, kind: input, shape index: {}]
  %s3 = inlined_call_operand.vmem [shape: f32[32,32], index: 3, kind: input, shape index: {}]
  %s4 = inlined_call_operand.vmem [shape: f32[32,9], index: 4, kind: input, shape index: {}]
  %s5 = inlined_call_operand.vmem [shape: f32[32,1], index: 5, kind: input, shape index: {}]
  %s6 = inlined_call_operand.vmem [shape: f32[32,288], index: 6, kind: input, shape index: {}]
  %s7 = inlined_call_operand.vmem [shape: f32[32,1], index: 7, kind: input, shape index: {}]
  %s8 = inlined_call_operand.vmem [shape: f32[1,256], index: 8, kind: input, shape index: {}]
  %s9 = inlined_call_operand.vmem [shape: f32[1,256], index: 9, kind: input, shape index: {}]
  %s10 = inlined_call_operand.vmem [shape: f32[512,32], index: 10, kind: input, shape index: {}]
  %s11 = inlined_call_operand.vmem [shape: f32[1,32], index: 11, kind: input, shape index: {}]
  %s12 = inlined_call_operand.vmem [shape: f32[1,32], index: 12, kind: input, shape index: {}]
  %s13 = inlined_call_operand.vmem [shape: f32[1,32], index: 13, kind: input, shape index: {}]
  %s14 = inlined_call_operand.vmem [shape: f32[32,96], index: 14, kind: input, shape index: {}]
  %s15 = inlined_call_operand.vmem [shape: f32[1,96], index: 15, kind: input, shape index: {}]
  %s16 = inlined_call_operand.vmem [shape: f32[32,96], index: 16, kind: input, shape index: {}]
  %s17 = inlined_call_operand.vmem [shape: f32[1,96], index: 17, kind: input, shape index: {}]
  %s18 = inlined_call_operand.vmem [shape: f32[64,192], index: 18, kind: input, shape index: {}]
  %s19 = inlined_call_operand.vmem [shape: f32[1,192], index: 19, kind: input, shape index: {}]
  %s20 = inlined_call_operand.vmem [shape: f32[64,32], index: 20, kind: input, shape index: {}]
  %s21 = inlined_call_operand.vmem [shape: f32[1,32], index: 21, kind: input, shape index: {}]
  %s22 = inlined_call_operand.vmem [shape: f32[32,10], index: 22, kind: input, shape index: {}]
  %s23 = inlined_call_operand.vmem [shape: f32[1,10], index: 23, kind: input, shape index: {}]
  %s24 = inlined_call_operand.hbm [shape: f32[2,8,10], index: 24, kind: output, shape index: {}]
  %s25 = sld [smem:[#allocation0]]
  $region106: #{forward.1} parent=0
    _
  %s27 = ssub.s32 1, %s25
  %s28 = scalar_select 0, %s27, %s25
  $region1: #{forward.1} parent=0
    #allocation2 [shape = 'u8[8192]{0}', space=vmem, size = 0x2000, scoped, tag = 'output window, operand 0, single buffered']
    #allocation3 [shape = 's32[1]{0}', space=sflag, size = 0x4, scoped, tag = 'scoped memory for forward.1']
    %29 = vsyncpa [#allocation3], 0
    // Predicated region
    $region2: #{forward.1} parent=1 // pred_check
      _
    $region3: #{forward.1} parent=1 // pred_check_branch
      %31 = sbr.rel (0) target = $region5
    $region4: #{forward.1} parent=1 // pred_region
      _
    $region5: #{forward.1} parent=1 // pred_fallthru
      _
    // Predicated region
    $region6: #{forward.1} parent=1 // pred_check
      _
    $region7: #{forward.1} parent=1 // pred_check_branch
      %33 = sbr.rel (0) target = $region9
    $region8: #{forward.1} parent=1 // pred_region
      _
    $region9: #{forward.1} parent=1 // pred_fallthru
      _
    // Predicated region
    $region10: #{forward.1} parent=1 // pred_check
      _
    $region11: #{forward.1} parent=1 // pred_check_branch
      %35 = sbr.rel (0) target = $region13
    $region12: #{forward.1} parent=1 // pred_region
      _
    $region13: #{forward.1} parent=1 // pred_fallthru
      _
    // Predicated region
    $region14: #{forward.1} parent=1 // pred_check
      _
    $region15: #{forward.1} parent=1 // pred_check_branch
      %37 = sbr.rel (0) target = $region17
    $region16: #{forward.1} parent=1 // pred_region
      _
    $region17: #{forward.1} parent=1 // pred_fallthru
      _
    // Predicated region
    $region18: #{forward.1} parent=1 // pred_check
      _
    $region19: #{forward.1} parent=1 // pred_check_branch
      %39 = sbr.rel (0) target = $region21
    $region20: #{forward.1} parent=1 // pred_region
      _
    $region21: #{forward.1} parent=1 // pred_fallthru
      _
    // Predicated region
    $region22: #{forward.1} parent=1 // pred_check
      _
    $region23: #{forward.1} parent=1 // pred_check_branch
      %41 = sbr.rel (0) target = $region25
    $region24: #{forward.1} parent=1 // pred_region
      _
    $region25: #{forward.1} parent=1 // pred_fallthru
      _
    // Predicated region
    $region26: #{forward.1} parent=1 // pred_check
      _
    $region27: #{forward.1} parent=1 // pred_check_branch
      %43 = sbr.rel (0) target = $region29
    $region28: #{forward.1} parent=1 // pred_region
      _
    $region29: #{forward.1} parent=1 // pred_fallthru
      _
    // Predicated region
    $region30: #{forward.1} parent=1 // pred_check
      _
    $region31: #{forward.1} parent=1 // pred_check_branch
      %45 = sbr.rel (0) target = $region33
    $region32: #{forward.1} parent=1 // pred_region
      _
    $region33: #{forward.1} parent=1 // pred_fallthru
      _
    // Predicated region
    $region34: #{forward.1} parent=1 // pred_check
      _
    $region35: #{forward.1} parent=1 // pred_check_branch
      %47 = sbr.rel (0) target = $region37
    $region36: #{forward.1} parent=1 // pred_region
      _
    $region37: #{forward.1} parent=1 // pred_fallthru
      _
    // Predicated region
    $region38: #{forward.1} parent=1 // pred_check
      _
    $region39: #{forward.1} parent=1 // pred_check_branch
      %49 = sbr.rel (0) target = $region41
    $region40: #{forward.1} parent=1 // pred_region
      _
    $region41: #{forward.1} parent=1 // pred_fallthru
      _
    // Predicated region
    $region42: #{forward.1} parent=1 // pred_check
      _
    $region43: #{forward.1} parent=1 // pred_check_branch
      %51 = sbr.rel (0) target = $region45
    $region44: #{forward.1} parent=1 // pred_region
      _
    $region45: #{forward.1} parent=1 // pred_fallthru
      _
    // Predicated region
    $region46: #{forward.1} parent=1 // pred_check
      _
    $region47: #{forward.1} parent=1 // pred_check_branch
      %53 = sbr.rel (0) target = $region49
    $region48: #{forward.1} parent=1 // pred_region
      _
    $region49: #{forward.1} parent=1 // pred_fallthru
      _
    // Predicated region
    $region50: #{forward.1} parent=1 // pred_check
      _
    $region51: #{forward.1} parent=1 // pred_check_branch
      %55 = sbr.rel (0) target = $region53
    $region52: #{forward.1} parent=1 // pred_region
      _
    $region53: #{forward.1} parent=1 // pred_fallthru
      _
    // Predicated region
    $region54: #{forward.1} parent=1 // pred_check
      _
    $region55: #{forward.1} parent=1 // pred_check_branch
      %57 = sbr.rel (0) target = $region57
    $region56: #{forward.1} parent=1 // pred_region
      _
    $region57: #{forward.1} parent=1 // pred_fallthru
      _
    // Predicated region
    $region58: #{forward.1} parent=1 // pred_check
      _
    $region59: #{forward.1} parent=1 // pred_check_branch
      %59 = sbr.rel (0) target = $region61
    $region60: #{forward.1} parent=1 // pred_region
      _
    $region61: #{forward.1} parent=1 // pred_fallthru
      _
    // Predicated region
    $region62: #{forward.1} parent=1 // pred_check
      _
    $region63: #{forward.1} parent=1 // pred_check_branch
      %61 = sbr.rel (0) target = $region65
    $region64: #{forward.1} parent=1 // pred_region
      _
    $region65: #{forward.1} parent=1 // pred_fallthru
      _
    // Predicated region
    $region66: #{forward.1} parent=1 // pred_check
      _
    $region67: #{forward.1} parent=1 // pred_check_branch
      %63 = sbr.rel (0) target = $region69
    $region68: #{forward.1} parent=1 // pred_region
      _
    $region69: #{forward.1} parent=1 // pred_fallthru
      _
    // Predicated region
    $region70: #{forward.1} parent=1 // pred_check
      _
    $region71: #{forward.1} parent=1 // pred_check_branch
      %65 = sbr.rel (0) target = $region73
    $region72: #{forward.1} parent=1 // pred_region
      _
    $region73: #{forward.1} parent=1 // pred_fallthru
      _
    // Predicated region
    $region74: #{forward.1} parent=1 // pred_check
      _
    $region75: #{forward.1} parent=1 // pred_check_branch
      %67 = sbr.rel (0) target = $region77
    $region76: #{forward.1} parent=1 // pred_region
      _
    $region77: #{forward.1} parent=1 // pred_fallthru
      _
    // Predicated region
    $region78: #{forward.1} parent=1 // pred_check
      _
    $region79: #{forward.1} parent=1 // pred_check_branch
      %69 = sbr.rel (0) target = $region81
    $region80: #{forward.1} parent=1 // pred_region
      _
    $region81: #{forward.1} parent=1 // pred_fallthru
      _
    // Predicated region
    $region82: #{forward.1} parent=1 // pred_check
      _
    $region83: #{forward.1} parent=1 // pred_check_branch
      %71 = sbr.rel (0) target = $region85
    $region84: #{forward.1} parent=1 // pred_region
      _
    $region85: #{forward.1} parent=1 // pred_fallthru
      _
    // Predicated region
    $region86: #{forward.1} parent=1 // pred_check
      _
    $region87: #{forward.1} parent=1 // pred_check_branch
      %73 = sbr.rel (0) target = $region89
    $region88: #{forward.1} parent=1 // pred_region
      _
    $region89: #{forward.1} parent=1 // pred_fallthru
      _
    // Predicated region
    $region90: #{forward.1} parent=1 // pred_check
      _
    $region91: #{forward.1} parent=1 // pred_check_branch
      %75 = sbr.rel (0) target = $region93
    $region92: #{forward.1} parent=1 // pred_region
      _
    $region93: #{forward.1} parent=1 // pred_fallthru
      _
    // Predicated region
    $region94: #{forward.1} parent=1 // pred_check
      _
    $region95: #{forward.1} parent=1 // pred_check_branch
      %77 = sbr.rel (0) target = $region97
    $region96: #{forward.1} parent=1 // pred_region
      _
    $region97: #{forward.1} parent=1 // pred_fallthru
      _
    %v78 = vld [vmem:[%s1] sm:$0xff]
    %v79 = vld [vmem:[%s1 + $0x8] sm:$0xff]
    %v80 = vld [vmem:[%s1 + $0x10] sm:$0x1]
    %v81 = vld [vmem:[%s1 + $0x18] sm:$0x1]
    %v82 = vld [vmem:[%s2] sm:$0xff]
    %v83 = vld [vmem:[%s2 + $0x8] sm:$0xff]
    %v84 = vld [vmem:[%s2 + $0x10] sm:$0xff]
    %v85 = vld [vmem:[%s2 + $0x18] sm:$0xff]
    %v86 = vld [vmem:[%s2 + $0x20] sm:$0xff]
    %v87 = vld [vmem:[%s2 + $0x28] sm:$0xff]
    %v88 = vld [vmem:[%s2 + $0x30] sm:$0xff]
    %v89 = vld [vmem:[%s2 + $0x38] sm:$0xff]
    %v90 = vld [vmem:[%s2 + $0x40] sm:$0xff]
    %v91 = vld [vmem:[%s2 + $0x48] sm:$0xff]
    %v92 = vld [vmem:[%s2 + $0x50] sm:$0xff]
    %v93 = vld [vmem:[%s2 + $0x58] sm:$0xff]
    %v94 = vld [vmem:[%s2 + $0x60] sm:$0xff]
    %v95 = vld [vmem:[%s2 + $0x68] sm:$0xff]
    %v96 = vld [vmem:[%s2 + $0x70] sm:$0xff]
    %v97 = vld [vmem:[%s2 + $0x78] sm:$0xff]
    %v98 = vld [vmem:[%s2 + $0x80] sm:$0xff]
    %v99 = vld [vmem:[%s2 + $0x88] sm:$0xff]
    %v100 = vld [vmem:[%s2 + $0x90] sm:$0xff]
    %v101 = vld [vmem:[%s2 + $0x98] sm:$0xff]
    %v102 = vld [vmem:[%s2 + $0xa0] sm:$0xff]
    %v103 = vld [vmem:[%s2 + $0xa8] sm:$0xff]
    %v104 = vld [vmem:[%s2 + $0xb0] sm:$0xff]
    %v105 = vld [vmem:[%s2 + $0xb8] sm:$0xff]
    %v106 = vld [vmem:[%s2 + $0xc0] sm:$0xff]
    %v107 = vld [vmem:[%s2 + $0xc8] sm:$0xff]
    %v108 = vld [vmem:[%s2 + $0xd0] sm:$0xff]
    %v109 = vld [vmem:[%s2 + $0xd8] sm:$0xff]
    %v110 = vld [vmem:[%s2 + $0xe0] sm:$0xff]
    %v111 = vld [vmem:[%s2 + $0xe8] sm:$0xff]
    %v112 = vld [vmem:[%s2 + $0xf0] sm:$0xff]
    %v113 = vld [vmem:[%s2 + $0xf8] sm:$0xff]
    %v114 = vld [vmem:[%s2 + $0x100] sm:$0xff]
    %v115 = vld [vmem:[%s2 + $0x108] sm:$0xff]
    %v116 = vld [vmem:[%s2 + $0x110] sm:$0xff]
    %v117 = vld [vmem:[%s2 + $0x118] sm:$0xff]
    %v118 = vld [vmem:[%s2 + $0x120] sm:$0xff]
    %v119 = vld [vmem:[%s2 + $0x128] sm:$0xff]
    %v120 = vld [vmem:[%s2 + $0x130] sm:$0xff]
    %v121 = vld [vmem:[%s2 + $0x138] sm:$0xff]
    %v122 = vld [vmem:[%s2 + $0x140] sm:$0xff]
    %v123 = vld [vmem:[%s2 + $0x148] sm:$0xff]
    %v124 = vld [vmem:[%s2 + $0x150] sm:$0xff]
    %v125 = vld [vmem:[%s2 + $0x158] sm:$0xff]
    %v126 = vld [vmem:[%s2 + $0x160] sm:$0xff]
    %v127 = vld [vmem:[%s2 + $0x168] sm:$0xff]
    %v128 = vld [vmem:[%s2 + $0x170] sm:$0xff]
    %v129 = vld [vmem:[%s2 + $0x178] sm:$0xff]
    %v130 = vld [vmem:[%s2 + $0x180] sm:$0xff]
    %v131 = vld [vmem:[%s2 + $0x188] sm:$0xff]
    %v132 = vld [vmem:[%s2 + $0x190] sm:$0xff]
    %v133 = vld [vmem:[%s2 + $0x198] sm:$0xff]
    %v134 = vld [vmem:[%s2 + $0x1a0] sm:$0xff]
    %v135 = vld [vmem:[%s2 + $0x1a8] sm:$0xff]
    %v136 = vld [vmem:[%s2 + $0x1b0] sm:$0xff]
    %v137 = vld [vmem:[%s2 + $0x1b8] sm:$0xff]
    %v138 = vld [vmem:[%s2 + $0x1c0] sm:$0xff]
    %v139 = vld [vmem:[%s2 + $0x1c8] sm:$0xff]
    %v140 = vld [vmem:[%s2 + $0x1d0] sm:$0xff]
    %v141 = vld [vmem:[%s2 + $0x1d8] sm:$0xff]
    %v142 = vld [vmem:[%s2 + $0x1e0] sm:$0xff]
    %v143 = vld [vmem:[%s2 + $0x1e8] sm:$0xff]
    %v144 = vld [vmem:[%s2 + $0x1f0] sm:$0xff]
    %v145 = vld [vmem:[%s2 + $0x1f8] sm:$0xff]
    %v146 = vld [vmem:[%s8] sm:$0x3]
    %v147 = vld [vmem:[%s9] sm:$0x3]
    %v148 = vld [vmem:[%s0] sm:$0x3]
    %v149 = vld [vmem:[%s4] sm:$0xff]
    %v150 = vld [vmem:[%s4 + $0x8] sm:$0xff]
    %v151 = vld [vmem:[%s4 + $0x10] sm:$0xff]
    %v152 = vld [vmem:[%s4 + $0x18] sm:$0xff]
    %v153 = vld [vmem:[%s5] sm:$0xff]
    %v154 = vld [vmem:[%s5 + $0x8] sm:$0xff]
    %v155 = vld [vmem:[%s5 + $0x10] sm:$0xff]
    %v156 = vld [vmem:[%s5 + $0x18] sm:$0xff]
    %v158 = vlaneseq
    %v159 = vshrl.u32 %v158, 7
    %v160 = vsub.s32 1, %v159
    %v161 = vrot.slane %v148, %v160
    %162 = vrot.lane.b32.xlu0 %v161, 17
    %v163 = vpop.permute.xlu0 %162
    %v165 = vlaneseq
    %v166 = vshrl.u32 %v165, 7
    %v167 = vsub.s32 0, %v166
    %v168 = vrot.slane %v148, %v167
    %169 = vrot.lane.b32.xlu0 %v168, 17
    %v170 = vpop.permute.xlu0 %169
    %vm171 = vcmask 138240
    %v172 = vsel %vm171, %v170, %v163
    %v175 = vsel %vm171, %v163, %v170
    %v176 = vmul.f32 %v175, %v78
    %v177 = vmul.f32 %v172, %v79
    %178 = vrot.lane.b32.xlu0 %v161, 16
    %v179 = vpop.permute.xlu0 %178
    %181 = vrot.lane.b32.xlu0 %v168, 16
    %v182 = vpop.permute.xlu0 %181
    %vm183 = vcmask 130048
    %v184 = vsel %vm183, %v182, %v179
    %v187 = vsel %vm183, %v179, %v182
    %v190 = vrot.slane %v78, 1
    %v191 = vrot.slane %v79, 1
    %v194 = vmul.f32 %v187, %v190
    %v195 = vmul.f32 %v184, %v191
    %196 = vrot.lane.b32.xlu0 %v161, 15
    %v197 = vpop.permute.xlu0 %196
    %199 = vrot.lane.b32.xlu0 %v168, 15
    %v200 = vpop.permute.xlu0 %199
    %vm201 = vcmask 121856
    %v202 = vsel %vm201, %v200, %v197
    %v205 = vsel %vm201, %v197, %v200
    %v206 = vrot.slane %v78, 2
    %v207 = vrot.slane %v79, 2
    %v210 = vmul.f32 %v205, %v206
    %v211 = vmul.f32 %v202, %v207
    %212 = vrot.lane.b32.xlu0 %v161, 1
    %v213 = vpop.permute.xlu0 %212
    %215 = vrot.lane.b32.xlu0 %v168, 1
    %v216 = vpop.permute.xlu0 %215
    %vm217 = vcmask 7168
    %v218 = vsel %vm217, %v216, %v213
    %v221 = vsel %vm217, %v213, %v216
    %v222 = vrot.slane %v78, 3
    %v223 = vrot.slane %v79, 3
    %v226 = vmul.f32 %v221, %v222
    %v227 = vmul.f32 %v218, %v223
    %v228 = vcombine.high %v78, %v79
    %v230 = vunpack.c.l.s4 1966171168
    %v231 = vunpack.c.0.s8 %v230
    %v232 = vlaneseq
    %v233 = vshrl.u32 %v232, 7
    %v234 = vsub.s32 %v231, %v233
    %v235 = vrot.slane %v228, %v234
    %v237 = vunpack.c.l.s4 1966171168
    %v238 = vunpack.c.0.s8 %v237
    %v239 = vlaneseq
    %v240 = vshrl.u32 %v239, 7
    %v241 = vsub.s32 %v238, %v240
    %v242 = vrot.slane %v235, %v241
    %v244 = vmul.f32 %v148, %v242
    %245 = vrot.lane.b32.xlu0 %v168, 127
    %v246 = vpop.permute.xlu0 %245
    %247 = vrot.lane.b32.xlu0 %v161, 127
    %v248 = vpop.permute.xlu0 %247
    %vm249 = vcmask 1039360
    %v250 = vsel %vm249, %v246, %v248
    %v254 = vsel %vm249, %v248, %v246
    %v255 = vrot.slane %v78, 5
    %v256 = vrot.slane %v79, 5
    %v259 = vmul.f32 %v250, %v255
    %v260 = vmul.f32 %v254, %v256
    %261 = vrot.lane.b32.xlu0 %v168, 113
    %v262 = vpop.permute.xlu0 %261
    %263 = vrot.lane.b32.xlu0 %v161, 113
    %v264 = vpop.permute.xlu0 %263
    %vm265 = vcmask 924672
    %v266 = vsel %vm265, %v262, %v264
    %v270 = vsel %vm265, %v264, %v262
    %v271 = vrot.slane %v78, 6
    %v272 = vrot.slane %v79, 6
    %v275 = vmul.f32 %v266, %v271
    %v276 = vmul.f32 %v270, %v272
    %277 = vrot.lane.b32.xlu0 %v168, 112
    %v278 = vpop.permute.xlu0 %277
    %279 = vrot.lane.b32.xlu0 %v161, 112
    %v280 = vpop.permute.xlu0 %279
    %vm281 = vcmask 916480
    %v282 = vsel %vm281, %v278, %v280
    %v286 = vsel %vm281, %v280, %v278
    %v287 = vrot.slane %v78, 7
    %v288 = vrot.slane %v79, 7
    %v291 = vmul.f32 %v282, %v287
    %v292 = vmul.f32 %v286, %v288
    %293 = vrot.lane.b32.xlu0 %v168, 111
    %v294 = vpop.permute.xlu0 %293
    %295 = vrot.lane.b32.xlu0 %v161, 111
    %v296 = vpop.permute.xlu0 %295
    %vm297 = vcmask 908288
    %v298 = vsel %vm297, %v294, %v296
    %v302 = vsel %vm297, %v296, %v294
    %v303 = vmul.f32 %v298, %v80
    %v304 = vmul.f32 %v302, %v81
    %v307 = vrot.slane %v194, 7
    %v308 = vrot.slane %v195, 7
    %v313 = vrot.slane %v210, 6
    %v314 = vrot.slane %v211, 6
    %v319 = vrot.slane %v226, 5
    %v320 = vrot.slane %v227, 5
    %v324 = vlaneseq
    %v325 = vshrl.u32 %v324, 7
    %v326 = vsub.s32 0, %v325
    %v327 = vrot.slane %v244, %v326
    %v328 = vlaneseq
    %v329 = vshrl.u32 %v328, 7
    %v330 = vsub.s32 1, %v329
    %v331 = vrot.slane %v244, %v330
    %v336 = vrot.slane %v259, 3
    %v337 = vrot.slane %v260, 3
    %v342 = vrot.slane %v275, 2
    %v343 = vrot.slane %v276, 2
    %v348 = vrot.slane %v291, 1
    %v349 = vrot.slane %v292, 1
    %vm352 = vcmask 1040384
    %v353 = vsel %vm352, %v176, %v307
    %v354 = vsel %vm352, %v177, %v308
    %vm355 = vcmask 1041408
    %v356 = vsel %vm355, %v353, %v313
    %v357 = vsel %vm355, %v354, %v314
    %vm358 = vcmask 1042432
    %v359 = vsel %vm358, %v356, %v319
    %v360 = vsel %vm358, %v357, %v320
    %vm361 = vcmask 1043456
    %v362 = vsel %vm361, %v359, %v327
    %v363 = vsel %vm361, %v360, %v331
    %vm364 = vcmask 1044480
    %v365 = vsel %vm364, %v362, %v336
    %v366 = vsel %vm364, %v363, %v337
    %vm367 = vcmask 1045504
    %v368 = vsel %vm367, %v365, %v342
    %v369 = vsel %vm367, %v366, %v343
    %vm370 = vcmask 1046528
    %v371 = vsel %vm370, %v368, %v348
    %v372 = vsel %vm370, %v369, %v349
    %374 = vset.pattern.permute.xlu0 0
    %375 = vperm.xlu0 %374, %v153
    %v376 = vpop.permute.xlu0 %375
    %379 = vset.pattern.permute.xlu0 0
    %380 = vperm.xlu0 %379, %v154
    %v381 = vpop.permute.xlu0 %380
    %384 = vset.pattern.permute.xlu0 0
    %385 = vperm.xlu0 %384, %v155
    %v386 = vpop.permute.xlu0 %385
    %389 = vset.pattern.permute.xlu0 0
    %390 = vperm.xlu0 %389, %v156
    %v391 = vpop.permute.xlu0 %390
    %vm393 = vcmask 72704
    %v395 = vsel %vm393, %v149, 0
    %v398 = vsel %vm393, %v150, 0
    %v401 = vsel %vm393, %v151, 0
    %v404 = vsel %vm393, %v152, 0
    %v407 = vsel %vm352, %v303, 0
    %v410 = vsel %vm352, %v304, 0
    %412 = vmatprep.subr.mxu0 %v372
    %413 = vmatpush1.msra.mxu0 %v371
    %414 = vmatprep.subr.mxu0 %v410
    %415 = vmatpush1.msra.mxu0 %v407
    %416 = vmatprep.subr.mxu0 0.0
    %417 = vmatpush1.msra.mxu0 0.0
    %418 = vmatprep.subr.mxu0 0.0
    %419 = vmatpush1.msra.mxu0 0.0
    %420 = vmatprep.subr.mxu0 0.0
    %421 = vmatpush1.msra.mxu0 0.0
    %422 = vmatprep.subr.mxu0 0.0
    %423 = vmatpush1.msra.mxu0 0.0
    %424 = vmatprep.subr.mxu0 0.0
    %425 = vmatpush1.msra.mxu0 0.0
    %426 = vmatprep.subr.mxu0 0.0
    %427 = vmatpush1.msra.mxu0 0.0
    %428 = vmatprep.subr.mxu0 0.0
    %429 = vmatpush1.msra.mxu0 0.0
    %430 = vmatprep.subr.mxu0 0.0
    %431 = vmatpush1.msra.mxu0 0.0
    %432 = vmatprep.subr.mxu0 0.0
    %433 = vmatpush1.msra.mxu0 0.0
    %434 = vmatprep.subr.mxu0 0.0
    %435 = vmatpush1.msra.mxu0 0.0
    %436 = vmatprep.subr.mxu0 0.0
    %437 = vmatpush1.msra.mxu0 0.0
    %438 = vmatprep.subr.mxu0 0.0
    %439 = vmatpush1.msra.mxu0 0.0
    %440 = vmatprep.subr.mxu0 0.0
    %441 = vmatpush1.msra.mxu0 0.0
    %442 = vmatprep.subr.mxu0 0.0
    %443 = vmatpush1.msra.mxu0 0.0
    %444 = vmatprep.subr.mxu0 0.0
    %445 = vmatpush1.msra.mxu0 0.0
    %446 = vmatprep.subr.mxu0 0.0
    %447 = vmatpush1.msra.mxu0 0.0
    %448 = vmatprep.subr.mxu0 0.0
    %449 = vmatpush1.msra.mxu0 0.0
    %450 = vmatprep.subr.mxu0 0.0
    %451 = vmatpush1.msra.mxu0 0.0
    %452 = vmatprep.subr.mxu0 0.0
    %453 = vmatpush1.msra.mxu0 0.0
    %454 = vmatprep.subr.mxu0 0.0
    %455 = vmatpush1.msra.mxu0 0.0
    %456 = vmatprep.subr.mxu0 0.0
    %457 = vmatpush1.msra.mxu0 0.0
    %458 = vmatprep.subr.mxu0 0.0
    %459 = vmatpush1.msra.mxu0 0.0
    %460 = vmatprep.subr.mxu0 0.0
    %461 = vmatpush1.msra.mxu0 0.0
    %462 = vmatprep.subr.mxu0 0.0
    %463 = vmatpush1.msra.mxu0 0.0
    %464 = vmatprep.subr.mxu0 0.0
    %465 = vmatpush1.msra.mxu0 0.0
    %466 = vmatprep.subr.mxu0 0.0
    %467 = vmatpush1.msra.mxu0 0.0
    %468 = vmatprep.subr.mxu0 0.0
    %469 = vmatpush1.msra.mxu0 0.0
    %470 = vmatprep.subr.mxu0 0.0
    %471 = vmatpush1.msra.mxu0 0.0
    %472 = vmatprep.subr.mxu0 0.0
    %473 = vmatpush1.msra.mxu0 0.0
    %474 = vmatprep.subr.mxu0 0.0
    %475 = vmatpush1.msra.mxu0 0.0
    %476 = vmatprep.mubr.f32.mxu0 0.0
    %477 = vmatmul.mubr.f32.gmra.mrb[0].mxu0 %v395
    %v478 = vpop.f32.mrb[0].mxu0
    %v479 = vadd.f32 %v376, %v478
    %v480 = vpop.f32.mrb[0].mxu0
    %v481 = vadd.f32 %v376, %v480
    %482 = vmatprep.mubr.f32.mxu0 0.0
    %483 = vmatmul.mubr.f32.gmra.mrb[0].mxu0 %v398
    %v484 = vpop.f32.mrb[0].mxu0
    %v485 = vadd.f32 %v381, %v484
    %v486 = vpop.f32.mrb[0].mxu0
    %v487 = vadd.f32 %v381, %v486
    %488 = vmatprep.mubr.f32.mxu0 0.0
    %489 = vmatmul.mubr.f32.gmra.mrb[0].mxu0 %v401
    %v490 = vpop.f32.mrb[0].mxu0
    %v491 = vadd.f32 %v386, %v490
    %v492 = vpop.f32.mrb[0].mxu0
    %v493 = vadd.f32 %v386, %v492
    %494 = vmatprep.mubr.f32.mxu0 0.0
    %495 = vmatmul.mubr.f32.gmra.mrb[0].mxu0 %v404
    %v496 = vpop.f32.mrb[0].mxu0
    %v497 = vadd.f32 %v391, %v496
    %v498 = vpop.f32.mrb[0].mxu0
    %v499 = vadd.f32 %v391, %v498
    %500 = vdwg.mxu0
    %v501 = vld [vmem:[%s6] sm:$0xff]
    %v502 = vld [vmem:[%s6 + $0x8] sm:$0xff]
    %v503 = vld [vmem:[%s6 + $0x10] sm:$0xff]
    %v504 = vld [vmem:[%s6 + $0x18] sm:$0xff]
    %v505 = vld [vmem:[%s6 + $0x20] sm:$0xff]
    %v506 = vld [vmem:[%s6 + $0x28] sm:$0xff]
    %v507 = vld [vmem:[%s6 + $0x30] sm:$0xff]
    %v508 = vld [vmem:[%s6 + $0x38] sm:$0xff]
    %v509 = vld [vmem:[%s6 + $0x40] sm:$0xff]
    %v510 = vld [vmem:[%s6 + $0x48] sm:$0xff]
    %v511 = vld [vmem:[%s6 + $0x50] sm:$0xff]
    %v512 = vld [vmem:[%s6 + $0x58] sm:$0xff]
    %v513 = vld [vmem:[%s7] sm:$0xff]
    %v514 = vld [vmem:[%s7 + $0x8] sm:$0xff]
    %v515 = vld [vmem:[%s7 + $0x10] sm:$0xff]
    %v516 = vld [vmem:[%s7 + $0x18] sm:$0xff]
    %517 = vmatprep.subr.mxu0 %v83
    %518 = vmatpush1.msra.mxu0 %v82
    %519 = vmatprep.subr.mxu0 %v85
    %520 = vmatpush1.msra.mxu0 %v84
    %521 = vmatprep.subr.mxu0 %v87
    %522 = vmatpush1.msra.mxu0 %v86
    %523 = vmatprep.subr.mxu0 %v89
    %524 = vmatpush1.msra.mxu0 %v88
    %525 = vmatprep.subr.mxu0 %v91
    %526 = vmatpush1.msra.mxu0 %v90
    %527 = vmatprep.subr.mxu0 %v93
    %528 = vmatpush1.msra.mxu0 %v92
    %529 = vmatprep.subr.mxu0 %v95
    %530 = vmatpush1.msra.mxu0 %v94
    %531 = vmatprep.subr.mxu0 %v97
    %532 = vmatpush1.msra.mxu0 %v96
    %533 = vmatprep.subr.mxu0 %v99
    %534 = vmatpush1.msra.mxu0 %v98
    %535 = vmatprep.subr.mxu0 %v101
    %536 = vmatpush1.msra.mxu0 %v100
    %537 = vmatprep.subr.mxu0 %v103
    %538 = vmatpush1.msra.mxu0 %v102
    %539 = vmatprep.subr.mxu0 %v105
    %540 = vmatpush1.msra.mxu0 %v104
    %541 = vmatprep.subr.mxu0 %v107
    %542 = vmatpush1.msra.mxu0 %v106
    %543 = vmatprep.subr.mxu0 %v109
    %544 = vmatpush1.msra.mxu0 %v108
    %545 = vmatprep.subr.mxu0 %v111
    %546 = vmatpush1.msra.mxu0 %v110
    %547 = vmatprep.subr.mxu0 %v113
    %548 = vmatpush1.msra.mxu0 %v112
    %549 = vmatprep.subr.mxu0 %v115
    %550 = vmatpush1.msra.mxu0 %v114
    %551 = vmatprep.subr.mxu0 %v117
    %552 = vmatpush1.msra.mxu0 %v116
    %553 = vmatprep.subr.mxu0 %v119
    %554 = vmatpush1.msra.mxu0 %v118
    %555 = vmatprep.subr.mxu0 %v121
    %556 = vmatpush1.msra.mxu0 %v120
    %557 = vmatprep.subr.mxu0 %v123
    %558 = vmatpush1.msra.mxu0 %v122
    %559 = vmatprep.subr.mxu0 %v125
    %560 = vmatpush1.msra.mxu0 %v124
    %561 = vmatprep.subr.mxu0 %v127
    %562 = vmatpush1.msra.mxu0 %v126
    %563 = vmatprep.subr.mxu0 %v129
    %564 = vmatpush1.msra.mxu0 %v128
    %565 = vmatprep.subr.mxu0 %v131
    %566 = vmatpush1.msra.mxu0 %v130
    %567 = vmatprep.subr.mxu0 %v133
    %568 = vmatpush1.msra.mxu0 %v132
    %569 = vmatprep.subr.mxu0 %v135
    %570 = vmatpush1.msra.mxu0 %v134
    %571 = vmatprep.subr.mxu0 %v137
    %572 = vmatpush1.msra.mxu0 %v136
    %573 = vmatprep.subr.mxu0 %v139
    %574 = vmatpush1.msra.mxu0 %v138
    %575 = vmatprep.subr.mxu0 %v141
    %576 = vmatpush1.msra.mxu0 %v140
    %577 = vmatprep.subr.mxu0 %v143
    %578 = vmatpush1.msra.mxu0 %v142
    %579 = vmatprep.subr.mxu0 %v145
    %580 = vmatpush1.msra.mxu0 %v144
    %581 = vmatprep.mubr.f32.mxu0 %v481
    %582 = vmatmul.mubr.f32.gmra.mrb[0].mxu0 %v479
    %v583 = vpop.f32.mrb[0].mxu0
    %v584 = vadd.f32 0.0, %v583
    %v585 = vpop.f32.mrb[0].mxu0
    %v586 = vadd.f32 0.0, %v585
    %587 = vmatprep.mubr.f32.mxu0 %v487
    %588 = vmatmul.mubr.f32.gmra.mrb[0].mxu0 %v485
    %v589 = vpop.f32.mrb[0].mxu0
    %v590 = vadd.f32 0.0, %v589
    %v591 = vpop.f32.mrb[0].mxu0
    %v592 = vadd.f32 0.0, %v591
    %593 = vmatprep.mubr.f32.mxu0 %v493
    %594 = vmatmul.mubr.f32.gmra.mrb[0].mxu0 %v491
    %v595 = vpop.f32.mrb[0].mxu0
    %v596 = vadd.f32 0.0, %v595
    %v597 = vpop.f32.mrb[0].mxu0
    %v598 = vadd.f32 0.0, %v597
    %599 = vmatprep.mubr.f32.mxu0 %v499
    %600 = vmatmul.mubr.f32.gmra.mrb[0].mxu0 %v497
    %v601 = vpop.f32.mrb[0].mxu0
    %v602 = vadd.f32 0.0, %v601
    %v603 = vpop.f32.mrb[0].mxu0
    %v604 = vadd.f32 0.0, %v603
    %605 = vdwg.mxu0
    %v606 = vsub.f32 %v479, %v584
    %v607 = vsub.f32 %v481, %v586
    %v608 = vsub.f32 %v485, %v590
    %v609 = vsub.f32 %v487, %v592
    %v610 = vsub.f32 %v491, %v596
    %v611 = vsub.f32 %v493, %v598
    %v612 = vsub.f32 %v497, %v602
    %v613 = vsub.f32 %v499, %v604
    %v614 = vmul.f32 %v606, %v606
    %v615 = vmul.f32 %v607, %v607
    %v616 = vmul.f32 %v608, %v608
    %v617 = vmul.f32 %v609, %v609
    %v618 = vmul.f32 %v610, %v610
    %v619 = vmul.f32 %v611, %v611
    %v620 = vmul.f32 %v612, %v612
    %v621 = vmul.f32 %v613, %v613
    %622 = vmatprep.subr.mxu0 %v83
    %623 = vmatpush1.msra.mxu0 %v82
    %624 = vmatprep.subr.mxu0 %v85
    %625 = vmatpush1.msra.mxu0 %v84
    %626 = vmatprep.subr.mxu0 %v87
    %627 = vmatpush1.msra.mxu0 %v86
    %628 = vmatprep.subr.mxu0 %v89
    %629 = vmatpush1.msra.mxu0 %v88
    %630 = vmatprep.subr.mxu0 %v91
    %631 = vmatpush1.msra.mxu0 %v90
    %632 = vmatprep.subr.mxu0 %v93
    %633 = vmatpush1.msra.mxu0 %v92
    %634 = vmatprep.subr.mxu0 %v95
    %635 = vmatpush1.msra.mxu0 %v94
    %636 = vmatprep.subr.mxu0 %v97
    %637 = vmatpush1.msra.mxu0 %v96
    %638 = vmatprep.subr.mxu0 %v99
    %639 = vmatpush1.msra.mxu0 %v98
    %640 = vmatprep.subr.mxu0 %v101
    %641 = vmatpush1.msra.mxu0 %v100
    %642 = vmatprep.subr.mxu0 %v103
    %643 = vmatpush1.msra.mxu0 %v102
    %644 = vmatprep.subr.mxu0 %v105
    %645 = vmatpush1.msra.mxu0 %v104
    %646 = vmatprep.subr.mxu0 %v107
    %647 = vmatpush1.msra.mxu0 %v106
    %648 = vmatprep.subr.mxu0 %v109
    %649 = vmatpush1.msra.mxu0 %v108
    %650 = vmatprep.subr.mxu0 %v111
    %651 = vmatpush1.msra.mxu0 %v110
    %652 = vmatprep.subr.mxu0 %v113
    %653 = vmatpush1.msra.mxu0 %v112
    %654 = vmatprep.subr.mxu0 %v115
    %655 = vmatpush1.msra.mxu0 %v114
    %656 = vmatprep.subr.mxu0 %v117
    %657 = vmatpush1.msra.mxu0 %v116
    %658 = vmatprep.subr.mxu0 %v119
    %659 = vmatpush1.msra.mxu0 %v118
    %660 = vmatprep.subr.mxu0 %v121
    %661 = vmatpush1.msra.mxu0 %v120
    %662 = vmatprep.subr.mxu0 %v123
    %663 = vmatpush1.msra.mxu0 %v122
    %664 = vmatprep.subr.mxu0 %v125
    %665 = vmatpush1.msra.mxu0 %v124
    %666 = vmatprep.subr.mxu0 %v127
    %667 = vmatpush1.msra.mxu0 %v126
    %668 = vmatprep.subr.mxu0 %v129
    %669 = vmatpush1.msra.mxu0 %v128
    %670 = vmatprep.subr.mxu0 %v131
    %671 = vmatpush1.msra.mxu0 %v130
    %672 = vmatprep.subr.mxu0 %v133
    %673 = vmatpush1.msra.mxu0 %v132
    %674 = vmatprep.subr.mxu0 %v135
    %675 = vmatpush1.msra.mxu0 %v134
    %676 = vmatprep.subr.mxu0 %v137
    %677 = vmatpush1.msra.mxu0 %v136
    %678 = vmatprep.subr.mxu0 %v139
    %679 = vmatpush1.msra.mxu0 %v138
    %680 = vmatprep.subr.mxu0 %v141
    %681 = vmatpush1.msra.mxu0 %v140
    %682 = vmatprep.subr.mxu0 %v143
    %683 = vmatpush1.msra.mxu0 %v142
    %684 = vmatprep.subr.mxu0 %v145
    %685 = vmatpush1.msra.mxu0 %v144
    %686 = vmatprep.mubr.f32.mxu0 %v615
    %687 = vmatmul.mubr.f32.gmra.mrb[0].mxu0 %v614
    %v688 = vpop.f32.mrb[0].mxu0
    %v689 = vadd.f32 1e-05, %v688
    %v690 = vpop.f32.mrb[0].mxu0
    %v691 = vadd.f32 1e-05, %v690
    %692 = vmatprep.mubr.f32.mxu0 %v617
    %693 = vmatmul.mubr.f32.gmra.mrb[0].mxu0 %v616
    %v694 = vpop.f32.mrb[0].mxu0
    %v695 = vadd.f32 1e-05, %v694
    %v696 = vpop.f32.mrb[0].mxu0
    %v697 = vadd.f32 1e-05, %v696
    %698 = vmatprep.mubr.f32.mxu0 %v619
    %699 = vmatmul.mubr.f32.gmra.mrb[0].mxu0 %v618
    %v700 = vpop.f32.mrb[0].mxu0
    %v701 = vadd.f32 1e-05, %v700
    %v702 = vpop.f32.mrb[0].mxu0
    %v703 = vadd.f32 1e-05, %v702
    %704 = vmatprep.mubr.f32.mxu0 %v621
    %705 = vmatmul.mubr.f32.gmra.mrb[0].mxu0 %v620
    %v706 = vpop.f32.mrb[0].mxu0
    %v707 = vadd.f32 1e-05, %v706
    %v708 = vpop.f32.mrb[0].mxu0
    %v709 = vadd.f32 1e-05, %v708
    %710 = vdwg.mxu0
    %v711 = vrsqrt.pop %v689
    %v712 = vrsqrt.pop %v691
    %v713 = vrsqrt.pop %v695
    %v714 = vrsqrt.pop %v697
    %v715 = vrsqrt.pop %v701
    %v716 = vrsqrt.pop %v703
    %v717 = vrsqrt.pop %v707
    %v718 = vrsqrt.pop %v709
    %v719 = vmul.f32 %v606, %v711
    %v720 = vmul.f32 %v607, %v712
    %v721 = vmul.f32 %v608, %v713
    %v722 = vmul.f32 %v609, %v714
    %v723 = vmul.f32 %v610, %v715
    %v724 = vmul.f32 %v611, %v716
    %v725 = vmul.f32 %v612, %v717
    %v726 = vmul.f32 %v613, %v718
    %v728 = vlaneseq
    %v729 = vshrl.u32 %v728, 7
    %v730 = vsub.s32 0, %v729
    %v731 = vrot.slane %v146, %v730
    %v732 = vlaneseq
    %v733 = vshrl.u32 %v732, 7
    %v734 = vsub.s32 1, %v733
    %v735 = vrot.slane %v146, %v734
    %v738 = vmul.f32 %v719, %v731
    %v739 = vmul.f32 %v720, %v735
    %v740 = vmul.f32 %v721, %v731
    %v741 = vmul.f32 %v722, %v735
    %v742 = vmul.f32 %v723, %v731
    %v743 = vmul.f32 %v724, %v735
    %v744 = vmul.f32 %v725, %v731
    %v745 = vmul.f32 %v726, %v735
    %v747 = vlaneseq
    %v748 = vshrl.u32 %v747, 7
    %v749 = vsub.s32 0, %v748
    %v750 = vrot.slane %v147, %v749
    %v751 = vlaneseq
    %v752 = vshrl.u32 %v751, 7
    %v753 = vsub.s32 1, %v752
    %v754 = vrot.slane %v147, %v753
    %v757 = vadd.f32 %v738, %v750
    %v758 = vadd.f32 %v739, %v754
    %v759 = vadd.f32 %v740, %v750
    %v760 = vadd.f32 %v741, %v754
    %v761 = vadd.f32 %v742, %v750
    %v762 = vadd.f32 %v743, %v754
    %v763 = vadd.f32 %v744, %v750
    %v764 = vadd.f32 %v745, %v754
    %v765 = vmul.f32 %v757, 0.5
    %v766 = vmul.f32 %v758, 0.5
    %v767 = vmul.f32 %v759, 0.5
    %v768 = vmul.f32 %v760, 0.5
    %v769 = vmul.f32 %v761, 0.5
    %v770 = vmul.f32 %v762, 0.5
    %v771 = vmul.f32 %v763, 0.5
    %v772 = vmul.f32 %v764, 0.5
    %v773 = vmul.f32 %v757, 0.044715
    %v774 = vmul.f32 %v758, 0.044715
    %v775 = vmul.f32 %v759, 0.044715
    %v776 = vmul.f32 %v760, 0.044715
    %v777 = vmul.f32 %v761, 0.044715
    %v778 = vmul.f32 %v762, 0.044715
    %v779 = vmul.f32 %v763, 0.044715
    %v780 = vmul.f32 %v764, 0.044715
    %v781 = vmul.f32 %v773, %v757
    %v782 = vmul.f32 %v774, %v758
    %v783 = vmul.f32 %v775, %v759
    %v784 = vmul.f32 %v776, %v760
    %v785 = vmul.f32 %v777, %v761
    %v786 = vmul.f32 %v778, %v762
    %v787 = vmul.f32 %v779, %v763
    %v788 = vmul.f32 %v780, %v764
    %v789 = vmul.f32 %v781, %v757
    %v790 = vmul.f32 %v782, %v758
    %v791 = vmul.f32 %v783, %v759
    %v792 = vmul.f32 %v784, %v760
    %v793 = vmul.f32 %v785, %v761
    %v794 = vmul.f32 %v786, %v762
    %v795 = vmul.f32 %v787, %v763
    %v796 = vmul.f32 %v788, %v764
    %v797 = vadd.f32 %v757, %v789
    %v798 = vadd.f32 %v758, %v790
    %v799 = vadd.f32 %v759, %v791
    %v800 = vadd.f32 %v760, %v792
    %v801 = vadd.f32 %v761, %v793
    %v802 = vadd.f32 %v762, %v794
    %v803 = vadd.f32 %v763, %v795
    %v804 = vadd.f32 %v764, %v796
    %v805 = vmul.f32 %v797, 0.7978846
    %v806 = vmul.f32 %v798, 0.7978846
    %v807 = vmul.f32 %v799, 0.7978846
    %v808 = vmul.f32 %v800, 0.7978846
    %v809 = vmul.f32 %v801, 0.7978846
    %v810 = vmul.f32 %v802, 0.7978846
    %v811 = vmul.f32 %v803, 0.7978846
    %v812 = vmul.f32 %v804, 0.7978846
    %v813 = vtanh.pop %v805
    %v814 = vtanh.pop %v806
    %v815 = vtanh.pop %v807
    %v816 = vtanh.pop %v808
    %v817 = vtanh.pop %v809
    %v818 = vtanh.pop %v810
    %v819 = vtanh.pop %v811
    %v820 = vtanh.pop %v812
    %v821 = vadd.f32 %v813, 1.0
    %v822 = vadd.f32 %v814, 1.0
    %v823 = vadd.f32 %v815, 1.0
    %v824 = vadd.f32 %v816, 1.0
    %v825 = vadd.f32 %v817, 1.0
    %v826 = vadd.f32 %v818, 1.0
    %v827 = vadd.f32 %v819, 1.0
    %v828 = vadd.f32 %v820, 1.0
    %v829 = vmul.f32 %v765, %v821
    %v830 = vmul.f32 %v766, %v822
    %v831 = vmul.f32 %v767, %v823
    %v832 = vmul.f32 %v768, %v824
    %v833 = vmul.f32 %v769, %v825
    %v834 = vmul.f32 %v770, %v826
    %v835 = vmul.f32 %v771, %v827
    %v836 = vmul.f32 %v772, %v828
    %841 = vrot.lane.b32.xlu0 %v830, 17
    %v842 = vpop.permute.xlu0 %841
    %843 = vrot.lane.b32.xlu0 %v832, 17
    %v844 = vpop.permute.xlu0 %843
    %845 = vrot.lane.b32.xlu0 %v834, 17
    %v846 = vpop.permute.xlu0 %845
    %847 = vrot.lane.b32.xlu0 %v836, 17
    %v848 = vpop.permute.xlu0 %847
    %857 = vrot.lane.b32.xlu0 %v829, 17
    %v858 = vpop.permute.xlu0 %857
    %859 = vrot.lane.b32.xlu0 %v831, 17
    %v860 = vpop.permute.xlu0 %859
    %861 = vrot.lane.b32.xlu0 %v833, 17
    %v862 = vpop.permute.xlu0 %861
    %863 = vrot.lane.b32.xlu0 %v835, 17
    %v864 = vpop.permute.xlu0 %863
    %v865 = vsel %vm171, %v858, %v842
    %v866 = vsel %vm171, %v860, %v844
    %v867 = vsel %vm171, %v862, %v846
    %v868 = vsel %vm171, %v864, %v848
    %v877 = vsel %vm171, %v842, %v858
    %v878 = vsel %vm171, %v844, %v860
    %v879 = vsel %vm171, %v846, %v862
    %v880 = vsel %vm171, %v848, %v864
    %v881 = vlaneseq
    %v882 = vshrl.u32 %v881, 7
    %v883 = vsub.s32 0, %v882
    %v884 = vrot.slane %v78, %v883
    %v885 = vlaneseq
    %v886 = vshrl.u32 %v885, 7
    %v887 = vsub.s32 0, %v886
    %v888 = vrot.slane %v79, %v887
    %v889 = vmul.f32 %v877, %v884
    %v890 = vmul.f32 %v865, %v888
    %v891 = vmul.f32 %v878, %v884
    %v892 = vmul.f32 %v866, %v888
    %v893 = vmul.f32 %v879, %v884
    %v894 = vmul.f32 %v867, %v888
    %v895 = vmul.f32 %v880, %v884
    %v896 = vmul.f32 %v868, %v888
    %897 = vrot.lane.b32.xlu0 %v830, 16
    %v898 = vpop.permute.xlu0 %897
    %899 = vrot.lane.b32.xlu0 %v832, 16
    %v900 = vpop.permute.xlu0 %899
    %901 = vrot.lane.b32.xlu0 %v834, 16
    %v902 = vpop.permute.xlu0 %901
    %903 = vrot.lane.b32.xlu0 %v836, 16
    %v904 = vpop.permute.xlu0 %903
    %909 = vrot.lane.b32.xlu0 %v829, 16
    %v910 = vpop.permute.xlu0 %909
    %911 = vrot.lane.b32.xlu0 %v831, 16
    %v912 = vpop.permute.xlu0 %911
    %913 = vrot.lane.b32.xlu0 %v833, 16
    %v914 = vpop.permute.xlu0 %913
    %915 = vrot.lane.b32.xlu0 %v835, 16
    %v916 = vpop.permute.xlu0 %915
    %v917 = vsel %vm183, %v910, %v898
    %v918 = vsel %vm183, %v912, %v900
    %v919 = vsel %vm183, %v914, %v902
    %v920 = vsel %vm183, %v916, %v904
    %v929 = vsel %vm183, %v898, %v910
    %v930 = vsel %vm183, %v900, %v912
    %v931 = vsel %vm183, %v902, %v914
    %v932 = vsel %vm183, %v904, %v916
    %v933 = vlaneseq
    %v934 = vshrl.u32 %v933, 7
    %v935 = vsub.s32 1, %v934
    %v936 = vrot.slane %v78, %v935
    %v937 = vlaneseq
    %v938 = vshrl.u32 %v937, 7
    %v939 = vsub.s32 1, %v938
    %v940 = vrot.slane %v79, %v939
    %v941 = vmul.f32 %v929, %v936
    %v942 = vmul.f32 %v917, %v940
    %v943 = vmul.f32 %v930, %v936
    %v944 = vmul.f32 %v918, %v940
    %v945 = vmul.f32 %v931, %v936
    %v946 = vmul.f32 %v919, %v940
    %v947 = vmul.f32 %v932, %v936
    %v948 = vmul.f32 %v920, %v940
    %949 = vrot.lane.b32.xlu0 %v830, 15
    %v950 = vpop.permute.xlu0 %949
    %951 = vrot.lane.b32.xlu0 %v832, 15
    %v952 = vpop.permute.xlu0 %951
    %953 = vrot.lane.b32.xlu0 %v834, 15
    %v954 = vpop.permute.xlu0 %953
    %955 = vrot.lane.b32.xlu0 %v836, 15
    %v956 = vpop.permute.xlu0 %955
    %961 = vrot.lane.b32.xlu0 %v829, 15
    %v962 = vpop.permute.xlu0 %961
    %963 = vrot.lane.b32.xlu0 %v831, 15
    %v964 = vpop.permute.xlu0 %963
    %965 = vrot.lane.b32.xlu0 %v833, 15
    %v966 = vpop.permute.xlu0 %965
    %967 = vrot.lane.b32.xlu0 %v835, 15
    %v968 = vpop.permute.xlu0 %967
    %v969 = vsel %vm201, %v962, %v950
    %v970 = vsel %vm201, %v964, %v952
    %v971 = vsel %vm201, %v966, %v954
    %v972 = vsel %vm201, %v968, %v956
    %v981 = vsel %vm201, %v950, %v962
    %v982 = vsel %vm201, %v952, %v964
    %v983 = vsel %vm201, %v954, %v966
    %v984 = vsel %vm201, %v956, %v968
    %v985 = vlaneseq
    %v986 = vshrl.u32 %v985, 7
    %v987 = vsub.s32 2, %v986
    %v988 = vrot.slane %v78, %v987
    %v989 = vlaneseq
    %v990 = vshrl.u32 %v989, 7
    %v991 = vsub.s32 2, %v990
    %v992 = vrot.slane %v79, %v991
    %v993 = vmul.f32 %v981, %v988
    %v994 = vmul.f32 %v969, %v992
    %v995 = vmul.f32 %v982, %v988
    %v996 = vmul.f32 %v970, %v992
    %v997 = vmul.f32 %v983, %v988
    %v998 = vmul.f32 %v971, %v992
    %v999 = vmul.f32 %v984, %v988
    %v1000 = vmul.f32 %v972, %v992
    %1001 = vrot.lane.b32.xlu0 %v830, 1
    %v1002 = vpop.permute.xlu0 %1001
    %1003 = vrot.lane.b32.xlu0 %v832, 1
    %v1004 = vpop.permute.xlu0 %1003
    %1005 = vrot.lane.b32.xlu0 %v834, 1
    %v1006 = vpop.permute.xlu0 %1005
    %1007 = vrot.lane.b32.xlu0 %v836, 1
    %v1008 = vpop.permute.xlu0 %1007
    %1013 = vrot.lane.b32.xlu0 %v829, 1
    %v1014 = vpop.permute.xlu0 %1013
    %1015 = vrot.lane.b32.xlu0 %v831, 1
    %v1016 = vpop.permute.xlu0 %1015
    %1017 = vrot.lane.b32.xlu0 %v833, 1
    %v1018 = vpop.permute.xlu0 %1017
    %1019 = vrot.lane.b32.xlu0 %v835, 1
    %v1020 = vpop.permute.xlu0 %1019
    %v1021 = vsel %vm217, %v1014, %v1002
    %v1022 = vsel %vm217, %v1016, %v1004
    %v1023 = vsel %vm217, %v1018, %v1006
    %v1024 = vsel %vm217, %v1020, %v1008
    %v1033 = vsel %vm217, %v1002, %v1014
    %v1034 = vsel %vm217, %v1004, %v1016
    %v1035 = vsel %vm217, %v1006, %v1018
    %v1036 = vsel %vm217, %v1008, %v1020
    %v1037 = vlaneseq
    %v1038 = vshrl.u32 %v1037, 7
    %v1039 = vsub.s32 3, %v1038
    %v1040 = vrot.slane %v78, %v1039
    %v1041 = vlaneseq
    %v1042 = vshrl.u32 %v1041, 7
    %v1043 = vsub.s32 3, %v1042
    %v1044 = vrot.slane %v79, %v1043
    %v1045 = vmul.f32 %v1033, %v1040
    %v1046 = vmul.f32 %v1021, %v1044
    %v1047 = vmul.f32 %v1034, %v1040
    %v1048 = vmul.f32 %v1022, %v1044
    %v1049 = vmul.f32 %v1035, %v1040
    %v1050 = vmul.f32 %v1023, %v1044
    %v1051 = vmul.f32 %v1036, %v1040
    %v1052 = vmul.f32 %v1024, %v1044
    %v1053 = vlaneseq
    %v1054 = vshrl.u32 %v1053, 7
    %v1055 = vsub.s32 4, %v1054
    %v1056 = vrot.slane %v78, %v1055
    %v1057 = vlaneseq
    %v1058 = vshrl.u32 %v1057, 7
    %v1059 = vsub.s32 4, %v1058
    %v1060 = vrot.slane %v79, %v1059
    %v1061 = vmul.f32 %v829, %v1056
    %v1062 = vmul.f32 %v830, %v1060
    %v1063 = vmul.f32 %v831, %v1056
    %v1064 = vmul.f32 %v832, %v1060
    %v1065 = vmul.f32 %v833, %v1056
    %v1066 = vmul.f32 %v834, %v1060
    %v1067 = vmul.f32 %v835, %v1056
    %v1068 = vmul.f32 %v836, %v1060
    %1069 = vrot.lane.b32.xlu0 %v829, 127
    %v1070 = vpop.permute.xlu0 %1069
    %1071 = vrot.lane.b32.xlu0 %v830, 127
    %v1072 = vpop.permute.xlu0 %1071
    %1073 = vrot.lane.b32.xlu0 %v831, 127
    %v1074 = vpop.permute.xlu0 %1073
    %1075 = vrot.lane.b32.xlu0 %v832, 127
    %v1076 = vpop.permute.xlu0 %1075
    %1077 = vrot.lane.b32.xlu0 %v833, 127
    %v1078 = vpop.permute.xlu0 %1077
    %1079 = vrot.lane.b32.xlu0 %v834, 127
    %v1080 = vpop.permute.xlu0 %1079
    %1081 = vrot.lane.b32.xlu0 %v835, 127
    %v1082 = vpop.permute.xlu0 %1081
    %1083 = vrot.lane.b32.xlu0 %v836, 127
    %v1084 = vpop.permute.xlu0 %1083
    %v1085 = vsel %vm249, %v1070, %v1072
    %v1086 = vsel %vm249, %v1074, %v1076
    %v1087 = vsel %vm249, %v1078, %v1080
    %v1088 = vsel %vm249, %v1082, %v1084
    %v1101 = vsel %vm249, %v1072, %v1070
    %v1102 = vsel %vm249, %v1076, %v1074
    %v1103 = vsel %vm249, %v1080, %v1078
    %v1104 = vsel %vm249, %v1084, %v1082
    %v1105 = vlaneseq
    %v1106 = vshrl.u32 %v1105, 7
    %v1107 = vsub.s32 5, %v1106
    %v1108 = vrot.slane %v78, %v1107
    %v1109 = vlaneseq
    %v1110 = vshrl.u32 %v1109, 7
    %v1111 = vsub.s32 5, %v1110
    %v1112 = vrot.slane %v79, %v1111
    %v1113 = vmul.f32 %v1085, %v1108
    %v1114 = vmul.f32 %v1101, %v1112
    %v1115 = vmul.f32 %v1086, %v1108
    %v1116 = vmul.f32 %v1102, %v1112
    %v1117 = vmul.f32 %v1087, %v1108
    %v1118 = vmul.f32 %v1103, %v1112
    %v1119 = vmul.f32 %v1088, %v1108
    %v1120 = vmul.f32 %v1104, %v1112
    %1121 = vrot.lane.b32.xlu0 %v829, 113
    %v1122 = vpop.permute.xlu0 %1121
    %1123 = vrot.lane.b32.xlu0 %v830, 113
    %v1124 = vpop.permute.xlu0 %1123
    %1125 = vrot.lane.b32.xlu0 %v831, 113
    %v1126 = vpop.permute.xlu0 %1125
    %1127 = vrot.lane.b32.xlu0 %v832, 113
    %v1128 = vpop.permute.xlu0 %1127
    %1129 = vrot.lane.b32.xlu0 %v833, 113
    %v1130 = vpop.permute.xlu0 %1129
    %1131 = vrot.lane.b32.xlu0 %v834, 113
    %v1132 = vpop.permute.xlu0 %1131
    %1133 = vrot.lane.b32.xlu0 %v835, 113
    %v1134 = vpop.permute.xlu0 %1133
    %1135 = vrot.lane.b32.xlu0 %v836, 113
    %v1136 = vpop.permute.xlu0 %1135
    %v1137 = vsel %vm265, %v1122, %v1124
    %v1138 = vsel %vm265, %v1126, %v1128
    %v1139 = vsel %vm265, %v1130, %v1132
    %v1140 = vsel %vm265, %v1134, %v1136
    %v1153 = vsel %vm265, %v1124, %v1122
    %v1154 = vsel %vm265, %v1128, %v1126
    %v1155 = vsel %vm265, %v1132, %v1130
    %v1156 = vsel %vm265, %v1136, %v1134
    %v1157 = vlaneseq
    %v1158 = vshrl.u32 %v1157, 7
    %v1159 = vsub.s32 6, %v1158
    %v1160 = vrot.slane %v78, %v1159
    %v1161 = vlaneseq
    %v1162 = vshrl.u32 %v1161, 7
    %v1163 = vsub.s32 6, %v1162
    %v1164 = vrot.slane %v79, %v1163
    %v1165 = vmul.f32 %v1137, %v1160
    %v1166 = vmul.f32 %v1153, %v1164
    %v1167 = vmul.f32 %v1138, %v1160
    %v1168 = vmul.f32 %v1154, %v1164
    %v1169 = vmul.f32 %v1139, %v1160
    %v1170 = vmul.f32 %v1155, %v1164
    %v1171 = vmul.f32 %v1140, %v1160
    %v1172 = vmul.f32 %v1156, %v1164
    %1173 = vrot.lane.b32.xlu0 %v829, 112
    %v1174 = vpop.permute.xlu0 %1173
    %1175 = vrot.lane.b32.xlu0 %v830, 112
    %v1176 = vpop.permute.xlu0 %1175
    %1177 = vrot.lane.b32.xlu0 %v831, 112
    %v1178 = vpop.permute.xlu0 %1177
    %1179 = vrot.lane.b32.xlu0 %v832, 112
    %v1180 = vpop.permute.xlu0 %1179
    %1181 = vrot.lane.b32.xlu0 %v833, 112
    %v1182 = vpop.permute.xlu0 %1181
    %1183 = vrot.lane.b32.xlu0 %v834, 112
    %v1184 = vpop.permute.xlu0 %1183
    %1185 = vrot.lane.b32.xlu0 %v835, 112
    %v1186 = vpop.permute.xlu0 %1185
    %1187 = vrot.lane.b32.xlu0 %v836, 112
    %v1188 = vpop.permute.xlu0 %1187
    %v1189 = vsel %vm281, %v1174, %v1176
    %v1190 = vsel %vm281, %v1178, %v1180
    %v1191 = vsel %vm281, %v1182, %v1184
    %v1192 = vsel %vm281, %v1186, %v1188
    %v1205 = vsel %vm281, %v1176, %v1174
    %v1206 = vsel %vm281, %v1180, %v1178
    %v1207 = vsel %vm281, %v1184, %v1182
    %v1208 = vsel %vm281, %v1188, %v1186
    %v1209 = vlaneseq
    %v1210 = vshrl.u32 %v1209, 7
    %v1211 = vsub.s32 7, %v1210
    %v1212 = vrot.slane %v78, %v1211
    %v1213 = vlaneseq
    %v1214 = vshrl.u32 %v1213, 7
    %v1215 = vsub.s32 7, %v1214
    %v1216 = vrot.slane %v79, %v1215
    %v1217 = vmul.f32 %v1189, %v1212
    %v1218 = vmul.f32 %v1205, %v1216
    %v1219 = vmul.f32 %v1190, %v1212
    %v1220 = vmul.f32 %v1206, %v1216
    %v1221 = vmul.f32 %v1191, %v1212
    %v1222 = vmul.f32 %v1207, %v1216
    %v1223 = vmul.f32 %v1192, %v1212
    %v1224 = vmul.f32 %v1208, %v1216
    %1225 = vrot.lane.b32.xlu0 %v829, 111
    %v1226 = vpop.permute.xlu0 %1225
    %1227 = vrot.lane.b32.xlu0 %v830, 111
    %v1228 = vpop.permute.xlu0 %1227
    %1229 = vrot.lane.b32.xlu0 %v831, 111
    %v1230 = vpop.permute.xlu0 %1229
    %1231 = vrot.lane.b32.xlu0 %v832, 111
    %v1232 = vpop.permute.xlu0 %1231
    %1233 = vrot.lane.b32.xlu0 %v833, 111
    %v1234 = vpop.permute.xlu0 %1233
    %1235 = vrot.lane.b32.xlu0 %v834, 111
    %v1236 = vpop.permute.xlu0 %1235
    %1237 = vrot.lane.b32.xlu0 %v835, 111
    %v1238 = vpop.permute.xlu0 %1237
    %1239 = vrot.lane.b32.xlu0 %v836, 111
    %v1240 = vpop.permute.xlu0 %1239
    %v1241 = vsel %vm297, %v1226, %v1228
    %v1242 = vsel %vm297, %v1230, %v1232
    %v1243 = vsel %vm297, %v1234, %v1236
    %v1244 = vsel %vm297, %v1238, %v1240
    %v1257 = vsel %vm297, %v1228, %v1226
    %v1258 = vsel %vm297, %v1232, %v1230
    %v1259 = vsel %vm297, %v1236, %v1234
    %v1260 = vsel %vm297, %v1240, %v1238
    %v1261 = vlaneseq
    %v1262 = vshrl.u32 %v1261, 7
    %v1263 = vsub.s32 0, %v1262
    %v1264 = vrot.slane %v80, %v1263
    %v1265 = vlaneseq
    %v1266 = vshrl.u32 %v1265, 7
    %v1267 = vsub.s32 0, %v1266
    %v1268 = vrot.slane %v81, %v1267
    %v1269 = vmul.f32 %v1241, %v1264
    %v1270 = vmul.f32 %v1257, %v1268
    %v1271 = vmul.f32 %v1242, %v1264
    %v1272 = vmul.f32 %v1258, %v1268
    %v1273 = vmul.f32 %v1243, %v1264
    %v1274 = vmul.f32 %v1259, %v1268
    %v1275 = vmul.f32 %v1244, %v1264
    %v1276 = vmul.f32 %v1260, %v1268
    %1278 = vset.pattern.permute.xlu0 0
    %1279 = vperm.xlu0 %1278, %v513
    %v1280 = vpop.permute.xlu0 %1279
    %1283 = vset.pattern.permute.xlu0 0
    %1284 = vperm.xlu0 %1283, %v514
    %v1285 = vpop.permute.xlu0 %1284
    %1288 = vset.pattern.permute.xlu0 0
    %1289 = vperm.xlu0 %1288, %v515
    %v1290 = vpop.permute.xlu0 %1289
    %1293 = vset.pattern.permute.xlu0 0
    %1294 = vperm.xlu0 %1293, %v516
    %v1295 = vpop.permute.xlu0 %1294
    %vm1297 = vcmask 261120
    %v1299 = vsel %vm1297, %v503, 0
    %v1302 = vsel %vm1297, %v506, 0
    %v1305 = vsel %vm1297, %v509, 0
    %v1308 = vsel %vm1297, %v512, 0
    %1310 = vmatprep.subr.mxu0 %v890
    %1311 = vmatpush1.msra.mxu0 %v889
    %1312 = vmatprep.subr.mxu0 %v892
    %1313 = vmatpush1.msra.mxu0 %v891
    %1314 = vmatprep.subr.mxu0 %v894
    %1315 = vmatpush1.msra.mxu0 %v893
    %1316 = vmatprep.subr.mxu0 %v896
    %1317 = vmatpush1.msra.mxu0 %v895
    %1318 = vmatprep.subr.mxu0 %v942
    %1319 = vmatpush1.msra.mxu0 %v941
    %1320 = vmatprep.subr.mxu0 %v944
    %1321 = vmatpush1.msra.mxu0 %v943
    %1322 = vmatprep.subr.mxu0 %v946
    %1323 = vmatpush1.msra.mxu0 %v945
    %1324 = vmatprep.subr.mxu0 %v948
    %1325 = vmatpush1.msra.mxu0 %v947
    %1326 = vmatprep.subr.mxu0 %v994
    %1327 = vmatpush1.msra.mxu0 %v993
    %1328 = vmatprep.subr.mxu0 %v996
    %1329 = vmatpush1.msra.mxu0 %v995
    %1330 = vmatprep.subr.mxu0 %v998
    %1331 = vmatpush1.msra.mxu0 %v997
    %1332 = vmatprep.subr.mxu0 %v1000
    %1333 = vmatpush1.msra.mxu0 %v999
    %1334 = vmatprep.subr.mxu0 %v1046
    %1335 = vmatpush1.msra.mxu0 %v1045
    %1336 = vmatprep.subr.mxu0 %v1048
    %1337 = vmatpush1.msra.mxu0 %v1047
    %1338 = vmatprep.subr.mxu0 %v1050
    %1339 = vmatpush1.msra.mxu0 %v1049
    %1340 = vmatprep.subr.mxu0 %v1052
    %1341 = vmatpush1.msra.mxu0 %v1051
    %1342 = vmatprep.subr.mxu0 %v1062
    %1343 = vmatpush1.msra.mxu0 %v1061
    %1344 = vmatprep.subr.mxu0 %v1064
    %1345 = vmatpush1.msra.mxu0 %v1063
    %1346 = vmatprep.subr.mxu0 %v1066
    %1347 = vmatpush1.msra.mxu0 %v1065
    %1348 = vmatprep.subr.mxu0 %v1068
    %1349 = vmatpush1.msra.mxu0 %v1067
    %1350 = vmatprep.subr.mxu0 %v1114
    %1351 = vmatpush1.msra.mxu0 %v1113
    %1352 = vmatprep.subr.mxu0 %v1116
    %1353 = vmatpush1.msra.mxu0 %v1115
    %1354 = vmatprep.subr.mxu0 %v1118
    %1355 = vmatpush1.msra.mxu0 %v1117
    %1356 = vmatprep.subr.mxu0 %v1120
    %1357 = vmatpush1.msra.mxu0 %v1119
    %1358 = vmatprep.subr.mxu0 %v1166
    %1359 = vmatpush1.msra.mxu0 %v1165
    %1360 = vmatprep.subr.mxu0 %v1168
    %1361 = vmatpush1.msra.mxu0 %v1167
    %1362 = vmatprep.subr.mxu0 %v1170
    %1363 = vmatpush1.msra.mxu0 %v1169
    %1364 = vmatprep.subr.mxu0 %v1172
    %1365 = vmatpush1.msra.mxu0 %v1171
    %1366 = vmatprep.subr.mxu0 %v1218
    %1367 = vmatpush1.msra.mxu0 %v1217
    %1368 = vmatprep.subr.mxu0 %v1220
    %1369 = vmatpush1.msra.mxu0 %v1219
    %1370 = vmatprep.subr.mxu0 %v1222
    %1371 = vmatpush1.msra.mxu0 %v1221
    %1372 = vmatprep.subr.mxu0 %v1224
    %1373 = vmatpush1.msra.mxu0 %v1223
    %1374 = vmatprep.mubr.f32.mxu0 %v502
    %1375 = vmatmul.mubr.f32.gmra.mrb[0].mxu0 %v501
    %v1376 = vpop.f32.mrb[0].mxu0
    %v1377 = vadd.f32 %v1280, %v1376
    %v1378 = vpop.f32.mrb[0].mxu0
    %v1379 = vadd.f32 %v1280, %v1378
    %1380 = vmatprep.mubr.f32.mxu0 %v505
    %1381 = vmatmul.mubr.f32.gmra.mrb[0].mxu0 %v504
    %v1382 = vpop.f32.mrb[0].mxu0
    %v1383 = vadd.f32 %v1285, %v1382
    %v1384 = vpop.f32.mrb[0].mxu0
    %v1385 = vadd.f32 %v1285, %v1384
    %1386 = vmatprep.mubr.f32.mxu0 %v508
    %1387 = vmatmul.mubr.f32.gmra.mrb[0].mxu0 %v507
    %v1388 = vpop.f32.mrb[0].mxu0
    %v1389 = vadd.f32 %v1290, %v1388
    %v1390 = vpop.f32.mrb[0].mxu0
    %v1391 = vadd.f32 %v1290, %v1390
    %1392 = vmatprep.mubr.f32.mxu0 %v511
    %1393 = vmatmul.mubr.f32.gmra.mrb[0].mxu0 %v510
    %v1394 = vpop.f32.mrb[0].mxu0
    %v1395 = vadd.f32 %v1295, %v1394
    %v1396 = vpop.f32.mrb[0].mxu0
    %v1397 = vadd.f32 %v1295, %v1396
    %1398 = vdwg.mxu0
    %1399 = vmatprep.subr.mxu0 %v1270
    %1400 = vmatpush1.msra.mxu0 %v1269
    %1401 = vmatprep.subr.mxu0 %v1272
    %1402 = vmatpush1.msra.mxu0 %v1271
    %1403 = vmatprep.subr.mxu0 %v1274
    %1404 = vmatpush1.msra.mxu0 %v1273
    %1405 = vmatprep.subr.mxu0 %v1276
    %1406 = vmatpush1.msra.mxu0 %v1275
    %1407 = vmatprep.subr.mxu0 0.0
    %1408 = vmatpush1.msra.mxu0 0.0
    %1409 = vmatprep.subr.mxu0 0.0
    %1410 = vmatpush1.msra.mxu0 0.0
    %1411 = vmatprep.subr.mxu0 0.0
    %1412 = vmatpush1.msra.mxu0 0.0
    %1413 = vmatprep.subr.mxu0 0.0
    %1414 = vmatpush1.msra.mxu0 0.0
    %1415 = vmatprep.subr.mxu0 0.0
    %1416 = vmatpush1.msra.mxu0 0.0
    %1417 = vmatprep.subr.mxu0 0.0
    %1418 = vmatpush1.msra.mxu0 0.0
    %1419 = vmatprep.subr.mxu0 0.0
    %1420 = vmatpush1.msra.mxu0 0.0
    %1421 = vmatprep.subr.mxu0 0.0
    %1422 = vmatpush1.msra.mxu0 0.0
    %1423 = vmatprep.subr.mxu0 0.0
    %1424 = vmatpush1.msra.mxu0 0.0
    %1425 = vmatprep.subr.mxu0 0.0
    %1426 = vmatpush1.msra.mxu0 0.0
    %1427 = vmatprep.subr.mxu0 0.0
    %1428 = vmatpush1.msra.mxu0 0.0
    %1429 = vmatprep.subr.mxu0 0.0
    %1430 = vmatpush1.msra.mxu0 0.0
    %1431 = vmatprep.subr.mxu0 0.0
    %1432 = vmatpush1.msra.mxu0 0.0
    %1433 = vmatprep.subr.mxu0 0.0
    %1434 = vmatpush1.msra.mxu0 0.0
    %1435 = vmatprep.subr.mxu0 0.0
    %1436 = vmatpush1.msra.mxu0 0.0
    %1437 = vmatprep.subr.mxu0 0.0
    %1438 = vmatpush1.msra.mxu0 0.0
    %1439 = vmatprep.subr.mxu0 0.0
    %1440 = vmatpush1.msra.mxu0 0.0
    %1441 = vmatprep.subr.mxu0 0.0
    %1442 = vmatpush1.msra.mxu0 0.0
    %1443 = vmatprep.subr.mxu0 0.0
    %1444 = vmatpush1.msra.mxu0 0.0
    %1445 = vmatprep.subr.mxu0 0.0
    %1446 = vmatpush1.msra.mxu0 0.0
    %1447 = vmatprep.subr.mxu0 0.0
    %1448 = vmatpush1.msra.mxu0 0.0
    %1449 = vmatprep.subr.mxu0 0.0
    %1450 = vmatpush1.msra.mxu0 0.0
    %1451 = vmatprep.subr.mxu0 0.0
    %1452 = vmatpush1.msra.mxu0 0.0
    %1453 = vmatprep.subr.mxu0 0.0
    %1454 = vmatpush1.msra.mxu0 0.0
    %1455 = vmatprep.subr.mxu0 0.0
    %1456 = vmatpush1.msra.mxu0 0.0
    %1457 = vmatprep.subr.mxu0 0.0
    %1458 = vmatpush1.msra.mxu0 0.0
    %1459 = vmatprep.subr.mxu0 0.0
    %1460 = vmatpush1.msra.mxu0 0.0
    %1461 = vmatprep.subr.mxu0 0.0
    %1462 = vmatpush1.msra.mxu0 0.0
    %1463 = vmatprep.mubr.f32.mxu0 0.0
    %1464 = vmatmul.mubr.f32.gmra.mrb[0].mxu0 %v1299
    %v1465 = vpop.f32.mrb[0].mxu0
    %v1466 = vadd.f32 %v1377, %v1465
    %v1467 = vpop.f32.mrb[0].mxu0
    %v1468 = vadd.f32 %v1379, %v1467
    %1469 = vmatprep.mubr.f32.mxu0 0.0
    %1470 = vmatmul.mubr.f32.gmra.mrb[0].mxu0 %v1302
    %v1471 = vpop.f32.mrb[0].mxu0
    %v1472 = vadd.f32 %v1383, %v1471
    %v1473 = vpop.f32.mrb[0].mxu0
    %v1474 = vadd.f32 %v1385, %v1473
    %1475 = vmatprep.mubr.f32.mxu0 0.0
    %1476 = vmatmul.mubr.f32.gmra.mrb[0].mxu0 %v1305
    %v1477 = vpop.f32.mrb[0].mxu0
    %v1478 = vadd.f32 %v1389, %v1477
    %v1479 = vpop.f32.mrb[0].mxu0
    %v1480 = vadd.f32 %v1391, %v1479
    %1481 = vmatprep.mubr.f32.mxu0 0.0
    %1482 = vmatmul.mubr.f32.gmra.mrb[0].mxu0 %v1308
    %v1483 = vpop.f32.mrb[0].mxu0
    %v1484 = vadd.f32 %v1395, %v1483
    %v1485 = vpop.f32.mrb[0].mxu0
    %v1486 = vadd.f32 %v1397, %v1485
    %1487 = vdwg.mxu0
    %1488 = vmatprep.subr.mxu0 %v83
    %1489 = vmatpush1.msra.mxu0 %v82
    %1490 = vmatprep.subr.mxu0 %v85
    %1491 = vmatpush1.msra.mxu0 %v84
    %1492 = vmatprep.subr.mxu0 %v87
    %1493 = vmatpush1.msra.mxu0 %v86
    %1494 = vmatprep.subr.mxu0 %v89
    %1495 = vmatpush1.msra.mxu0 %v88
    %1496 = vmatprep.subr.mxu0 %v91
    %1497 = vmatpush1.msra.mxu0 %v90
    %1498 = vmatprep.subr.mxu0 %v93
    %1499 = vmatpush1.msra.mxu0 %v92
    %1500 = vmatprep.subr.mxu0 %v95
    %1501 = vmatpush1.msra.mxu0 %v94
    %1502 = vmatprep.subr.mxu0 %v97
    %1503 = vmatpush1.msra.mxu0 %v96
    %1504 = vmatprep.subr.mxu0 %v99
    %1505 = vmatpush1.msra.mxu0 %v98
    %1506 = vmatprep.subr.mxu0 %v101
    %1507 = vmatpush1.msra.mxu0 %v100
    %1508 = vmatprep.subr.mxu0 %v103
    %1509 = vmatpush1.msra.mxu0 %v102
    %1510 = vmatprep.subr.mxu0 %v105
    %1511 = vmatpush1.msra.mxu0 %v104
    %1512 = vmatprep.subr.mxu0 %v107
    %1513 = vmatpush1.msra.mxu0 %v106
    %1514 = vmatprep.subr.mxu0 %v109
    %1515 = vmatpush1.msra.mxu0 %v108
    %1516 = vmatprep.subr.mxu0 %v111
    %1517 = vmatpush1.msra.mxu0 %v110
    %1518 = vmatprep.subr.mxu0 %v113
    %1519 = vmatpush1.msra.mxu0 %v112
    %1520 = vmatprep.subr.mxu0 %v115
    %1521 = vmatpush1.msra.mxu0 %v114
    %1522 = vmatprep.subr.mxu0 %v117
    %1523 = vmatpush1.msra.mxu0 %v116
    %1524 = vmatprep.subr.mxu0 %v119
    %1525 = vmatpush1.msra.mxu0 %v118
    %1526 = vmatprep.subr.mxu0 %v121
    %1527 = vmatpush1.msra.mxu0 %v120
    %1528 = vmatprep.subr.mxu0 %v123
    %1529 = vmatpush1.msra.mxu0 %v122
    %1530 = vmatprep.subr.mxu0 %v125
    %1531 = vmatpush1.msra.mxu0 %v124
    %1532 = vmatprep.subr.mxu0 %v127
    %1533 = vmatpush1.msra.mxu0 %v126
    %1534 = vmatprep.subr.mxu0 %v129
    %1535 = vmatpush1.msra.mxu0 %v128
    %1536 = vmatprep.subr.mxu0 %v131
    %1537 = vmatpush1.msra.mxu0 %v130
    %1538 = vmatprep.subr.mxu0 %v133
    %1539 = vmatpush1.msra.mxu0 %v132
    %1540 = vmatprep.subr.mxu0 %v135
    %1541 = vmatpush1.msra.mxu0 %v134
    %1542 = vmatprep.subr.mxu0 %v137
    %1543 = vmatpush1.msra.mxu0 %v136
    %1544 = vmatprep.subr.mxu0 %v139
    %1545 = vmatpush1.msra.mxu0 %v138
    %1546 = vmatprep.subr.mxu0 %v141
    %1547 = vmatpush1.msra.mxu0 %v140
    %1548 = vmatprep.subr.mxu0 %v143
    %1549 = vmatpush1.msra.mxu0 %v142
    %1550 = vmatprep.subr.mxu0 %v145
    %1551 = vmatpush1.msra.mxu0 %v144
    %1552 = vmatprep.mubr.f32.mxu0 %v1468
    %1553 = vmatmul.mubr.f32.gmra.mrb[0].mxu0 %v1466
    %v1554 = vpop.f32.mrb[0].mxu0
    %v1555 = vadd.f32 0.0, %v1554
    %v1556 = vpop.f32.mrb[0].mxu0
    %v1557 = vadd.f32 0.0, %v1556
    %1558 = vmatprep.mubr.f32.mxu0 %v1474
    %1559 = vmatmul.mubr.f32.gmra.mrb[0].mxu0 %v1472
    %v1560 = vpop.f32.mrb[0].mxu0
    %v1561 = vadd.f32 0.0, %v1560
    %v1562 = vpop.f32.mrb[0].mxu0
    %v1563 = vadd.f32 0.0, %v1562
    %1564 = vmatprep.mubr.f32.mxu0 %v1480
    %1565 = vmatmul.mubr.f32.gmra.mrb[0].mxu0 %v1478
    %v1566 = vpop.f32.mrb[0].mxu0
    %v1567 = vadd.f32 0.0, %v1566
    %v1568 = vpop.f32.mrb[0].mxu0
    %v1569 = vadd.f32 0.0, %v1568
    %1570 = vmatprep.mubr.f32.mxu0 %v1486
    %1571 = vmatmul.mubr.f32.gmra.mrb[0].mxu0 %v1484
    %v1572 = vpop.f32.mrb[0].mxu0
    %v1573 = vadd.f32 0.0, %v1572
    %v1574 = vpop.f32.mrb[0].mxu0
    %v1575 = vadd.f32 0.0, %v1574
    %1576 = vdwg.mxu0
    %v1577 = vsub.f32 %v1466, %v1555
    %v1578 = vsub.f32 %v1468, %v1557
    %v1579 = vsub.f32 %v1472, %v1561
    %v1580 = vsub.f32 %v1474, %v1563
    %v1581 = vsub.f32 %v1478, %v1567
    %v1582 = vsub.f32 %v1480, %v1569
    %v1583 = vsub.f32 %v1484, %v1573
    %v1584 = vsub.f32 %v1486, %v1575
    %v1585 = vmul.f32 %v1577, %v1577
    %v1586 = vmul.f32 %v1578, %v1578
    %v1587 = vmul.f32 %v1579, %v1579
    %v1588 = vmul.f32 %v1580, %v1580
    %v1589 = vmul.f32 %v1581, %v1581
    %v1590 = vmul.f32 %v1582, %v1582
    %v1591 = vmul.f32 %v1583, %v1583
    %v1592 = vmul.f32 %v1584, %v1584
    %1593 = vmatprep.subr.mxu0 %v83
    %1594 = vmatpush1.msra.mxu0 %v82
    %1595 = vmatprep.subr.mxu0 %v85
    %1596 = vmatpush1.msra.mxu0 %v84
    %1597 = vmatprep.subr.mxu0 %v87
    %1598 = vmatpush1.msra.mxu0 %v86
    %1599 = vmatprep.subr.mxu0 %v89
    %1600 = vmatpush1.msra.mxu0 %v88
    %1601 = vmatprep.subr.mxu0 %v91
    %1602 = vmatpush1.msra.mxu0 %v90
    %1603 = vmatprep.subr.mxu0 %v93
    %1604 = vmatpush1.msra.mxu0 %v92
    %1605 = vmatprep.subr.mxu0 %v95
    %1606 = vmatpush1.msra.mxu0 %v94
    %1607 = vmatprep.subr.mxu0 %v97
    %1608 = vmatpush1.msra.mxu0 %v96
    %1609 = vmatprep.subr.mxu0 %v99
    %1610 = vmatpush1.msra.mxu0 %v98
    %1611 = vmatprep.subr.mxu0 %v101
    %1612 = vmatpush1.msra.mxu0 %v100
    %1613 = vmatprep.subr.mxu0 %v103
    %1614 = vmatpush1.msra.mxu0 %v102
    %1615 = vmatprep.subr.mxu0 %v105
    %1616 = vmatpush1.msra.mxu0 %v104
    %1617 = vmatprep.subr.mxu0 %v107
    %1618 = vmatpush1.msra.mxu0 %v106
    %1619 = vmatprep.subr.mxu0 %v109
    %1620 = vmatpush1.msra.mxu0 %v108
    %1621 = vmatprep.subr.mxu0 %v111
    %1622 = vmatpush1.msra.mxu0 %v110
    %1623 = vmatprep.subr.mxu0 %v113
    %1624 = vmatpush1.msra.mxu0 %v112
    %1625 = vmatprep.subr.mxu0 %v115
    %1626 = vmatpush1.msra.mxu0 %v114
    %1627 = vmatprep.subr.mxu0 %v117
    %1628 = vmatpush1.msra.mxu0 %v116
    %1629 = vmatprep.subr.mxu0 %v119
    %1630 = vmatpush1.msra.mxu0 %v118
    %1631 = vmatprep.subr.mxu0 %v121
    %1632 = vmatpush1.msra.mxu0 %v120
    %1633 = vmatprep.subr.mxu0 %v123
    %1634 = vmatpush1.msra.mxu0 %v122
    %1635 = vmatprep.subr.mxu0 %v125
    %1636 = vmatpush1.msra.mxu0 %v124
    %1637 = vmatprep.subr.mxu0 %v127
    %1638 = vmatpush1.msra.mxu0 %v126
    %1639 = vmatprep.subr.mxu0 %v129
    %1640 = vmatpush1.msra.mxu0 %v128
    %1641 = vmatprep.subr.mxu0 %v131
    %1642 = vmatpush1.msra.mxu0 %v130
    %1643 = vmatprep.subr.mxu0 %v133
    %1644 = vmatpush1.msra.mxu0 %v132
    %1645 = vmatprep.subr.mxu0 %v135
    %1646 = vmatpush1.msra.mxu0 %v134
    %1647 = vmatprep.subr.mxu0 %v137
    %1648 = vmatpush1.msra.mxu0 %v136
    %1649 = vmatprep.subr.mxu0 %v139
    %1650 = vmatpush1.msra.mxu0 %v138
    %1651 = vmatprep.subr.mxu0 %v141
    %1652 = vmatpush1.msra.mxu0 %v140
    %1653 = vmatprep.subr.mxu0 %v143
    %1654 = vmatpush1.msra.mxu0 %v142
    %1655 = vmatprep.subr.mxu0 %v145
    %1656 = vmatpush1.msra.mxu0 %v144
    %1657 = vmatprep.mubr.f32.mxu0 %v1586
    %1658 = vmatmul.mubr.f32.gmra.mrb[0].mxu0 %v1585
    %v1659 = vpop.f32.mrb[0].mxu0
    %v1660 = vadd.f32 1e-05, %v1659
    %v1661 = vpop.f32.mrb[0].mxu0
    %v1662 = vadd.f32 1e-05, %v1661
    %1663 = vmatprep.mubr.f32.mxu0 %v1588
    %1664 = vmatmul.mubr.f32.gmra.mrb[0].mxu0 %v1587
    %v1665 = vpop.f32.mrb[0].mxu0
    %v1666 = vadd.f32 1e-05, %v1665
    %v1667 = vpop.f32.mrb[0].mxu0
    %v1668 = vadd.f32 1e-05, %v1667
    %1669 = vmatprep.mubr.f32.mxu0 %v1590
    %1670 = vmatmul.mubr.f32.gmra.mrb[0].mxu0 %v1589
    %v1671 = vpop.f32.mrb[0].mxu0
    %v1672 = vadd.f32 1e-05, %v1671
    %v1673 = vpop.f32.mrb[0].mxu0
    %v1674 = vadd.f32 1e-05, %v1673
    %1675 = vmatprep.mubr.f32.mxu0 %v1592
    %1676 = vmatmul.mubr.f32.gmra.mrb[0].mxu0 %v1591
    %v1677 = vpop.f32.mrb[0].mxu0
    %v1678 = vadd.f32 1e-05, %v1677
    %v1679 = vpop.f32.mrb[0].mxu0
    %v1680 = vadd.f32 1e-05, %v1679
    %1681 = vdwg.mxu0
    %v1682 = vrsqrt.pop %v1660
    %v1683 = vrsqrt.pop %v1662
    %v1684 = vrsqrt.pop %v1666
    %v1685 = vrsqrt.pop %v1668
    %v1686 = vrsqrt.pop %v1672
    %v1687 = vrsqrt.pop %v1674
    %v1688 = vrsqrt.pop %v1678
    %v1689 = vrsqrt.pop %v1680
    %v1690 = vmul.f32 %v1577, %v1682
    %v1691 = vmul.f32 %v1578, %v1683
    %v1692 = vmul.f32 %v1579, %v1684
    %v1693 = vmul.f32 %v1580, %v1685
    %v1694 = vmul.f32 %v1581, %v1686
    %v1695 = vmul.f32 %v1582, %v1687
    %v1696 = vmul.f32 %v1583, %v1688
    %v1697 = vmul.f32 %v1584, %v1689
    %v1698 = vmul.f32 %v1690, %v731
    %v1699 = vmul.f32 %v1691, %v735
    %v1700 = vmul.f32 %v1692, %v731
    %v1701 = vmul.f32 %v1693, %v735
    %v1702 = vmul.f32 %v1694, %v731
    %v1703 = vmul.f32 %v1695, %v735
    %v1704 = vmul.f32 %v1696, %v731
    %v1705 = vmul.f32 %v1697, %v735
    %v1706 = vadd.f32 %v1698, %v750
    %v1707 = vadd.f32 %v1699, %v754
    %v1708 = vadd.f32 %v1700, %v750
    %v1709 = vadd.f32 %v1701, %v754
    %v1710 = vadd.f32 %v1702, %v750
    %v1711 = vadd.f32 %v1703, %v754
    %v1712 = vadd.f32 %v1704, %v750
    %v1713 = vadd.f32 %v1705, %v754
    %v1714 = vmul.f32 %v1706, 0.5
    %v1715 = vmul.f32 %v1707, 0.5
    %v1716 = vmul.f32 %v1708, 0.5
    %v1717 = vmul.f32 %v1709, 0.5
    %v1718 = vmul.f32 %v1710, 0.5
    %v1719 = vmul.f32 %v1711, 0.5
    %v1720 = vmul.f32 %v1712, 0.5
    %v1721 = vmul.f32 %v1713, 0.5
    %v1722 = vmul.f32 %v1706, 0.044715
    %v1723 = vmul.f32 %v1707, 0.044715
    %v1724 = vmul.f32 %v1708, 0.044715
    %v1725 = vmul.f32 %v1709, 0.044715
    %v1726 = vmul.f32 %v1710, 0.044715
    %v1727 = vmul.f32 %v1711, 0.044715
    %v1728 = vmul.f32 %v1712, 0.044715
    %v1729 = vmul.f32 %v1713, 0.044715
    %v1730 = vmul.f32 %v1722, %v1706
    %v1731 = vmul.f32 %v1723, %v1707
    %v1732 = vmul.f32 %v1724, %v1708
    %v1733 = vmul.f32 %v1725, %v1709
    %v1734 = vmul.f32 %v1726, %v1710
    %v1735 = vmul.f32 %v1727, %v1711
    %v1736 = vmul.f32 %v1728, %v1712
    %v1737 = vmul.f32 %v1729, %v1713
    %v1738 = vmul.f32 %v1730, %v1706
    %v1739 = vmul.f32 %v1731, %v1707
    %v1740 = vmul.f32 %v1732, %v1708
    %v1741 = vmul.f32 %v1733, %v1709
    %v1742 = vmul.f32 %v1734, %v1710
    %v1743 = vmul.f32 %v1735, %v1711
    %v1744 = vmul.f32 %v1736, %v1712
    %v1745 = vmul.f32 %v1737, %v1713
    %v1746 = vadd.f32 %v1706, %v1738
    %v1747 = vadd.f32 %v1707, %v1739
    %v1748 = vadd.f32 %v1708, %v1740
    %v1749 = vadd.f32 %v1709, %v1741
    %v1750 = vadd.f32 %v1710, %v1742
    %v1751 = vadd.f32 %v1711, %v1743
    %v1752 = vadd.f32 %v1712, %v1744
    %v1753 = vadd.f32 %v1713, %v1745
    %v1754 = vmul.f32 %v1746, 0.7978846
    %v1755 = vmul.f32 %v1747, 0.7978846
    %v1756 = vmul.f32 %v1748, 0.7978846
    %v1757 = vmul.f32 %v1749, 0.7978846
    %v1758 = vmul.f32 %v1750, 0.7978846
    %v1759 = vmul.f32 %v1751, 0.7978846
    %v1760 = vmul.f32 %v1752, 0.7978846
    %v1761 = vmul.f32 %v1753, 0.7978846
    %v1762 = vtanh.pop %v1754
    %v1763 = vtanh.pop %v1755
    %v1764 = vtanh.pop %v1756
    %v1765 = vtanh.pop %v1757
    %v1766 = vtanh.pop %v1758
    %v1767 = vtanh.pop %v1759
    %v1768 = vtanh.pop %v1760
    %v1769 = vtanh.pop %v1761
    %v1770 = vadd.f32 %v1762, 1.0
    %v1771 = vadd.f32 %v1763, 1.0
    %v1772 = vadd.f32 %v1764, 1.0
    %v1773 = vadd.f32 %v1765, 1.0
    %v1774 = vadd.f32 %v1766, 1.0
    %v1775 = vadd.f32 %v1767, 1.0
    %v1776 = vadd.f32 %v1768, 1.0
    %v1777 = vadd.f32 %v1769, 1.0
    %v1778 = vmul.f32 %v1714, %v1770
    %v1779 = vmul.f32 %v1715, %v1771
    %v1780 = vmul.f32 %v1716, %v1772
    %v1781 = vmul.f32 %v1717, %v1773
    %v1782 = vmul.f32 %v1718, %v1774
    %v1783 = vmul.f32 %v1719, %v1775
    %v1784 = vmul.f32 %v1720, %v1776
    %v1785 = vmul.f32 %v1721, %v1777
    %1790 = vrot.lane.b32.xlu0 %v1779, 17
    %v1791 = vpop.permute.xlu0 %1790
    %1792 = vrot.lane.b32.xlu0 %v1781, 17
    %v1793 = vpop.permute.xlu0 %1792
    %1794 = vrot.lane.b32.xlu0 %v1783, 17
    %v1795 = vpop.permute.xlu0 %1794
    %1796 = vrot.lane.b32.xlu0 %v1785, 17
    %v1797 = vpop.permute.xlu0 %1796
    %1806 = vrot.lane.b32.xlu0 %v1778, 17
    %v1807 = vpop.permute.xlu0 %1806
    %1808 = vrot.lane.b32.xlu0 %v1780, 17
    %v1809 = vpop.permute.xlu0 %1808
    %1810 = vrot.lane.b32.xlu0 %v1782, 17
    %v1811 = vpop.permute.xlu0 %1810
    %1812 = vrot.lane.b32.xlu0 %v1784, 17
    %v1813 = vpop.permute.xlu0 %1812
    %v1814 = vsel %vm171, %v1807, %v1791
    %v1815 = vsel %vm171, %v1809, %v1793
    %v1816 = vsel %vm171, %v1811, %v1795
    %v1817 = vsel %vm171, %v1813, %v1797
    %v1826 = vsel %vm171, %v1791, %v1807
    %v1827 = vsel %vm171, %v1793, %v1809
    %v1828 = vsel %vm171, %v1795, %v1811
    %v1829 = vsel %vm171, %v1797, %v1813
    %v1830 = vmul.f32 %v1826, %v884
    %v1831 = vmul.f32 %v1814, %v888
    %v1832 = vmul.f32 %v1827, %v884
    %v1833 = vmul.f32 %v1815, %v888
    %v1834 = vmul.f32 %v1828, %v884
    %v1835 = vmul.f32 %v1816, %v888
    %v1836 = vmul.f32 %v1829, %v884
    %v1837 = vmul.f32 %v1817, %v888
    %1838 = vrot.lane.b32.xlu0 %v1779, 16
    %v1839 = vpop.permute.xlu0 %1838
    %1840 = vrot.lane.b32.xlu0 %v1781, 16
    %v1841 = vpop.permute.xlu0 %1840
    %1842 = vrot.lane.b32.xlu0 %v1783, 16
    %v1843 = vpop.permute.xlu0 %1842
    %1844 = vrot.lane.b32.xlu0 %v1785, 16
    %v1845 = vpop.permute.xlu0 %1844
    %1850 = vrot.lane.b32.xlu0 %v1778, 16
    %v1851 = vpop.permute.xlu0 %1850
    %1852 = vrot.lane.b32.xlu0 %v1780, 16
    %v1853 = vpop.permute.xlu0 %1852
    %1854 = vrot.lane.b32.xlu0 %v1782, 16
    %v1855 = vpop.permute.xlu0 %1854
    %1856 = vrot.lane.b32.xlu0 %v1784, 16
    %v1857 = vpop.permute.xlu0 %1856
    %v1858 = vsel %vm183, %v1851, %v1839
    %v1859 = vsel %vm183, %v1853, %v1841
    %v1860 = vsel %vm183, %v1855, %v1843
    %v1861 = vsel %vm183, %v1857, %v1845
    %v1870 = vsel %vm183, %v1839, %v1851
    %v1871 = vsel %vm183, %v1841, %v1853
    %v1872 = vsel %vm183, %v1843, %v1855
    %v1873 = vsel %vm183, %v1845, %v1857
    %v1874 = vmul.f32 %v1870, %v936
    %v1875 = vmul.f32 %v1858, %v940
    %v1876 = vmul.f32 %v1871, %v936
    %v1877 = vmul.f32 %v1859, %v940
    %v1878 = vmul.f32 %v1872, %v936
    %v1879 = vmul.f32 %v1860, %v940
    %v1880 = vmul.f32 %v1873, %v936
    %v1881 = vmul.f32 %v1861, %v940
    %1882 = vrot.lane.b32.xlu0 %v1779, 15
    %v1883 = vpop.permute.xlu0 %1882
    %1884 = vrot.lane.b32.xlu0 %v1781, 15
    %v1885 = vpop.permute.xlu0 %1884
    %1886 = vrot.lane.b32.xlu0 %v1783, 15
    %v1887 = vpop.permute.xlu0 %1886
    %1888 = vrot.lane.b32.xlu0 %v1785, 15
    %v1889 = vpop.permute.xlu0 %1888
    %1894 = vrot.lane.b32.xlu0 %v1778, 15
    %v1895 = vpop.permute.xlu0 %1894
    %1896 = vrot.lane.b32.xlu0 %v1780, 15
    %v1897 = vpop.permute.xlu0 %1896
    %1898 = vrot.lane.b32.xlu0 %v1782, 15
    %v1899 = vpop.permute.xlu0 %1898
    %1900 = vrot.lane.b32.xlu0 %v1784, 15
    %v1901 = vpop.permute.xlu0 %1900
    %v1902 = vsel %vm201, %v1895, %v1883
    %v1903 = vsel %vm201, %v1897, %v1885
    %v1904 = vsel %vm201, %v1899, %v1887
    %v1905 = vsel %vm201, %v1901, %v1889
    %v1914 = vsel %vm201, %v1883, %v1895
    %v1915 = vsel %vm201, %v1885, %v1897
    %v1916 = vsel %vm201, %v1887, %v1899
    %v1917 = vsel %vm201, %v1889, %v1901
    %v1918 = vmul.f32 %v1914, %v988
    %v1919 = vmul.f32 %v1902, %v992
    %v1920 = vmul.f32 %v1915, %v988
    %v1921 = vmul.f32 %v1903, %v992
    %v1922 = vmul.f32 %v1916, %v988
    %v1923 = vmul.f32 %v1904, %v992
    %v1924 = vmul.f32 %v1917, %v988
    %v1925 = vmul.f32 %v1905, %v992
    %1926 = vrot.lane.b32.xlu0 %v1779, 1
    %v1927 = vpop.permute.xlu0 %1926
    %1928 = vrot.lane.b32.xlu0 %v1781, 1
    %v1929 = vpop.permute.xlu0 %1928
    %1930 = vrot.lane.b32.xlu0 %v1783, 1
    %v1931 = vpop.permute.xlu0 %1930
    %1932 = vrot.lane.b32.xlu0 %v1785, 1
    %v1933 = vpop.permute.xlu0 %1932
    %1938 = vrot.lane.b32.xlu0 %v1778, 1
    %v1939 = vpop.permute.xlu0 %1938
    %1940 = vrot.lane.b32.xlu0 %v1780, 1
    %v1941 = vpop.permute.xlu0 %1940
    %1942 = vrot.lane.b32.xlu0 %v1782, 1
    %v1943 = vpop.permute.xlu0 %1942
    %1944 = vrot.lane.b32.xlu0 %v1784, 1
    %v1945 = vpop.permute.xlu0 %1944
    %v1946 = vsel %vm217, %v1939, %v1927
    %v1947 = vsel %vm217, %v1941, %v1929
    %v1948 = vsel %vm217, %v1943, %v1931
    %v1949 = vsel %vm217, %v1945, %v1933
    %v1958 = vsel %vm217, %v1927, %v1939
    %v1959 = vsel %vm217, %v1929, %v1941
    %v1960 = vsel %vm217, %v1931, %v1943
    %v1961 = vsel %vm217, %v1933, %v1945
    %v1962 = vmul.f32 %v1958, %v1040
    %v1963 = vmul.f32 %v1946, %v1044
    %v1964 = vmul.f32 %v1959, %v1040
    %v1965 = vmul.f32 %v1947, %v1044
    %v1966 = vmul.f32 %v1960, %v1040
    %v1967 = vmul.f32 %v1948, %v1044
    %v1968 = vmul.f32 %v1961, %v1040
    %v1969 = vmul.f32 %v1949, %v1044
    %v1970 = vmul.f32 %v1778, %v1056
    %v1971 = vmul.f32 %v1779, %v1060
    %v1972 = vmul.f32 %v1780, %v1056
    %v1973 = vmul.f32 %v1781, %v1060
    %v1974 = vmul.f32 %v1782, %v1056
    %v1975 = vmul.f32 %v1783, %v1060
    %v1976 = vmul.f32 %v1784, %v1056
    %v1977 = vmul.f32 %v1785, %v1060
    %1978 = vrot.lane.b32.xlu0 %v1778, 127
    %v1979 = vpop.permute.xlu0 %1978
    %1980 = vrot.lane.b32.xlu0 %v1779, 127
    %v1981 = vpop.permute.xlu0 %1980
    %1982 = vrot.lane.b32.xlu0 %v1780, 127
    %v1983 = vpop.permute.xlu0 %1982
    %1984 = vrot.lane.b32.xlu0 %v1781, 127
    %v1985 = vpop.permute.xlu0 %1984
    %1986 = vrot.lane.b32.xlu0 %v1782, 127
    %v1987 = vpop.permute.xlu0 %1986
    %1988 = vrot.lane.b32.xlu0 %v1783, 127
    %v1989 = vpop.permute.xlu0 %1988
    %1990 = vrot.lane.b32.xlu0 %v1784, 127
    %v1991 = vpop.permute.xlu0 %1990
    %1992 = vrot.lane.b32.xlu0 %v1785, 127
    %v1993 = vpop.permute.xlu0 %1992
    %v1994 = vsel %vm249, %v1979, %v1981
    %v1995 = vsel %vm249, %v1983, %v1985
    %v1996 = vsel %vm249, %v1987, %v1989
    %v1997 = vsel %vm249, %v1991, %v1993
    %v2010 = vsel %vm249, %v1981, %v1979
    %v2011 = vsel %vm249, %v1985, %v1983
    %v2012 = vsel %vm249, %v1989, %v1987
    %v2013 = vsel %vm249, %v1993, %v1991
    %v2014 = vmul.f32 %v1994, %v1108
    %v2015 = vmul.f32 %v2010, %v1112
    %v2016 = vmul.f32 %v1995, %v1108
    %v2017 = vmul.f32 %v2011, %v1112
    %v2018 = vmul.f32 %v1996, %v1108
    %v2019 = vmul.f32 %v2012, %v1112
    %v2020 = vmul.f32 %v1997, %v1108
    %v2021 = vmul.f32 %v2013, %v1112
    %2022 = vrot.lane.b32.xlu0 %v1778, 113
    %v2023 = vpop.permute.xlu0 %2022
    %2024 = vrot.lane.b32.xlu0 %v1779, 113
    %v2025 = vpop.permute.xlu0 %2024
    %2026 = vrot.lane.b32.xlu0 %v1780, 113
    %v2027 = vpop.permute.xlu0 %2026
    %2028 = vrot.lane.b32.xlu0 %v1781, 113
    %v2029 = vpop.permute.xlu0 %2028
    %2030 = vrot.lane.b32.xlu0 %v1782, 113
    %v2031 = vpop.permute.xlu0 %2030
    %2032 = vrot.lane.b32.xlu0 %v1783, 113
    %v2033 = vpop.permute.xlu0 %2032
    %2034 = vrot.lane.b32.xlu0 %v1784, 113
    %v2035 = vpop.permute.xlu0 %2034
    %2036 = vrot.lane.b32.xlu0 %v1785, 113
    %v2037 = vpop.permute.xlu0 %2036
    %v2038 = vsel %vm265, %v2023, %v2025
    %v2039 = vsel %vm265, %v2027, %v2029
    %v2040 = vsel %vm265, %v2031, %v2033
    %v2041 = vsel %vm265, %v2035, %v2037
    %v2054 = vsel %vm265, %v2025, %v2023
    %v2055 = vsel %vm265, %v2029, %v2027
    %v2056 = vsel %vm265, %v2033, %v2031
    %v2057 = vsel %vm265, %v2037, %v2035
    %v2058 = vmul.f32 %v2038, %v1160
    %v2059 = vmul.f32 %v2054, %v1164
    %v2060 = vmul.f32 %v2039, %v1160
    %v2061 = vmul.f32 %v2055, %v1164
    %v2062 = vmul.f32 %v2040, %v1160
    %v2063 = vmul.f32 %v2056, %v1164
    %v2064 = vmul.f32 %v2041, %v1160
    %v2065 = vmul.f32 %v2057, %v1164
    %2066 = vrot.lane.b32.xlu0 %v1778, 112
    %v2067 = vpop.permute.xlu0 %2066
    %2068 = vrot.lane.b32.xlu0 %v1779, 112
    %v2069 = vpop.permute.xlu0 %2068
    %2070 = vrot.lane.b32.xlu0 %v1780, 112
    %v2071 = vpop.permute.xlu0 %2070
    %2072 = vrot.lane.b32.xlu0 %v1781, 112
    %v2073 = vpop.permute.xlu0 %2072
    %2074 = vrot.lane.b32.xlu0 %v1782, 112
    %v2075 = vpop.permute.xlu0 %2074
    %2076 = vrot.lane.b32.xlu0 %v1783, 112
    %v2077 = vpop.permute.xlu0 %2076
    %2078 = vrot.lane.b32.xlu0 %v1784, 112
    %v2079 = vpop.permute.xlu0 %2078
    %2080 = vrot.lane.b32.xlu0 %v1785, 112
    %v2081 = vpop.permute.xlu0 %2080
    %v2082 = vsel %vm281, %v2067, %v2069
    %v2083 = vsel %vm281, %v2071, %v2073
    %v2084 = vsel %vm281, %v2075, %v2077
    %v2085 = vsel %vm281, %v2079, %v2081
    %v2098 = vsel %vm281, %v2069, %v2067
    %v2099 = vsel %vm281, %v2073, %v2071
    %v2100 = vsel %vm281, %v2077, %v2075
    %v2101 = vsel %vm281, %v2081, %v2079
    %v2102 = vmul.f32 %v2082, %v1212
    %v2103 = vmul.f32 %v2098, %v1216
    %v2104 = vmul.f32 %v2083, %v1212
    %v2105 = vmul.f32 %v2099, %v1216
    %v2106 = vmul.f32 %v2084, %v1212
    %v2107 = vmul.f32 %v2100, %v1216
    %v2108 = vmul.f32 %v2085, %v1212
    %v2109 = vmul.f32 %v2101, %v1216
    %2110 = vrot.lane.b32.xlu0 %v1778, 111
    %v2111 = vpop.permute.xlu0 %2110
    %2112 = vrot.lane.b32.xlu0 %v1779, 111
    %v2113 = vpop.permute.xlu0 %2112
    %2114 = vrot.lane.b32.xlu0 %v1780, 111
    %v2115 = vpop.permute.xlu0 %2114
    %2116 = vrot.lane.b32.xlu0 %v1781, 111
    %v2117 = vpop.permute.xlu0 %2116
    %2118 = vrot.lane.b32.xlu0 %v1782, 111
    %v2119 = vpop.permute.xlu0 %2118
    %2120 = vrot.lane.b32.xlu0 %v1783, 111
    %v2121 = vpop.permute.xlu0 %2120
    %2122 = vrot.lane.b32.xlu0 %v1784, 111
    %v2123 = vpop.permute.xlu0 %2122
    %2124 = vrot.lane.b32.xlu0 %v1785, 111
    %v2125 = vpop.permute.xlu0 %2124
    %v2126 = vsel %vm297, %v2111, %v2113
    %v2127 = vsel %vm297, %v2115, %v2117
    %v2128 = vsel %vm297, %v2119, %v2121
    %v2129 = vsel %vm297, %v2123, %v2125
    %v2142 = vsel %vm297, %v2113, %v2111
    %v2143 = vsel %vm297, %v2117, %v2115
    %v2144 = vsel %vm297, %v2121, %v2119
    %v2145 = vsel %vm297, %v2125, %v2123
    %v2146 = vmul.f32 %v2126, %v1264
    %v2147 = vmul.f32 %v2142, %v1268
    %v2148 = vmul.f32 %v2127, %v1264
    %v2149 = vmul.f32 %v2143, %v1268
    %v2150 = vmul.f32 %v2128, %v1264
    %v2151 = vmul.f32 %v2144, %v1268
    %v2152 = vmul.f32 %v2129, %v1264
    %v2153 = vmul.f32 %v2145, %v1268
    %2154 = vmatprep.subr.mxu0 %v1831
    %2155 = vmatpush1.msra.mxu0 %v1830
    %2156 = vmatprep.subr.mxu0 %v1833
    %2157 = vmatpush1.msra.mxu0 %v1832
    %2158 = vmatprep.subr.mxu0 %v1835
    %2159 = vmatpush1.msra.mxu0 %v1834
    %2160 = vmatprep.subr.mxu0 %v1837
    %2161 = vmatpush1.msra.mxu0 %v1836
    %2162 = vmatprep.subr.mxu0 %v1875
    %2163 = vmatpush1.msra.mxu0 %v1874
    %2164 = vmatprep.subr.mxu0 %v1877
    %2165 = vmatpush1.msra.mxu0 %v1876
    %2166 = vmatprep.subr.mxu0 %v1879
    %2167 = vmatpush1.msra.mxu0 %v1878
    %2168 = vmatprep.subr.mxu0 %v1881
    %2169 = vmatpush1.msra.mxu0 %v1880
    %2170 = vmatprep.subr.mxu0 %v1919
    %2171 = vmatpush1.msra.mxu0 %v1918
    %2172 = vmatprep.subr.mxu0 %v1921
    %2173 = vmatpush1.msra.mxu0 %v1920
    %2174 = vmatprep.subr.mxu0 %v1923
    %2175 = vmatpush1.msra.mxu0 %v1922
    %2176 = vmatprep.subr.mxu0 %v1925
    %2177 = vmatpush1.msra.mxu0 %v1924
    %2178 = vmatprep.subr.mxu0 %v1963
    %2179 = vmatpush1.msra.mxu0 %v1962
    %2180 = vmatprep.subr.mxu0 %v1965
    %2181 = vmatpush1.msra.mxu0 %v1964
    %2182 = vmatprep.subr.mxu0 %v1967
    %2183 = vmatpush1.msra.mxu0 %v1966
    %2184 = vmatprep.subr.mxu0 %v1969
    %2185 = vmatpush1.msra.mxu0 %v1968
    %2186 = vmatprep.subr.mxu0 %v1971
    %2187 = vmatpush1.msra.mxu0 %v1970
    %2188 = vmatprep.subr.mxu0 %v1973
    %2189 = vmatpush1.msra.mxu0 %v1972
    %2190 = vmatprep.subr.mxu0 %v1975
    %2191 = vmatpush1.msra.mxu0 %v1974
    %2192 = vmatprep.subr.mxu0 %v1977
    %2193 = vmatpush1.msra.mxu0 %v1976
    %2194 = vmatprep.subr.mxu0 %v2015
    %2195 = vmatpush1.msra.mxu0 %v2014
    %2196 = vmatprep.subr.mxu0 %v2017
    %2197 = vmatpush1.msra.mxu0 %v2016
    %2198 = vmatprep.subr.mxu0 %v2019
    %2199 = vmatpush1.msra.mxu0 %v2018
    %2200 = vmatprep.subr.mxu0 %v2021
    %2201 = vmatpush1.msra.mxu0 %v2020
    %2202 = vmatprep.subr.mxu0 %v2059
    %2203 = vmatpush1.msra.mxu0 %v2058
    %2204 = vmatprep.subr.mxu0 %v2061
    %2205 = vmatpush1.msra.mxu0 %v2060
    %2206 = vmatprep.subr.mxu0 %v2063
    %2207 = vmatpush1.msra.mxu0 %v2062
    %2208 = vmatprep.subr.mxu0 %v2065
    %2209 = vmatpush1.msra.mxu0 %v2064
    %2210 = vmatprep.subr.mxu0 %v2103
    %2211 = vmatpush1.msra.mxu0 %v2102
    %2212 = vmatprep.subr.mxu0 %v2105
    %2213 = vmatpush1.msra.mxu0 %v2104
    %2214 = vmatprep.subr.mxu0 %v2107
    %2215 = vmatpush1.msra.mxu0 %v2106
    %2216 = vmatprep.subr.mxu0 %v2109
    %2217 = vmatpush1.msra.mxu0 %v2108
    %2218 = vmatprep.mubr.f32.mxu0 %v502
    %2219 = vmatmul.mubr.f32.gmra.mrb[0].mxu0 %v501
    %v2220 = vpop.f32.mrb[0].mxu0
    %v2221 = vadd.f32 %v1280, %v2220
    %v2222 = vpop.f32.mrb[0].mxu0
    %v2223 = vadd.f32 %v1280, %v2222
    %2224 = vmatprep.mubr.f32.mxu0 %v505
    %2225 = vmatmul.mubr.f32.gmra.mrb[0].mxu0 %v504
    %v2226 = vpop.f32.mrb[0].mxu0
    %v2227 = vadd.f32 %v1285, %v2226
    %v2228 = vpop.f32.mrb[0].mxu0
    %v2229 = vadd.f32 %v1285, %v2228
    %2230 = vmatprep.mubr.f32.mxu0 %v508
    %2231 = vmatmul.mubr.f32.gmra.mrb[0].mxu0 %v507
    %v2232 = vpop.f32.mrb[0].mxu0
    %v2233 = vadd.f32 %v1290, %v2232
    %v2234 = vpop.f32.mrb[0].mxu0
    %v2235 = vadd.f32 %v1290, %v2234
    %2236 = vmatprep.mubr.f32.mxu0 %v511
    %2237 = vmatmul.mubr.f32.gmra.mrb[0].mxu0 %v510
    %v2238 = vpop.f32.mrb[0].mxu0
    %v2239 = vadd.f32 %v1295, %v2238
    %v2240 = vpop.f32.mrb[0].mxu0
    %v2241 = vadd.f32 %v1295, %v2240
    %2242 = vdwg.mxu0
    %2243 = vmatprep.subr.mxu0 %v2147
    %2244 = vmatpush1.msra.mxu0 %v2146
    %2245 = vmatprep.subr.mxu0 %v2149
    %2246 = vmatpush1.msra.mxu0 %v2148
    %2247 = vmatprep.subr.mxu0 %v2151
    %2248 = vmatpush1.msra.mxu0 %v2150
    %2249 = vmatprep.subr.mxu0 %v2153
    %2250 = vmatpush1.msra.mxu0 %v2152
    %2251 = vmatprep.subr.mxu0 0.0
    %2252 = vmatpush1.msra.mxu0 0.0
    %2253 = vmatprep.subr.mxu0 0.0
    %2254 = vmatpush1.msra.mxu0 0.0
    %2255 = vmatprep.subr.mxu0 0.0
    %2256 = vmatpush1.msra.mxu0 0.0
    %2257 = vmatprep.subr.mxu0 0.0
    %2258 = vmatpush1.msra.mxu0 0.0
    %2259 = vmatprep.subr.mxu0 0.0
    %2260 = vmatpush1.msra.mxu0 0.0
    %2261 = vmatprep.subr.mxu0 0.0
    %2262 = vmatpush1.msra.mxu0 0.0
    %2263 = vmatprep.subr.mxu0 0.0
    %2264 = vmatpush1.msra.mxu0 0.0
    %2265 = vmatprep.subr.mxu0 0.0
    %2266 = vmatpush1.msra.mxu0 0.0
    %2267 = vmatprep.subr.mxu0 0.0
    %2268 = vmatpush1.msra.mxu0 0.0
    %2269 = vmatprep.subr.mxu0 0.0
    %2270 = vmatpush1.msra.mxu0 0.0
    %2271 = vmatprep.subr.mxu0 0.0
    %2272 = vmatpush1.msra.mxu0 0.0
    %2273 = vmatprep.subr.mxu0 0.0
    %2274 = vmatpush1.msra.mxu0 0.0
    %2275 = vmatprep.subr.mxu0 0.0
    %2276 = vmatpush1.msra.mxu0 0.0
    %2277 = vmatprep.subr.mxu0 0.0
    %2278 = vmatpush1.msra.mxu0 0.0
    %2279 = vmatprep.subr.mxu0 0.0
    %2280 = vmatpush1.msra.mxu0 0.0
    %2281 = vmatprep.subr.mxu0 0.0
    %2282 = vmatpush1.msra.mxu0 0.0
    %2283 = vmatprep.subr.mxu0 0.0
    %2284 = vmatpush1.msra.mxu0 0.0
    %2285 = vmatprep.subr.mxu0 0.0
    %2286 = vmatpush1.msra.mxu0 0.0
    %2287 = vmatprep.subr.mxu0 0.0
    %2288 = vmatpush1.msra.mxu0 0.0
    %2289 = vmatprep.subr.mxu0 0.0
    %2290 = vmatpush1.msra.mxu0 0.0
    %2291 = vmatprep.subr.mxu0 0.0
    %2292 = vmatpush1.msra.mxu0 0.0
    %2293 = vmatprep.subr.mxu0 0.0
    %2294 = vmatpush1.msra.mxu0 0.0
    %2295 = vmatprep.subr.mxu0 0.0
    %2296 = vmatpush1.msra.mxu0 0.0
    %2297 = vmatprep.subr.mxu0 0.0
    %2298 = vmatpush1.msra.mxu0 0.0
    %2299 = vmatprep.subr.mxu0 0.0
    %2300 = vmatpush1.msra.mxu0 0.0
    %2301 = vmatprep.subr.mxu0 0.0
    %2302 = vmatpush1.msra.mxu0 0.0
    %2303 = vmatprep.subr.mxu0 0.0
    %2304 = vmatpush1.msra.mxu0 0.0
    %2305 = vmatprep.subr.mxu0 0.0
    %2306 = vmatpush1.msra.mxu0 0.0
    %2307 = vmatprep.mubr.f32.mxu0 0.0
    %2308 = vmatmul.mubr.f32.gmra.mrb[0].mxu0 %v1299
    %v2309 = vpop.f32.mrb[0].mxu0
    %v2310 = vadd.f32 %v2221, %v2309
    %v2311 = vpop.f32.mrb[0].mxu0
    %v2312 = vadd.f32 %v2223, %v2311
    %2313 = vmatprep.mubr.f32.mxu0 0.0
    %2314 = vmatmul.mubr.f32.gmra.mrb[0].mxu0 %v1302
    %v2315 = vpop.f32.mrb[0].mxu0
    %v2316 = vadd.f32 %v2227, %v2315
    %v2317 = vpop.f32.mrb[0].mxu0
    %v2318 = vadd.f32 %v2229, %v2317
    %2319 = vmatprep.mubr.f32.mxu0 0.0
    %2320 = vmatmul.mubr.f32.gmra.mrb[0].mxu0 %v1305
    %v2321 = vpop.f32.mrb[0].mxu0
    %v2322 = vadd.f32 %v2233, %v2321
    %v2323 = vpop.f32.mrb[0].mxu0
    %v2324 = vadd.f32 %v2235, %v2323
    %2325 = vmatprep.mubr.f32.mxu0 0.0
    %2326 = vmatmul.mubr.f32.gmra.mrb[0].mxu0 %v1308
    %v2327 = vpop.f32.mrb[0].mxu0
    %v2328 = vadd.f32 %v2239, %v2327
    %v2329 = vpop.f32.mrb[0].mxu0
    %v2330 = vadd.f32 %v2241, %v2329
    %2331 = vdwg.mxu0
    %v2332 = vadd.f32 %v2310, %v479
    %v2333 = vadd.f32 %v2312, %v481
    %v2334 = vadd.f32 %v2316, %v485
    %v2335 = vadd.f32 %v2318, %v487
    %v2336 = vadd.f32 %v2322, %v491
    %v2337 = vadd.f32 %v2324, %v493
    %v2338 = vadd.f32 %v2328, %v497
    %v2339 = vadd.f32 %v2330, %v499
    %v2340 = vld [vmem:[%s3] sm:$0xff]
    %v2341 = vld [vmem:[%s3 + $0x8] sm:$0xff]
    %v2342 = vld [vmem:[%s3 + $0x10] sm:$0xff]
    %v2343 = vld [vmem:[%s3 + $0x18] sm:$0xff]
    %v2345 = vsel %vm1297, %v2340, 0
    %v2348 = vsel %vm1297, %v2341, 0
    %v2351 = vsel %vm1297, %v2342, 0
    %v2354 = vsel %vm1297, %v2343, 0
    %2356 = vmatprep.subr.mxu0 0.0
    %2357 = vmatpush1.msra.mxu0 %v2332
    %2358 = vmatprep.subr.mxu0 0.0
    %2359 = vmatpush1.msra.mxu0 %v2334
    %2360 = vmatprep.subr.mxu0 0.0
    %2361 = vmatpush1.msra.mxu0 %v2336
    %2362 = vmatprep.subr.mxu0 0.0
    %2363 = vmatpush1.msra.mxu0 %v2338
    %2364 = vmatprep.subr.mxu0 0.0
    %2365 = vmatpush1.msra.mxu0 0.0
    %2366 = vmatprep.subr.mxu0 0.0
    %2367 = vmatpush1.msra.mxu0 0.0
    %2368 = vmatprep.subr.mxu0 0.0
    %2369 = vmatpush1.msra.mxu0 0.0
    %2370 = vmatprep.subr.mxu0 0.0
    %2371 = vmatpush1.msra.mxu0 0.0
    %2372 = vmatprep.subr.mxu0 0.0
    %2373 = vmatpush1.msra.mxu0 0.0
    %2374 = vmatprep.subr.mxu0 0.0
    %2375 = vmatpush1.msra.mxu0 0.0
    %2376 = vmatprep.subr.mxu0 0.0
    %2377 = vmatpush1.msra.mxu0 0.0
    %2378 = vmatprep.subr.mxu0 0.0
    %2379 = vmatpush1.msra.mxu0 0.0
    %2380 = vmatprep.subr.mxu0 0.0
    %2381 = vmatpush1.msra.mxu0 0.0
    %2382 = vmatprep.subr.mxu0 0.0
    %2383 = vmatpush1.msra.mxu0 0.0
    %2384 = vmatprep.subr.mxu0 0.0
    %2385 = vmatpush1.msra.mxu0 0.0
    %2386 = vmatprep.subr.mxu0 0.0
    %2387 = vmatpush1.msra.mxu0 0.0
    %2388 = vmatprep.subr.mxu0 0.0
    %2389 = vmatpush1.msra.mxu0 0.0
    %2390 = vmatprep.subr.mxu0 0.0
    %2391 = vmatpush1.msra.mxu0 0.0
    %2392 = vmatprep.subr.mxu0 0.0
    %2393 = vmatpush1.msra.mxu0 0.0
    %2394 = vmatprep.subr.mxu0 0.0
    %2395 = vmatpush1.msra.mxu0 0.0
    %2396 = vmatprep.subr.mxu0 0.0
    %2397 = vmatpush1.msra.mxu0 0.0
    %2398 = vmatprep.subr.mxu0 0.0
    %2399 = vmatpush1.msra.mxu0 0.0
    %2400 = vmatprep.subr.mxu0 0.0
    %2401 = vmatpush1.msra.mxu0 0.0
    %2402 = vmatprep.subr.mxu0 0.0
    %2403 = vmatpush1.msra.mxu0 0.0
    %2404 = vmatprep.subr.mxu0 0.0
    %2405 = vmatpush1.msra.mxu0 0.0
    %2406 = vmatprep.subr.mxu0 0.0
    %2407 = vmatpush1.msra.mxu0 0.0
    %2408 = vmatprep.subr.mxu0 0.0
    %2409 = vmatpush1.msra.mxu0 0.0
    %2410 = vmatprep.subr.mxu0 0.0
    %2411 = vmatpush1.msra.mxu0 0.0
    %2412 = vmatprep.subr.mxu0 0.0
    %2413 = vmatpush1.msra.mxu0 0.0
    %2414 = vmatprep.subr.mxu0 0.0
    %2415 = vmatpush1.msra.mxu0 0.0
    %2416 = vmatprep.subr.mxu0 0.0
    %2417 = vmatpush1.msra.mxu0 0.0
    %2418 = vmatprep.subr.mxu0 0.0
    %2419 = vmatpush1.msra.mxu0 0.0
    %2420 = vmatprep.mubr.f32.mxu0 0.0
    %2421 = vmatmul.mubr.f32.gmra.mrb[0].mxu0 %v2345
    %v2422 = vpop.f32.mrb[0].mxu0
    %v2423 = vadd.f32 0.0, %v2422
    %v2424 = vpop.f32.mrb[0].mxu0
    %2425 = vmatprep.mubr.f32.mxu0 0.0
    %2426 = vmatmul.mubr.f32.gmra.mrb[0].mxu0 %v2348
    %v2427 = vpop.f32.mrb[0].mxu0
    %v2428 = vadd.f32 0.0, %v2427
    %v2429 = vpop.f32.mrb[0].mxu0
    %2430 = vmatprep.mubr.f32.mxu0 0.0
    %2431 = vmatmul.mubr.f32.gmra.mrb[0].mxu0 %v2351
    %v2432 = vpop.f32.mrb[0].mxu0
    %v2433 = vadd.f32 0.0, %v2432
    %v2434 = vpop.f32.mrb[0].mxu0
    %2435 = vmatprep.mubr.f32.mxu0 0.0
    %2436 = vmatmul.mubr.f32.gmra.mrb[0].mxu0 %v2354
    %v2437 = vpop.f32.mrb[0].mxu0
    %v2438 = vadd.f32 0.0, %v2437
    %v2439 = vpop.f32.mrb[0].mxu0
    %2440 = vdwg.mxu0
    %2441 = vmatprep.subr.mxu0 0.0
    %2442 = vmatpush1.msra.mxu0 %v2333
    %2443 = vmatprep.subr.mxu0 0.0
    %2444 = vmatpush1.msra.mxu0 %v2335
    %2445 = vmatprep.subr.mxu0 0.0
    %2446 = vmatpush1.msra.mxu0 %v2337
    %2447 = vmatprep.subr.mxu0 0.0
    %2448 = vmatpush1.msra.mxu0 %v2339
    %2449 = vmatprep.subr.mxu0 0.0
    %2450 = vmatpush1.msra.mxu0 0.0
    %2451 = vmatprep.subr.mxu0 0.0
    %2452 = vmatpush1.msra.mxu0 0.0
    %2453 = vmatprep.subr.mxu0 0.0
    %2454 = vmatpush1.msra.mxu0 0.0
    %2455 = vmatprep.subr.mxu0 0.0
    %2456 = vmatpush1.msra.mxu0 0.0
    %2457 = vmatprep.subr.mxu0 0.0
    %2458 = vmatpush1.msra.mxu0 0.0
    %2459 = vmatprep.subr.mxu0 0.0
    %2460 = vmatpush1.msra.mxu0 0.0
    %2461 = vmatprep.subr.mxu0 0.0
    %2462 = vmatpush1.msra.mxu0 0.0
    %2463 = vmatprep.subr.mxu0 0.0
    %2464 = vmatpush1.msra.mxu0 0.0
    %2465 = vmatprep.subr.mxu0 0.0
    %2466 = vmatpush1.msra.mxu0 0.0
    %2467 = vmatprep.subr.mxu0 0.0
    %2468 = vmatpush1.msra.mxu0 0.0
    %2469 = vmatprep.subr.mxu0 0.0
    %2470 = vmatpush1.msra.mxu0 0.0
    %2471 = vmatprep.subr.mxu0 0.0
    %2472 = vmatpush1.msra.mxu0 0.0
    %2473 = vmatprep.subr.mxu0 0.0
    %2474 = vmatpush1.msra.mxu0 0.0
    %2475 = vmatprep.subr.mxu0 0.0
    %2476 = vmatpush1.msra.mxu0 0.0
    %2477 = vmatprep.subr.mxu0 0.0
    %2478 = vmatpush1.msra.mxu0 0.0
    %2479 = vmatprep.subr.mxu0 0.0
    %2480 = vmatpush1.msra.mxu0 0.0
    %2481 = vmatprep.subr.mxu0 0.0
    %2482 = vmatpush1.msra.mxu0 0.0
    %2483 = vmatprep.subr.mxu0 0.0
    %2484 = vmatpush1.msra.mxu0 0.0
    %2485 = vmatprep.subr.mxu0 0.0
    %2486 = vmatpush1.msra.mxu0 0.0
    %2487 = vmatprep.subr.mxu0 0.0
    %2488 = vmatpush1.msra.mxu0 0.0
    %2489 = vmatprep.subr.mxu0 0.0
    %2490 = vmatpush1.msra.mxu0 0.0
    %2491 = vmatprep.subr.mxu0 0.0
    %2492 = vmatpush1.msra.mxu0 0.0
    %2493 = vmatprep.subr.mxu0 0.0
    %2494 = vmatpush1.msra.mxu0 0.0
    %2495 = vmatprep.subr.mxu0 0.0
    %2496 = vmatpush1.msra.mxu0 0.0
    %2497 = vmatprep.subr.mxu0 0.0
    %2498 = vmatpush1.msra.mxu0 0.0
    %2499 = vmatprep.subr.mxu0 0.0
    %2500 = vmatpush1.msra.mxu0 0.0
    %2501 = vmatprep.subr.mxu0 0.0
    %2502 = vmatpush1.msra.mxu0 0.0
    %2503 = vmatprep.subr.mxu0 0.0
    %2504 = vmatpush1.msra.mxu0 0.0
    %2505 = vmatprep.mubr.f32.mxu0 0.0
    %2506 = vmatmul.mubr.f32.gmra.mrb[0].mxu0 %v2345
    %v2507 = vpop.f32.mrb[0].mxu0
    %v2508 = vadd.f32 0.0, %v2507
    %v2509 = vpop.f32.mrb[0].mxu0
    %2510 = vmatprep.mubr.f32.mxu0 0.0
    %2511 = vmatmul.mubr.f32.gmra.mrb[0].mxu0 %v2348
    %v2512 = vpop.f32.mrb[0].mxu0
    %v2513 = vadd.f32 0.0, %v2512
    %v2514 = vpop.f32.mrb[0].mxu0
    %2515 = vmatprep.mubr.f32.mxu0 0.0
    %2516 = vmatmul.mubr.f32.gmra.mrb[0].mxu0 %v2351
    %v2517 = vpop.f32.mrb[0].mxu0
    %v2518 = vadd.f32 0.0, %v2517
    %v2519 = vpop.f32.mrb[0].mxu0
    %2520 = vmatprep.mubr.f32.mxu0 0.0
    %2521 = vmatmul.mubr.f32.gmra.mrb[0].mxu0 %v2354
    %v2522 = vpop.f32.mrb[0].mxu0
    %v2523 = vadd.f32 0.0, %v2522
    %v2524 = vpop.f32.mrb[0].mxu0
    %2525 = vdwg.mxu0
    %v2526 = vld [vmem:[%s10] sm:$0xff]
    %v2527 = vld [vmem:[%s10 + $0x8] sm:$0xff]
    %v2528 = vld [vmem:[%s10 + $0x10] sm:$0xff]
    %v2529 = vld [vmem:[%s10 + $0x18] sm:$0xff]
    %v2530 = vld [vmem:[%s10 + $0x20] sm:$0xff]
    %v2531 = vld [vmem:[%s10 + $0x28] sm:$0xff]
    %v2532 = vld [vmem:[%s10 + $0x30] sm:$0xff]
    %v2533 = vld [vmem:[%s10 + $0x38] sm:$0xff]
    %v2534 = vld [vmem:[%s10 + $0x40] sm:$0xff]
    %v2535 = vld [vmem:[%s10 + $0x48] sm:$0xff]
    %v2536 = vld [vmem:[%s10 + $0x50] sm:$0xff]
    %v2537 = vld [vmem:[%s10 + $0x58] sm:$0xff]
    %v2538 = vld [vmem:[%s10 + $0x60] sm:$0xff]
    %v2539 = vld [vmem:[%s10 + $0x68] sm:$0xff]
    %v2540 = vld [vmem:[%s10 + $0x70] sm:$0xff]
    %v2541 = vld [vmem:[%s10 + $0x78] sm:$0xff]
    %v2542 = vld [vmem:[%s10 + $0x80] sm:$0xff]
    %v2543 = vld [vmem:[%s10 + $0x88] sm:$0xff]
    %v2544 = vld [vmem:[%s10 + $0x90] sm:$0xff]
    %v2545 = vld [vmem:[%s10 + $0x98] sm:$0xff]
    %v2546 = vld [vmem:[%s10 + $0xa0] sm:$0xff]
    %v2547 = vld [vmem:[%s10 + $0xa8] sm:$0xff]
    %v2548 = vld [vmem:[%s10 + $0xb0] sm:$0xff]
    %v2549 = vld [vmem:[%s10 + $0xb8] sm:$0xff]
    %v2550 = vld [vmem:[%s10 + $0xc0] sm:$0xff]
    %v2551 = vld [vmem:[%s10 + $0xc8] sm:$0xff]
    %v2552 = vld [vmem:[%s10 + $0xd0] sm:$0xff]
    %v2553 = vld [vmem:[%s10 + $0xd8] sm:$0xff]
    %v2554 = vld [vmem:[%s10 + $0xe0] sm:$0xff]
    %v2555 = vld [vmem:[%s10 + $0xe8] sm:$0xff]
    %v2556 = vld [vmem:[%s10 + $0xf0] sm:$0xff]
    %v2557 = vld [vmem:[%s10 + $0xf8] sm:$0xff]
    %v2558 = vld [vmem:[%s10 + $0x100] sm:$0xff]
    %v2559 = vld [vmem:[%s10 + $0x108] sm:$0xff]
    %v2560 = vld [vmem:[%s10 + $0x110] sm:$0xff]
    %v2561 = vld [vmem:[%s10 + $0x118] sm:$0xff]
    %v2562 = vld [vmem:[%s10 + $0x120] sm:$0xff]
    %v2563 = vld [vmem:[%s10 + $0x128] sm:$0xff]
    %v2564 = vld [vmem:[%s10 + $0x130] sm:$0xff]
    %v2565 = vld [vmem:[%s10 + $0x138] sm:$0xff]
    %v2566 = vld [vmem:[%s10 + $0x140] sm:$0xff]
    %v2567 = vld [vmem:[%s10 + $0x148] sm:$0xff]
    %v2568 = vld [vmem:[%s10 + $0x150] sm:$0xff]
    %v2569 = vld [vmem:[%s10 + $0x158] sm:$0xff]
    %v2570 = vld [vmem:[%s10 + $0x160] sm:$0xff]
    %v2571 = vld [vmem:[%s10 + $0x168] sm:$0xff]
    %v2572 = vld [vmem:[%s10 + $0x170] sm:$0xff]
    %v2573 = vld [vmem:[%s10 + $0x178] sm:$0xff]
    %v2574 = vld [vmem:[%s10 + $0x180] sm:$0xff]
    %v2575 = vld [vmem:[%s10 + $0x188] sm:$0xff]
    %v2576 = vld [vmem:[%s10 + $0x190] sm:$0xff]
    %v2577 = vld [vmem:[%s10 + $0x198] sm:$0xff]
    %v2578 = vld [vmem:[%s10 + $0x1a0] sm:$0xff]
    %v2579 = vld [vmem:[%s10 + $0x1a8] sm:$0xff]
    %v2580 = vld [vmem:[%s10 + $0x1b0] sm:$0xff]
    %v2581 = vld [vmem:[%s10 + $0x1b8] sm:$0xff]
    %v2582 = vld [vmem:[%s10 + $0x1c0] sm:$0xff]
    %v2583 = vld [vmem:[%s10 + $0x1c8] sm:$0xff]
    %v2584 = vld [vmem:[%s10 + $0x1d0] sm:$0xff]
    %v2585 = vld [vmem:[%s10 + $0x1d8] sm:$0xff]
    %v2586 = vld [vmem:[%s10 + $0x1e0] sm:$0xff]
    %v2587 = vld [vmem:[%s10 + $0x1e8] sm:$0xff]
    %v2588 = vld [vmem:[%s10 + $0x1f0] sm:$0xff]
    %v2589 = vld [vmem:[%s10 + $0x1f8] sm:$0xff]
    %v2590 = vld [vmem:[%s11] sm:$0x1]
    %v2592 = vlaneseq
    %v2593 = vshrl.u32 %v2592, 7
    %v2594 = vsub.s32 0, %v2593
    %v2595 = vrot.slane %v2590, %v2594
    %2597 = vmatprep.subr.mxu0 0.0
    %2598 = vmatpush1.msra.mxu0 %v2526
    %2599 = vmatprep.subr.mxu0 0.0
    %2600 = vmatpush1.msra.mxu0 %v2527
    %2601 = vmatprep.subr.mxu0 0.0
    %2602 = vmatpush1.msra.mxu0 %v2528
    %2603 = vmatprep.subr.mxu0 0.0
    %2604 = vmatpush1.msra.mxu0 %v2529
    %2605 = vmatprep.subr.mxu0 0.0
    %2606 = vmatpush1.msra.mxu0 %v2530
    %2607 = vmatprep.subr.mxu0 0.0
    %2608 = vmatpush1.msra.mxu0 %v2531
    %2609 = vmatprep.subr.mxu0 0.0
    %2610 = vmatpush1.msra.mxu0 %v2532
    %2611 = vmatprep.subr.mxu0 0.0
    %2612 = vmatpush1.msra.mxu0 %v2533
    %2613 = vmatprep.subr.mxu0 0.0
    %2614 = vmatpush1.msra.mxu0 %v2534
    %2615 = vmatprep.subr.mxu0 0.0
    %2616 = vmatpush1.msra.mxu0 %v2535
    %2617 = vmatprep.subr.mxu0 0.0
    %2618 = vmatpush1.msra.mxu0 %v2536
    %2619 = vmatprep.subr.mxu0 0.0
    %2620 = vmatpush1.msra.mxu0 %v2537
    %2621 = vmatprep.subr.mxu0 0.0
    %2622 = vmatpush1.msra.mxu0 %v2538
    %2623 = vmatprep.subr.mxu0 0.0
    %2624 = vmatpush1.msra.mxu0 %v2539
    %2625 = vmatprep.subr.mxu0 0.0
    %2626 = vmatpush1.msra.mxu0 %v2540
    %2627 = vmatprep.subr.mxu0 0.0
    %2628 = vmatpush1.msra.mxu0 %v2541
    %2629 = vmatprep.subr.mxu0 0.0
    %2630 = vmatpush1.msra.mxu0 %v2542
    %2631 = vmatprep.subr.mxu0 0.0
    %2632 = vmatpush1.msra.mxu0 %v2543
    %2633 = vmatprep.subr.mxu0 0.0
    %2634 = vmatpush1.msra.mxu0 %v2544
    %2635 = vmatprep.subr.mxu0 0.0
    %2636 = vmatpush1.msra.mxu0 %v2545
    %2637 = vmatprep.subr.mxu0 0.0
    %2638 = vmatpush1.msra.mxu0 %v2546
    %2639 = vmatprep.subr.mxu0 0.0
    %2640 = vmatpush1.msra.mxu0 %v2547
    %2641 = vmatprep.subr.mxu0 0.0
    %2642 = vmatpush1.msra.mxu0 %v2548
    %2643 = vmatprep.subr.mxu0 0.0
    %2644 = vmatpush1.msra.mxu0 %v2549
    %2645 = vmatprep.subr.mxu0 0.0
    %2646 = vmatpush1.msra.mxu0 %v2550
    %2647 = vmatprep.subr.mxu0 0.0
    %2648 = vmatpush1.msra.mxu0 %v2551
    %2649 = vmatprep.subr.mxu0 0.0
    %2650 = vmatpush1.msra.mxu0 %v2552
    %2651 = vmatprep.subr.mxu0 0.0
    %2652 = vmatpush1.msra.mxu0 %v2553
    %2653 = vmatprep.subr.mxu0 0.0
    %2654 = vmatpush1.msra.mxu0 %v2554
    %2655 = vmatprep.subr.mxu0 0.0
    %2656 = vmatpush1.msra.mxu0 %v2555
    %2657 = vmatprep.subr.mxu0 0.0
    %2658 = vmatpush1.msra.mxu0 %v2556
    %2659 = vmatprep.subr.mxu0 0.0
    %2660 = vmatpush1.msra.mxu0 %v2557
    %2661 = vmatprep.mubr.f32.mxu0 %v2428
    %2662 = vmatmul.mubr.f32.gmra.mrb[0].mxu0 %v2423
    %v2663 = vpop.f32.mrb[0].mxu0
    %v2664 = vadd.f32 %v2595, %v2663
    %v2665 = vpop.f32.mrb[0].mxu0
    %2666 = vmatprep.mubr.f32.mxu0 %v2513
    %2667 = vmatmul.mubr.f32.gmra.mrb[0].mxu0 %v2508
    %v2668 = vpop.f32.mrb[0].mxu0
    %v2669 = vadd.f32 %v2595, %v2668
    %v2670 = vpop.f32.mrb[0].mxu0
    %2671 = vdwg.mxu0
    %2672 = vmatprep.subr.mxu0 0.0
    %2673 = vmatpush1.msra.mxu0 %v2558
    %2674 = vmatprep.subr.mxu0 0.0
    %2675 = vmatpush1.msra.mxu0 %v2559
    %2676 = vmatprep.subr.mxu0 0.0
    %2677 = vmatpush1.msra.mxu0 %v2560
    %2678 = vmatprep.subr.mxu0 0.0
    %2679 = vmatpush1.msra.mxu0 %v2561
    %2680 = vmatprep.subr.mxu0 0.0
    %2681 = vmatpush1.msra.mxu0 %v2562
    %2682 = vmatprep.subr.mxu0 0.0
    %2683 = vmatpush1.msra.mxu0 %v2563
    %2684 = vmatprep.subr.mxu0 0.0
    %2685 = vmatpush1.msra.mxu0 %v2564
    %2686 = vmatprep.subr.mxu0 0.0
    %2687 = vmatpush1.msra.mxu0 %v2565
    %2688 = vmatprep.subr.mxu0 0.0
    %2689 = vmatpush1.msra.mxu0 %v2566
    %2690 = vmatprep.subr.mxu0 0.0
    %2691 = vmatpush1.msra.mxu0 %v2567
    %2692 = vmatprep.subr.mxu0 0.0
    %2693 = vmatpush1.msra.mxu0 %v2568
    %2694 = vmatprep.subr.mxu0 0.0
    %2695 = vmatpush1.msra.mxu0 %v2569
    %2696 = vmatprep.subr.mxu0 0.0
    %2697 = vmatpush1.msra.mxu0 %v2570
    %2698 = vmatprep.subr.mxu0 0.0
    %2699 = vmatpush1.msra.mxu0 %v2571
    %2700 = vmatprep.subr.mxu0 0.0
    %2701 = vmatpush1.msra.mxu0 %v2572
    %2702 = vmatprep.subr.mxu0 0.0
    %2703 = vmatpush1.msra.mxu0 %v2573
    %2704 = vmatprep.subr.mxu0 0.0
    %2705 = vmatpush1.msra.mxu0 %v2574
    %2706 = vmatprep.subr.mxu0 0.0
    %2707 = vmatpush1.msra.mxu0 %v2575
    %2708 = vmatprep.subr.mxu0 0.0
    %2709 = vmatpush1.msra.mxu0 %v2576
    %2710 = vmatprep.subr.mxu0 0.0
    %2711 = vmatpush1.msra.mxu0 %v2577
    %2712 = vmatprep.subr.mxu0 0.0
    %2713 = vmatpush1.msra.mxu0 %v2578
    %2714 = vmatprep.subr.mxu0 0.0
    %2715 = vmatpush1.msra.mxu0 %v2579
    %2716 = vmatprep.subr.mxu0 0.0
    %2717 = vmatpush1.msra.mxu0 %v2580
    %2718 = vmatprep.subr.mxu0 0.0
    %2719 = vmatpush1.msra.mxu0 %v2581
    %2720 = vmatprep.subr.mxu0 0.0
    %2721 = vmatpush1.msra.mxu0 %v2582
    %2722 = vmatprep.subr.mxu0 0.0
    %2723 = vmatpush1.msra.mxu0 %v2583
    %2724 = vmatprep.subr.mxu0 0.0
    %2725 = vmatpush1.msra.mxu0 %v2584
    %2726 = vmatprep.subr.mxu0 0.0
    %2727 = vmatpush1.msra.mxu0 %v2585
    %2728 = vmatprep.subr.mxu0 0.0
    %2729 = vmatpush1.msra.mxu0 %v2586
    %2730 = vmatprep.subr.mxu0 0.0
    %2731 = vmatpush1.msra.mxu0 %v2587
    %2732 = vmatprep.subr.mxu0 0.0
    %2733 = vmatpush1.msra.mxu0 %v2588
    %2734 = vmatprep.subr.mxu0 0.0
    %2735 = vmatpush1.msra.mxu0 %v2589
    %2736 = vmatprep.mubr.f32.mxu0 %v2438
    %2737 = vmatmul.mubr.f32.gmra.mrb[0].mxu0 %v2433
    %v2738 = vpop.f32.mrb[0].mxu0
    %v2739 = vadd.f32 %v2664, %v2738
    %v2740 = vpop.f32.mrb[0].mxu0
    %2741 = vmatprep.mubr.f32.mxu0 %v2523
    %2742 = vmatmul.mubr.f32.gmra.mrb[0].mxu0 %v2518
    %v2743 = vpop.f32.mrb[0].mxu0
    %v2744 = vadd.f32 %v2669, %v2743
    %v2745 = vpop.f32.mrb[0].mxu0
    %2746 = vdwg.mxu0
    %v2747 = vsel %vm1297, %v2739, 0.0
    %2748 = vadd.xlane.f32.xlu0 %v2747
    %v2749 = vpop.xlane.xlu0 %2748
    %v2750 = vsel %vm1297, %v2744, 0.0
    %2751 = vadd.xlane.f32.xlu0 %v2750
    %v2752 = vpop.xlane.xlu0 %2751
    %v2753 = vrcp.pop 32.0
    %v2754 = vmul.f32 %v2749, %v2753
    %v2755 = vmul.f32 %v2752, %v2753
    %v2756 = vsub.f32 %v2739, %v2754
    %v2757 = vsub.f32 %v2744, %v2755
    %v2758 = vmul.f32 %v2756, %v2756
    %v2759 = vmul.f32 %v2757, %v2757
    %v2760 = vsel %vm1297, %v2758, 0.0
    %2761 = vadd.xlane.f32.xlu0 %v2760
    %v2762 = vpop.xlane.xlu0 %2761
    %v2763 = vsel %vm1297, %v2759, 0.0
    %2764 = vadd.xlane.f32.xlu0 %v2763
    %v2765 = vpop.xlane.xlu0 %2764
    %v2766 = vmul.f32 %v2762, %v2753
    %v2767 = vmul.f32 %v2765, %v2753
    %v2768 = vadd.f32 %v2766, 1e-05
    %v2769 = vadd.f32 %v2767, 1e-05
    %v2770 = vrsqrt.pop %v2768
    %v2771 = vrsqrt.pop %v2769
    %v2772 = vmul.f32 %v2756, %v2770
    %v2773 = vmul.f32 %v2757, %v2771
    %v2774 = vld [vmem:[%s12] sm:$0x1]
    %v2776 = vlaneseq
    %v2777 = vshrl.u32 %v2776, 7
    %v2778 = vsub.s32 0, %v2777
    %v2779 = vrot.slane %v2774, %v2778
    %v2781 = vmul.f32 %v2772, %v2779
    %v2782 = vmul.f32 %v2773, %v2779
    %v2783 = vld [vmem:[%s13] sm:$0x1]
    %v2785 = vlaneseq
    %v2786 = vshrl.u32 %v2785, 7
    %v2787 = vsub.s32 0, %v2786
    %v2788 = vrot.slane %v2783, %v2787
    %v2790 = vadd.f32 %v2781, %v2788
    %v2791 = vadd.f32 %v2782, %v2788
    %v2792 = vmul.f32 %v2790, 0.5
    %v2793 = vmul.f32 %v2791, 0.5
    %v2794 = vmul.f32 %v2790, 0.044715
    %v2795 = vmul.f32 %v2791, 0.044715
    %v2796 = vmul.f32 %v2794, %v2790
    %v2797 = vmul.f32 %v2795, %v2791
    %v2798 = vmul.f32 %v2796, %v2790
    %v2799 = vmul.f32 %v2797, %v2791
    %v2800 = vadd.f32 %v2790, %v2798
    %v2801 = vadd.f32 %v2791, %v2799
    %v2802 = vmul.f32 %v2800, 0.7978846
    %v2803 = vmul.f32 %v2801, 0.7978846
    %v2804 = vtanh.pop %v2802
    %v2805 = vtanh.pop %v2803
    %v2806 = vadd.f32 %v2804, 1.0
    %v2807 = vadd.f32 %v2805, 1.0
    %v2808 = vmul.f32 %v2792, %v2806
    %v2809 = vmul.f32 %v2793, %v2807
    %v2810 = vld [vmem:[%s14] sm:$0xff]
    %v2811 = vld [vmem:[%s14 + $0x8] sm:$0xff]
    %v2812 = vld [vmem:[%s14 + $0x10] sm:$0xff]
    %v2813 = vld [vmem:[%s14 + $0x18] sm:$0xff]
    %v2814 = vld [vmem:[%s15] sm:$0x1]
    %v2816 = vlaneseq
    %v2817 = vshrl.u32 %v2816, 7
    %v2818 = vsub.s32 0, %v2817
    %v2819 = vrot.slane %v2814, %v2818
    %v2822 = vsel %vm1297, %v2808, 0
    %v2825 = vsel %vm1297, %v2809, 0
    %2827 = vmatprep.subr.mxu0 0.0
    %2828 = vmatpush1.msra.mxu0 %v2810
    %2829 = vmatprep.subr.mxu0 0.0
    %2830 = vmatpush1.msra.mxu0 %v2811
    %2831 = vmatprep.subr.mxu0 0.0
    %2832 = vmatpush1.msra.mxu0 %v2812
    %2833 = vmatprep.subr.mxu0 0.0
    %2834 = vmatpush1.msra.mxu0 %v2813
    %2835 = vmatprep.subr.mxu0 0.0
    %2836 = vmatpush1.msra.mxu0 0.0
    %2837 = vmatprep.subr.mxu0 0.0
    %2838 = vmatpush1.msra.mxu0 0.0
    %2839 = vmatprep.subr.mxu0 0.0
    %2840 = vmatpush1.msra.mxu0 0.0
    %2841 = vmatprep.subr.mxu0 0.0
    %2842 = vmatpush1.msra.mxu0 0.0
    %2843 = vmatprep.subr.mxu0 0.0
    %2844 = vmatpush1.msra.mxu0 0.0
    %2845 = vmatprep.subr.mxu0 0.0
    %2846 = vmatpush1.msra.mxu0 0.0
    %2847 = vmatprep.subr.mxu0 0.0
    %2848 = vmatpush1.msra.mxu0 0.0
    %2849 = vmatprep.subr.mxu0 0.0
    %2850 = vmatpush1.msra.mxu0 0.0
    %2851 = vmatprep.subr.mxu0 0.0
    %2852 = vmatpush1.msra.mxu0 0.0
    %2853 = vmatprep.subr.mxu0 0.0
    %2854 = vmatpush1.msra.mxu0 0.0
    %2855 = vmatprep.subr.mxu0 0.0
    %2856 = vmatpush1.msra.mxu0 0.0
    %2857 = vmatprep.subr.mxu0 0.0
    %2858 = vmatpush1.msra.mxu0 0.0
    %2859 = vmatprep.subr.mxu0 0.0
    %2860 = vmatpush1.msra.mxu0 0.0
    %2861 = vmatprep.subr.mxu0 0.0
    %2862 = vmatpush1.msra.mxu0 0.0
    %2863 = vmatprep.subr.mxu0 0.0
    %2864 = vmatpush1.msra.mxu0 0.0
    %2865 = vmatprep.subr.mxu0 0.0
    %2866 = vmatpush1.msra.mxu0 0.0
    %2867 = vmatprep.subr.mxu0 0.0
    %2868 = vmatpush1.msra.mxu0 0.0
    %2869 = vmatprep.subr.mxu0 0.0
    %2870 = vmatpush1.msra.mxu0 0.0
    %2871 = vmatprep.subr.mxu0 0.0
    %2872 = vmatpush1.msra.mxu0 0.0
    %2873 = vmatprep.subr.mxu0 0.0
    %2874 = vmatpush1.msra.mxu0 0.0
    %2875 = vmatprep.subr.mxu0 0.0
    %2876 = vmatpush1.msra.mxu0 0.0
    %2877 = vmatprep.subr.mxu0 0.0
    %2878 = vmatpush1.msra.mxu0 0.0
    %2879 = vmatprep.subr.mxu0 0.0
    %2880 = vmatpush1.msra.mxu0 0.0
    %2881 = vmatprep.subr.mxu0 0.0
    %2882 = vmatpush1.msra.mxu0 0.0
    %2883 = vmatprep.subr.mxu0 0.0
    %2884 = vmatpush1.msra.mxu0 0.0
    %2885 = vmatprep.subr.mxu0 0.0
    %2886 = vmatpush1.msra.mxu0 0.0
    %2887 = vmatprep.subr.mxu0 0.0
    %2888 = vmatpush1.msra.mxu0 0.0
    %2889 = vmatprep.subr.mxu0 0.0
    %2890 = vmatpush1.msra.mxu0 0.0
    %2891 = vmatprep.mubr.f32.mxu0 0.0
    %2892 = vmatmul.mubr.f32.gmra.mrb[0].mxu0 %v2822
    %v2893 = vpop.f32.mrb[0].mxu0
    %v2894 = vadd.f32 %v2819, %v2893
    %v2895 = vpop.f32.mrb[0].mxu0
    %2896 = vmatprep.mubr.f32.mxu0 0.0
    %2897 = vmatmul.mubr.f32.gmra.mrb[0].mxu0 %v2825
    %v2898 = vpop.f32.mrb[0].mxu0
    %v2899 = vadd.f32 %v2819, %v2898
    %v2900 = vpop.f32.mrb[0].mxu0
    %2901 = vdwg.mxu0
    %v2902 = vld [vmem:[%s16] sm:$0xff]
    %v2903 = vld [vmem:[%s16 + $0x8] sm:$0xff]
    %v2904 = vld [vmem:[%s16 + $0x10] sm:$0xff]
    %v2905 = vld [vmem:[%s16 + $0x18] sm:$0xff]
    %v2906 = vld [vmem:[%s17] sm:$0x1]
    %v2908 = vlaneseq
    %v2909 = vshrl.u32 %v2908, 7
    %v2910 = vsub.s32 0, %v2909
    %v2911 = vrot.slane %v2906, %v2910
    %2913 = vmatprep.subr.mxu0 0.0
    %2914 = vmatpush1.msra.mxu0 %v2902
    %2915 = vmatprep.subr.mxu0 0.0
    %2916 = vmatpush1.msra.mxu0 %v2903
    %2917 = vmatprep.subr.mxu0 0.0
    %2918 = vmatpush1.msra.mxu0 %v2904
    %2919 = vmatprep.subr.mxu0 0.0
    %2920 = vmatpush1.msra.mxu0 %v2905
    %2921 = vmatprep.subr.mxu0 0.0
    %2922 = vmatpush1.msra.mxu0 0.0
    %2923 = vmatprep.subr.mxu0 0.0
    %2924 = vmatpush1.msra.mxu0 0.0
    %2925 = vmatprep.subr.mxu0 0.0
    %2926 = vmatpush1.msra.mxu0 0.0
    %2927 = vmatprep.subr.mxu0 0.0
    %2928 = vmatpush1.msra.mxu0 0.0
    %2929 = vmatprep.subr.mxu0 0.0
    %2930 = vmatpush1.msra.mxu0 0.0
    %2931 = vmatprep.subr.mxu0 0.0
    %2932 = vmatpush1.msra.mxu0 0.0
    %2933 = vmatprep.subr.mxu0 0.0
    %2934 = vmatpush1.msra.mxu0 0.0
    %2935 = vmatprep.subr.mxu0 0.0
    %2936 = vmatpush1.msra.mxu0 0.0
    %2937 = vmatprep.subr.mxu0 0.0
    %2938 = vmatpush1.msra.mxu0 0.0
    %2939 = vmatprep.subr.mxu0 0.0
    %2940 = vmatpush1.msra.mxu0 0.0
    %2941 = vmatprep.subr.mxu0 0.0
    %2942 = vmatpush1.msra.mxu0 0.0
    %2943 = vmatprep.subr.mxu0 0.0
    %2944 = vmatpush1.msra.mxu0 0.0
    %2945 = vmatprep.subr.mxu0 0.0
    %2946 = vmatpush1.msra.mxu0 0.0
    %2947 = vmatprep.subr.mxu0 0.0
    %2948 = vmatpush1.msra.mxu0 0.0
    %2949 = vmatprep.subr.mxu0 0.0
    %2950 = vmatpush1.msra.mxu0 0.0
    %2951 = vmatprep.subr.mxu0 0.0
    %2952 = vmatpush1.msra.mxu0 0.0
    %2953 = vmatprep.subr.mxu0 0.0
    %2954 = vmatpush1.msra.mxu0 0.0
    %2955 = vmatprep.subr.mxu0 0.0
    %2956 = vmatpush1.msra.mxu0 0.0
    %2957 = vmatprep.subr.mxu0 0.0
    %2958 = vmatpush1.msra.mxu0 0.0
    %2959 = vmatprep.subr.mxu0 0.0
    %2960 = vmatpush1.msra.mxu0 0.0
    %2961 = vmatprep.subr.mxu0 0.0
    %2962 = vmatpush1.msra.mxu0 0.0
    %2963 = vmatprep.subr.mxu0 0.0
    %2964 = vmatpush1.msra.mxu0 0.0
    %2965 = vmatprep.subr.mxu0 0.0
    %2966 = vmatpush1.msra.mxu0 0.0
    %2967 = vmatprep.subr.mxu0 0.0
    %2968 = vmatpush1.msra.mxu0 0.0
    %2969 = vmatprep.subr.mxu0 0.0
    %2970 = vmatpush1.msra.mxu0 0.0
    %2971 = vmatprep.subr.mxu0 0.0
    %2972 = vmatpush1.msra.mxu0 0.0
    %2973 = vmatprep.subr.mxu0 0.0
    %2974 = vmatpush1.msra.mxu0 0.0
    %2975 = vmatprep.subr.mxu0 0.0
    %2976 = vmatpush1.msra.mxu0 0.0
    %2977 = vmatprep.mubr.f32.mxu0 0.0
    %2978 = vmatmul.mubr.f32.gmra.mrb[0].mxu0 %v2822
    %v2979 = vpop.f32.mrb[0].mxu0
    %v2980 = vadd.f32 %v2911, %v2979
    %v2981 = vpop.f32.mrb[0].mxu0
    %2982 = vmatprep.mubr.f32.mxu0 0.0
    %2983 = vmatmul.mubr.f32.gmra.mrb[0].mxu0 %v2825
    %v2984 = vpop.f32.mrb[0].mxu0
    %v2985 = vadd.f32 %v2911, %v2984
    %v2986 = vpop.f32.mrb[0].mxu0
    %2987 = vdwg.mxu0
    %v2988 = vld [vmem:[%s18] sm:$0xff]
    %v2989 = vld [vmem:[%s18 + $0x8] sm:$0xff]
    %v2990 = vld [vmem:[%s18 + $0x10] sm:$0xff]
    %v2991 = vld [vmem:[%s18 + $0x18] sm:$0xff]
    %v2992 = vld [vmem:[%s18 + $0x20] sm:$0xff]
    %v2993 = vld [vmem:[%s18 + $0x28] sm:$0xff]
    %v2994 = vld [vmem:[%s18 + $0x30] sm:$0xff]
    %v2995 = vld [vmem:[%s18 + $0x38] sm:$0xff]
    %v2996 = vld [vmem:[%s18 + $0x40] sm:$0xff]
    %v2997 = vld [vmem:[%s18 + $0x48] sm:$0xff]
    %v2998 = vld [vmem:[%s18 + $0x50] sm:$0xff]
    %v2999 = vld [vmem:[%s18 + $0x58] sm:$0xff]
    %v3000 = vld [vmem:[%s18 + $0x60] sm:$0xff]
    %v3001 = vld [vmem:[%s18 + $0x68] sm:$0xff]
    %v3002 = vld [vmem:[%s18 + $0x70] sm:$0xff]
    %v3003 = vld [vmem:[%s18 + $0x78] sm:$0xff]
    %v3004 = vld [vmem:[%s19] sm:$0x3]
    %v3006 = vlaneseq
    %v3007 = vshrl.u32 %v3006, 7
    %v3008 = vsub.s32 0, %v3007
    %v3009 = vrot.slane %v3004, %v3008
    %v3010 = vlaneseq
    %v3011 = vshrl.u32 %v3010, 7
    %v3012 = vsub.s32 1, %v3011
    %v3013 = vrot.slane %v3004, %v3012
    %vm3016 = vcmask 523264
    %v3018 = vsel %vm3016, 0.0, 0
    %3020 = vmatprep.subr.mxu0 %v2989
    %3021 = vmatpush1.msra.mxu0 %v2988
    %3022 = vmatprep.subr.mxu0 %v2991
    %3023 = vmatpush1.msra.mxu0 %v2990
    %3024 = vmatprep.subr.mxu0 %v2993
    %3025 = vmatpush1.msra.mxu0 %v2992
    %3026 = vmatprep.subr.mxu0 %v2995
    %3027 = vmatpush1.msra.mxu0 %v2994
    %3028 = vmatprep.subr.mxu0 %v2997
    %3029 = vmatpush1.msra.mxu0 %v2996
    %3030 = vmatprep.subr.mxu0 %v2999
    %3031 = vmatpush1.msra.mxu0 %v2998
    %3032 = vmatprep.subr.mxu0 %v3001
    %3033 = vmatpush1.msra.mxu0 %v3000
    %3034 = vmatprep.subr.mxu0 %v3003
    %3035 = vmatpush1.msra.mxu0 %v3002
    %3036 = vmatprep.subr.mxu0 0.0
    %3037 = vmatpush1.msra.mxu0 0.0
    %3038 = vmatprep.subr.mxu0 0.0
    %3039 = vmatpush1.msra.mxu0 0.0
    %3040 = vmatprep.subr.mxu0 0.0
    %3041 = vmatpush1.msra.mxu0 0.0
    %3042 = vmatprep.subr.mxu0 0.0
    %3043 = vmatpush1.msra.mxu0 0.0
    %3044 = vmatprep.subr.mxu0 0.0
    %3045 = vmatpush1.msra.mxu0 0.0
    %3046 = vmatprep.subr.mxu0 0.0
    %3047 = vmatpush1.msra.mxu0 0.0
    %3048 = vmatprep.subr.mxu0 0.0
    %3049 = vmatpush1.msra.mxu0 0.0
    %3050 = vmatprep.subr.mxu0 0.0
    %3051 = vmatpush1.msra.mxu0 0.0
    %3052 = vmatprep.subr.mxu0 0.0
    %3053 = vmatpush1.msra.mxu0 0.0
    %3054 = vmatprep.subr.mxu0 0.0
    %3055 = vmatpush1.msra.mxu0 0.0
    %3056 = vmatprep.subr.mxu0 0.0
    %3057 = vmatpush1.msra.mxu0 0.0
    %3058 = vmatprep.subr.mxu0 0.0
    %3059 = vmatpush1.msra.mxu0 0.0
    %3060 = vmatprep.subr.mxu0 0.0
    %3061 = vmatpush1.msra.mxu0 0.0
    %3062 = vmatprep.subr.mxu0 0.0
    %3063 = vmatpush1.msra.mxu0 0.0
    %3064 = vmatprep.subr.mxu0 0.0
    %3065 = vmatpush1.msra.mxu0 0.0
    %3066 = vmatprep.subr.mxu0 0.0
    %3067 = vmatpush1.msra.mxu0 0.0
    %3068 = vmatprep.subr.mxu0 0.0
    %3069 = vmatpush1.msra.mxu0 0.0
    %3070 = vmatprep.subr.mxu0 0.0
    %3071 = vmatpush1.msra.mxu0 0.0
    %3072 = vmatprep.subr.mxu0 0.0
    %3073 = vmatpush1.msra.mxu0 0.0
    %3074 = vmatprep.subr.mxu0 0.0
    %3075 = vmatpush1.msra.mxu0 0.0
    %3076 = vmatprep.subr.mxu0 0.0
    %3077 = vmatpush1.msra.mxu0 0.0
    %3078 = vmatprep.subr.mxu0 0.0
    %3079 = vmatpush1.msra.mxu0 0.0
    %3080 = vmatprep.subr.mxu0 0.0
    %3081 = vmatpush1.msra.mxu0 0.0
    %3082 = vmatprep.subr.mxu0 0.0
    %3083 = vmatpush1.msra.mxu0 0.0
    %3084 = vmatprep.mubr.f32.mxu0 0.0
    %3085 = vmatmul.mubr.f32.gmra.mrb[0].mxu0 %v3018
    %v3086 = vpop.f32.mrb[0].mxu0
    %v3087 = vadd.f32 %v3009, %v3086
    %v3088 = vpop.f32.mrb[0].mxu0
    %v3089 = vadd.f32 %v3013, %v3088
    %3090 = vdwg.mxu0
    %v3092 = vrot.slane %v2899, 7
    %v3094 = vsel %vm352, %v2894, %v3092
    %v3096 = vrot.slane %v2980, 7
    %v3099 = vrot.slane %v2985, 6
    %v3101 = vsel %vm352, %v3096, %v3099
    %v3102 = vadd.f32 %v3094, %v3087
    %v3103 = vxor.u32 %v3102, 2147483648
    %v3104 = vmul.f32 %v3103, 1.442695
    %v3105 = vpow.pop %v3104
    %v3106 = vadd.f32 %v3105, 1.0
    %v3107 = vrcp.pop %v3106
    %v3108 = vmul.f32 1.0, %v3107
    %3110 = vrot.lane.b32.xlu0 %v3087, 64
    %v3111 = vpop.permute.xlu0 %3110
    %v3113 = vmul.f32 %v3108, %v3111
    %3115 = vrot.lane.b32.xlu0 %v3113, 64
    %v3116 = vpop.permute.xlu0 %3115
    %v3118 = vadd.f32 %v3094, %v3116
    %v3119 = vtanh.pop %v3118
    %v3120 = vsub.f32 1.0, %v3108
    %3122 = vrot.lane.b32.xlu0 %v3119, 96
    %v3123 = vpop.permute.xlu0 %3122
    %v3125 = vmul.f32 %v3120, %v3123
    %v3126 = vmul.f32 %v3108, 0.0
    %v3127 = vadd.f32 %v3125, %v3126
    %3128 = vrot.lane.b32.xlu0 %v3087, 32
    %v3129 = vpop.permute.xlu0 %3128
    %v3131 = vadd.f32 %v3101, %v3129
    %v3132 = vxor.u32 %v3131, 2147483648
    %v3133 = vmul.f32 %v3132, 1.442695
    %v3134 = vpow.pop %v3133
    %v3135 = vadd.f32 %v3134, 1.0
    %v3136 = vrcp.pop %v3135
    %v3137 = vmul.f32 1.0, %v3136
    %3139 = vrot.lane.b32.xlu0 %v3089, 32
    %v3140 = vpop.permute.xlu0 %3139
    %v3142 = vadd.f32 %v3101, %v3140
    %v3143 = vxor.u32 %v3142, 2147483648
    %v3144 = vmul.f32 %v3143, 1.442695
    %v3145 = vpow.pop %v3144
    %v3146 = vadd.f32 %v3145, 1.0
    %v3147 = vrcp.pop %v3146
    %v3148 = vmul.f32 1.0, %v3147
    %3149 = vrot.lane.b32.xlu0 %v3089, 96
    %v3150 = vpop.permute.xlu0 %3149
    %v3152 = vmul.f32 %v3137, %v3150
    %3154 = vrot.lane.b32.xlu0 %v3152, 64
    %v3155 = vpop.permute.xlu0 %3154
    %v3157 = vadd.f32 %v3101, %v3155
    %v3158 = vtanh.pop %v3157
    %v3159 = vsub.f32 1.0, %v3148
    %3161 = vrot.lane.b32.xlu0 %v3158, 96
    %v3162 = vpop.permute.xlu0 %3161
    %v3164 = vmul.f32 %v3159, %v3162
    %v3165 = vmul.f32 %v3148, 0.0
    %v3166 = vadd.f32 %v3164, %v3165
    %3168 = vrot.lane.b32.xlu0 %v3127, 96
    %v3169 = vpop.permute.xlu0 %3168
    %v3171 = vsel %vm1297, %v3169, %v3166
    %v3173 = vsel %vm3016, %v3171, 0
    %3175 = vmatprep.subr.mxu0 %v2989
    %3176 = vmatpush1.msra.mxu0 %v2988
    %3177 = vmatprep.subr.mxu0 %v2991
    %3178 = vmatpush1.msra.mxu0 %v2990
    %3179 = vmatprep.subr.mxu0 %v2993
    %3180 = vmatpush1.msra.mxu0 %v2992
    %3181 = vmatprep.subr.mxu0 %v2995
    %3182 = vmatpush1.msra.mxu0 %v2994
    %3183 = vmatprep.subr.mxu0 %v2997
    %3184 = vmatpush1.msra.mxu0 %v2996
    %3185 = vmatprep.subr.mxu0 %v2999
    %3186 = vmatpush1.msra.mxu0 %v2998
    %3187 = vmatprep.subr.mxu0 %v3001
    %3188 = vmatpush1.msra.mxu0 %v3000
    %3189 = vmatprep.subr.mxu0 %v3003
    %3190 = vmatpush1.msra.mxu0 %v3002
    %3191 = vmatprep.subr.mxu0 0.0
    %3192 = vmatpush1.msra.mxu0 0.0
    %3193 = vmatprep.subr.mxu0 0.0
    %3194 = vmatpush1.msra.mxu0 0.0
    %3195 = vmatprep.subr.mxu0 0.0
    %3196 = vmatpush1.msra.mxu0 0.0
    %3197 = vmatprep.subr.mxu0 0.0
    %3198 = vmatpush1.msra.mxu0 0.0
    %3199 = vmatprep.subr.mxu0 0.0
    %3200 = vmatpush1.msra.mxu0 0.0
    %3201 = vmatprep.subr.mxu0 0.0
    %3202 = vmatpush1.msra.mxu0 0.0
    %3203 = vmatprep.subr.mxu0 0.0
    %3204 = vmatpush1.msra.mxu0 0.0
    %3205 = vmatprep.subr.mxu0 0.0
    %3206 = vmatpush1.msra.mxu0 0.0
    %3207 = vmatprep.subr.mxu0 0.0
    %3208 = vmatpush1.msra.mxu0 0.0
    %3209 = vmatprep.subr.mxu0 0.0
    %3210 = vmatpush1.msra.mxu0 0.0
    %3211 = vmatprep.subr.mxu0 0.0
    %3212 = vmatpush1.msra.mxu0 0.0
    %3213 = vmatprep.subr.mxu0 0.0
    %3214 = vmatpush1.msra.mxu0 0.0
    %3215 = vmatprep.subr.mxu0 0.0
    %3216 = vmatpush1.msra.mxu0 0.0
    %3217 = vmatprep.subr.mxu0 0.0
    %3218 = vmatpush1.msra.mxu0 0.0
    %3219 = vmatprep.subr.mxu0 0.0
    %3220 = vmatpush1.msra.mxu0 0.0
    %3221 = vmatprep.subr.mxu0 0.0
    %3222 = vmatpush1.msra.mxu0 0.0
    %3223 = vmatprep.subr.mxu0 0.0
    %3224 = vmatpush1.msra.mxu0 0.0
    %3225 = vmatprep.subr.mxu0 0.0
    %3226 = vmatpush1.msra.mxu0 0.0
    %3227 = vmatprep.subr.mxu0 0.0
    %3228 = vmatpush1.msra.mxu0 0.0
    %3229 = vmatprep.subr.mxu0 0.0
    %3230 = vmatpush1.msra.mxu0 0.0
    %3231 = vmatprep.subr.mxu0 0.0
    %3232 = vmatpush1.msra.mxu0 0.0
    %3233 = vmatprep.subr.mxu0 0.0
    %3234 = vmatpush1.msra.mxu0 0.0
    %3235 = vmatprep.subr.mxu0 0.0
    %3236 = vmatpush1.msra.mxu0 0.0
    %3237 = vmatprep.subr.mxu0 0.0
    %3238 = vmatpush1.msra.mxu0 0.0
    %3239 = vmatprep.mubr.f32.mxu0 0.0
    %3240 = vmatmul.mubr.f32.gmra.mrb[0].mxu0 %v3173
    %v3241 = vpop.f32.mrb[0].mxu0
    %v3242 = vadd.f32 %v3009, %v3241
    %v3243 = vpop.f32.mrb[0].mxu0
    %v3244 = vadd.f32 %v3013, %v3243
    %3245 = vdwg.mxu0
    %v3247 = vrot.slane %v2894, 1
    %v3249 = vsel %vm352, %v3247, %v2899
    %v3250 = vrot.slane %v2980, 6
    %v3252 = vrot.slane %v2985, 5
    %v3254 = vsel %vm352, %v3250, %v3252
    %v3255 = vadd.f32 %v3249, %v3242
    %v3256 = vxor.u32 %v3255, 2147483648
    %v3257 = vmul.f32 %v3256, 1.442695
    %v3258 = vpow.pop %v3257
    %v3259 = vadd.f32 %v3258, 1.0
    %v3260 = vrcp.pop %v3259
    %v3261 = vmul.f32 1.0, %v3260
    %3263 = vrot.lane.b32.xlu0 %v3242, 64
    %v3264 = vpop.permute.xlu0 %3263
    %v3266 = vmul.f32 %v3261, %v3264
    %3268 = vrot.lane.b32.xlu0 %v3266, 64
    %v3269 = vpop.permute.xlu0 %3268
    %v3271 = vadd.f32 %v3249, %v3269
    %v3272 = vtanh.pop %v3271
    %v3273 = vsub.f32 1.0, %v3261
    %3275 = vrot.lane.b32.xlu0 %v3272, 96
    %v3276 = vpop.permute.xlu0 %3275
    %v3278 = vmul.f32 %v3273, %v3276
    %v3279 = vmul.f32 %v3261, %v3127
    %v3280 = vadd.f32 %v3278, %v3279
    %3281 = vrot.lane.b32.xlu0 %v3242, 32
    %v3282 = vpop.permute.xlu0 %3281
    %v3284 = vadd.f32 %v3254, %v3282
    %v3285 = vxor.u32 %v3284, 2147483648
    %v3286 = vmul.f32 %v3285, 1.442695
    %v3287 = vpow.pop %v3286
    %v3288 = vadd.f32 %v3287, 1.0
    %v3289 = vrcp.pop %v3288
    %v3290 = vmul.f32 1.0, %v3289
    %3292 = vrot.lane.b32.xlu0 %v3244, 32
    %v3293 = vpop.permute.xlu0 %3292
    %v3295 = vadd.f32 %v3254, %v3293
    %v3296 = vxor.u32 %v3295, 2147483648
    %v3297 = vmul.f32 %v3296, 1.442695
    %v3298 = vpow.pop %v3297
    %v3299 = vadd.f32 %v3298, 1.0
    %v3300 = vrcp.pop %v3299
    %v3301 = vmul.f32 1.0, %v3300
    %3302 = vrot.lane.b32.xlu0 %v3244, 96
    %v3303 = vpop.permute.xlu0 %3302
    %v3305 = vmul.f32 %v3290, %v3303
    %3307 = vrot.lane.b32.xlu0 %v3305, 64
    %v3308 = vpop.permute.xlu0 %3307
    %v3310 = vadd.f32 %v3254, %v3308
    %v3311 = vtanh.pop %v3310
    %v3312 = vsub.f32 1.0, %v3301
    %3314 = vrot.lane.b32.xlu0 %v3311, 96
    %v3315 = vpop.permute.xlu0 %3314
    %v3317 = vmul.f32 %v3312, %v3315
    %v3318 = vmul.f32 %v3301, %v3166
    %v3319 = vadd.f32 %v3317, %v3318
    %3321 = vrot.lane.b32.xlu0 %v3280, 96
    %v3322 = vpop.permute.xlu0 %3321
    %v3324 = vsel %vm1297, %v3322, %v3319
    %v3326 = vsel %vm3016, %v3324, 0
    %3328 = vmatprep.subr.mxu0 %v2989
    %3329 = vmatpush1.msra.mxu0 %v2988
    %3330 = vmatprep.subr.mxu0 %v2991
    %3331 = vmatpush1.msra.mxu0 %v2990
    %3332 = vmatprep.subr.mxu0 %v2993
    %3333 = vmatpush1.msra.mxu0 %v2992
    %3334 = vmatprep.subr.mxu0 %v2995
    %3335 = vmatpush1.msra.mxu0 %v2994
    %3336 = vmatprep.subr.mxu0 %v2997
    %3337 = vmatpush1.msra.mxu0 %v2996
    %3338 = vmatprep.subr.mxu0 %v2999
    %3339 = vmatpush1.msra.mxu0 %v2998
    %3340 = vmatprep.subr.mxu0 %v3001
    %3341 = vmatpush1.msra.mxu0 %v3000
    %3342 = vmatprep.subr.mxu0 %v3003
    %3343 = vmatpush1.msra.mxu0 %v3002
    %3344 = vmatprep.subr.mxu0 0.0
    %3345 = vmatpush1.msra.mxu0 0.0
    %3346 = vmatprep.subr.mxu0 0.0
    %3347 = vmatpush1.msra.mxu0 0.0
    %3348 = vmatprep.subr.mxu0 0.0
    %3349 = vmatpush1.msra.mxu0 0.0
    %3350 = vmatprep.subr.mxu0 0.0
    %3351 = vmatpush1.msra.mxu0 0.0
    %3352 = vmatprep.subr.mxu0 0.0
    %3353 = vmatpush1.msra.mxu0 0.0
    %3354 = vmatprep.subr.mxu0 0.0
    %3355 = vmatpush1.msra.mxu0 0.0
    %3356 = vmatprep.subr.mxu0 0.0
    %3357 = vmatpush1.msra.mxu0 0.0
    %3358 = vmatprep.subr.mxu0 0.0
    %3359 = vmatpush1.msra.mxu0 0.0
    %3360 = vmatprep.subr.mxu0 0.0
    %3361 = vmatpush1.msra.mxu0 0.0
    %3362 = vmatprep.subr.mxu0 0.0
    %3363 = vmatpush1.msra.mxu0 0.0
    %3364 = vmatprep.subr.mxu0 0.0
    %3365 = vmatpush1.msra.mxu0 0.0
    %3366 = vmatprep.subr.mxu0 0.0
    %3367 = vmatpush1.msra.mxu0 0.0
    %3368 = vmatprep.subr.mxu0 0.0
    %3369 = vmatpush1.msra.mxu0 0.0
    %3370 = vmatprep.subr.mxu0 0.0
    %3371 = vmatpush1.msra.mxu0 0.0
    %3372 = vmatprep.subr.mxu0 0.0
    %3373 = vmatpush1.msra.mxu0 0.0
    %3374 = vmatprep.subr.mxu0 0.0
    %3375 = vmatpush1.msra.mxu0 0.0
    %3376 = vmatprep.subr.mxu0 0.0
    %3377 = vmatpush1.msra.mxu0 0.0
    %3378 = vmatprep.subr.mxu0 0.0
    %3379 = vmatpush1.msra.mxu0 0.0
    %3380 = vmatprep.subr.mxu0 0.0
    %3381 = vmatpush1.msra.mxu0 0.0
    %3382 = vmatprep.subr.mxu0 0.0
    %3383 = vmatpush1.msra.mxu0 0.0
    %3384 = vmatprep.subr.mxu0 0.0
    %3385 = vmatpush1.msra.mxu0 0.0
    %3386 = vmatprep.subr.mxu0 0.0
    %3387 = vmatpush1.msra.mxu0 0.0
    %3388 = vmatprep.subr.mxu0 0.0
    %3389 = vmatpush1.msra.mxu0 0.0
    %3390 = vmatprep.subr.mxu0 0.0
    %3391 = vmatpush1.msra.mxu0 0.0
    %3392 = vmatprep.mubr.f32.mxu0 0.0
    %3393 = vmatmul.mubr.f32.gmra.mrb[0].mxu0 %v3326
    %v3394 = vpop.f32.mrb[0].mxu0
    %v3395 = vadd.f32 %v3009, %v3394
    %v3396 = vpop.f32.mrb[0].mxu0
    %v3397 = vadd.f32 %v3013, %v3396
    %3398 = vdwg.mxu0
    %v3399 = vrot.slane %v2894, 2
    %v3401 = vrot.slane %v2899, 1
    %v3403 = vsel %vm352, %v3399, %v3401
    %v3404 = vrot.slane %v2980, 5
    %v3406 = vrot.slane %v2985, 4
    %v3408 = vsel %vm352, %v3404, %v3406
    %v3409 = vadd.f32 %v3403, %v3395
    %v3410 = vxor.u32 %v3409, 2147483648
    %v3411 = vmul.f32 %v3410, 1.442695
    %v3412 = vpow.pop %v3411
    %v3413 = vadd.f32 %v3412, 1.0
    %v3414 = vrcp.pop %v3413
    %v3415 = vmul.f32 1.0, %v3414
    %3417 = vrot.lane.b32.xlu0 %v3395, 64
    %v3418 = vpop.permute.xlu0 %3417
    %v3420 = vmul.f32 %v3415, %v3418
    %3422 = vrot.lane.b32.xlu0 %v3420, 64
    %v3423 = vpop.permute.xlu0 %3422
    %v3425 = vadd.f32 %v3403, %v3423
    %v3426 = vtanh.pop %v3425
    %v3427 = vsub.f32 1.0, %v3415
    %3429 = vrot.lane.b32.xlu0 %v3426, 96
    %v3430 = vpop.permute.xlu0 %3429
    %v3432 = vmul.f32 %v3427, %v3430
    %v3433 = vmul.f32 %v3415, %v3280
    %v3434 = vadd.f32 %v3432, %v3433
    %3435 = vrot.lane.b32.xlu0 %v3395, 32
    %v3436 = vpop.permute.xlu0 %3435
    %v3438 = vadd.f32 %v3408, %v3436
    %v3439 = vxor.u32 %v3438, 2147483648
    %v3440 = vmul.f32 %v3439, 1.442695
    %v3441 = vpow.pop %v3440
    %v3442 = vadd.f32 %v3441, 1.0
    %v3443 = vrcp.pop %v3442
    %v3444 = vmul.f32 1.0, %v3443
    %3446 = vrot.lane.b32.xlu0 %v3397, 32
    %v3447 = vpop.permute.xlu0 %3446
    %v3449 = vadd.f32 %v3408, %v3447
    %v3450 = vxor.u32 %v3449, 2147483648
    %v3451 = vmul.f32 %v3450, 1.442695
    %v3452 = vpow.pop %v3451
    %v3453 = vadd.f32 %v3452, 1.0
    %v3454 = vrcp.pop %v3453
    %v3455 = vmul.f32 1.0, %v3454
    %3456 = vrot.lane.b32.xlu0 %v3397, 96
    %v3457 = vpop.permute.xlu0 %3456
    %v3459 = vmul.f32 %v3444, %v3457
    %3461 = vrot.lane.b32.xlu0 %v3459, 64
    %v3462 = vpop.permute.xlu0 %3461
    %v3464 = vadd.f32 %v3408, %v3462
    %v3465 = vtanh.pop %v3464
    %v3466 = vsub.f32 1.0, %v3455
    %3468 = vrot.lane.b32.xlu0 %v3465, 96
    %v3469 = vpop.permute.xlu0 %3468
    %v3471 = vmul.f32 %v3466, %v3469
    %v3472 = vmul.f32 %v3455, %v3319
    %v3473 = vadd.f32 %v3471, %v3472
    %3475 = vrot.lane.b32.xlu0 %v3434, 96
    %v3476 = vpop.permute.xlu0 %3475
    %v3478 = vsel %vm1297, %v3476, %v3473
    %v3480 = vsel %vm3016, %v3478, 0
    %3482 = vmatprep.subr.mxu0 %v2989
    %3483 = vmatpush1.msra.mxu0 %v2988
    %3484 = vmatprep.subr.mxu0 %v2991
    %3485 = vmatpush1.msra.mxu0 %v2990
    %3486 = vmatprep.subr.mxu0 %v2993
    %3487 = vmatpush1.msra.mxu0 %v2992
    %3488 = vmatprep.subr.mxu0 %v2995
    %3489 = vmatpush1.msra.mxu0 %v2994
    %3490 = vmatprep.subr.mxu0 %v2997
    %3491 = vmatpush1.msra.mxu0 %v2996
    %3492 = vmatprep.subr.mxu0 %v2999
    %3493 = vmatpush1.msra.mxu0 %v2998
    %3494 = vmatprep.subr.mxu0 %v3001
    %3495 = vmatpush1.msra.mxu0 %v3000
    %3496 = vmatprep.subr.mxu0 %v3003
    %3497 = vmatpush1.msra.mxu0 %v3002
    %3498 = vmatprep.subr.mxu0 0.0
    %3499 = vmatpush1.msra.mxu0 0.0
    %3500 = vmatprep.subr.mxu0 0.0
    %3501 = vmatpush1.msra.mxu0 0.0
    %3502 = vmatprep.subr.mxu0 0.0
    %3503 = vmatpush1.msra.mxu0 0.0
    %3504 = vmatprep.subr.mxu0 0.0
    %3505 = vmatpush1.msra.mxu0 0.0
    %3506 = vmatprep.subr.mxu0 0.0
    %3507 = vmatpush1.msra.mxu0 0.0
    %3508 = vmatprep.subr.mxu0 0.0
    %3509 = vmatpush1.msra.mxu0 0.0
    %3510 = vmatprep.subr.mxu0 0.0
    %3511 = vmatpush1.msra.mxu0 0.0
    %3512 = vmatprep.subr.mxu0 0.0
    %3513 = vmatpush1.msra.mxu0 0.0
    %3514 = vmatprep.subr.mxu0 0.0
    %3515 = vmatpush1.msra.mxu0 0.0
    %3516 = vmatprep.subr.mxu0 0.0
    %3517 = vmatpush1.msra.mxu0 0.0
    %3518 = vmatprep.subr.mxu0 0.0
    %3519 = vmatpush1.msra.mxu0 0.0
    %3520 = vmatprep.subr.mxu0 0.0
    %3521 = vmatpush1.msra.mxu0 0.0
    %3522 = vmatprep.subr.mxu0 0.0
    %3523 = vmatpush1.msra.mxu0 0.0
    %3524 = vmatprep.subr.mxu0 0.0
    %3525 = vmatpush1.msra.mxu0 0.0
    %3526 = vmatprep.subr.mxu0 0.0
    %3527 = vmatpush1.msra.mxu0 0.0
    %3528 = vmatprep.subr.mxu0 0.0
    %3529 = vmatpush1.msra.mxu0 0.0
    %3530 = vmatprep.subr.mxu0 0.0
    %3531 = vmatpush1.msra.mxu0 0.0
    %3532 = vmatprep.subr.mxu0 0.0
    %3533 = vmatpush1.msra.mxu0 0.0
    %3534 = vmatprep.subr.mxu0 0.0
    %3535 = vmatpush1.msra.mxu0 0.0
    %3536 = vmatprep.subr.mxu0 0.0
    %3537 = vmatpush1.msra.mxu0 0.0
    %3538 = vmatprep.subr.mxu0 0.0
    %3539 = vmatpush1.msra.mxu0 0.0
    %3540 = vmatprep.subr.mxu0 0.0
    %3541 = vmatpush1.msra.mxu0 0.0
    %3542 = vmatprep.subr.mxu0 0.0
    %3543 = vmatpush1.msra.mxu0 0.0
    %3544 = vmatprep.subr.mxu0 0.0
    %3545 = vmatpush1.msra.mxu0 0.0
    %3546 = vmatprep.mubr.f32.mxu0 0.0
    %3547 = vmatmul.mubr.f32.gmra.mrb[0].mxu0 %v3480
    %v3548 = vpop.f32.mrb[0].mxu0
    %v3549 = vadd.f32 %v3009, %v3548
    %v3550 = vpop.f32.mrb[0].mxu0
    %v3551 = vadd.f32 %v3013, %v3550
    %3552 = vdwg.mxu0
    %v3553 = vrot.slane %v2894, 3
    %v3555 = vrot.slane %v2899, 2
    %v3557 = vsel %vm352, %v3553, %v3555
    %v3558 = vrot.slane %v2980, 4
    %v3560 = vrot.slane %v2985, 3
    %v3562 = vsel %vm352, %v3558, %v3560
    %v3563 = vadd.f32 %v3557, %v3549
    %v3564 = vxor.u32 %v3563, 2147483648
    %v3565 = vmul.f32 %v3564, 1.442695
    %v3566 = vpow.pop %v3565
    %v3567 = vadd.f32 %v3566, 1.0
    %v3568 = vrcp.pop %v3567
    %v3569 = vmul.f32 1.0, %v3568
    %3571 = vrot.lane.b32.xlu0 %v3549, 64
    %v3572 = vpop.permute.xlu0 %3571
    %v3574 = vmul.f32 %v3569, %v3572
    %3576 = vrot.lane.b32.xlu0 %v3574, 64
    %v3577 = vpop.permute.xlu0 %3576
    %v3579 = vadd.f32 %v3557, %v3577
    %v3580 = vtanh.pop %v3579
    %v3581 = vsub.f32 1.0, %v3569
    %3583 = vrot.lane.b32.xlu0 %v3580, 96
    %v3584 = vpop.permute.xlu0 %3583
    %v3586 = vmul.f32 %v3581, %v3584
    %v3587 = vmul.f32 %v3569, %v3434
    %v3588 = vadd.f32 %v3586, %v3587
    %3589 = vrot.lane.b32.xlu0 %v3549, 32
    %v3590 = vpop.permute.xlu0 %3589
    %v3592 = vadd.f32 %v3562, %v3590
    %v3593 = vxor.u32 %v3592, 2147483648
    %v3594 = vmul.f32 %v3593, 1.442695
    %v3595 = vpow.pop %v3594
    %v3596 = vadd.f32 %v3595, 1.0
    %v3597 = vrcp.pop %v3596
    %v3598 = vmul.f32 1.0, %v3597
    %3600 = vrot.lane.b32.xlu0 %v3551, 32
    %v3601 = vpop.permute.xlu0 %3600
    %v3603 = vadd.f32 %v3562, %v3601
    %v3604 = vxor.u32 %v3603, 2147483648
    %v3605 = vmul.f32 %v3604, 1.442695
    %v3606 = vpow.pop %v3605
    %v3607 = vadd.f32 %v3606, 1.0
    %v3608 = vrcp.pop %v3607
    %v3609 = vmul.f32 1.0, %v3608
    %3610 = vrot.lane.b32.xlu0 %v3551, 96
    %v3611 = vpop.permute.xlu0 %3610
    %v3613 = vmul.f32 %v3598, %v3611
    %3615 = vrot.lane.b32.xlu0 %v3613, 64
    %v3616 = vpop.permute.xlu0 %3615
    %v3618 = vadd.f32 %v3562, %v3616
    %v3619 = vtanh.pop %v3618
    %v3620 = vsub.f32 1.0, %v3609
    %3622 = vrot.lane.b32.xlu0 %v3619, 96
    %v3623 = vpop.permute.xlu0 %3622
    %v3625 = vmul.f32 %v3620, %v3623
    %v3626 = vmul.f32 %v3609, %v3473
    %v3627 = vadd.f32 %v3625, %v3626
    %3629 = vrot.lane.b32.xlu0 %v3588, 96
    %v3630 = vpop.permute.xlu0 %3629
    %v3632 = vsel %vm1297, %v3630, %v3627
    %v3634 = vsel %vm3016, %v3632, 0
    %3636 = vmatprep.subr.mxu0 %v2989
    %3637 = vmatpush1.msra.mxu0 %v2988
    %3638 = vmatprep.subr.mxu0 %v2991
    %3639 = vmatpush1.msra.mxu0 %v2990
    %3640 = vmatprep.subr.mxu0 %v2993
    %3641 = vmatpush1.msra.mxu0 %v2992
    %3642 = vmatprep.subr.mxu0 %v2995
    %3643 = vmatpush1.msra.mxu0 %v2994
    %3644 = vmatprep.subr.mxu0 %v2997
    %3645 = vmatpush1.msra.mxu0 %v2996
    %3646 = vmatprep.subr.mxu0 %v2999
    %3647 = vmatpush1.msra.mxu0 %v2998
    %3648 = vmatprep.subr.mxu0 %v3001
    %3649 = vmatpush1.msra.mxu0 %v3000
    %3650 = vmatprep.subr.mxu0 %v3003
    %3651 = vmatpush1.msra.mxu0 %v3002
    %3652 = vmatprep.subr.mxu0 0.0
    %3653 = vmatpush1.msra.mxu0 0.0
    %3654 = vmatprep.subr.mxu0 0.0
    %3655 = vmatpush1.msra.mxu0 0.0
    %3656 = vmatprep.subr.mxu0 0.0
    %3657 = vmatpush1.msra.mxu0 0.0
    %3658 = vmatprep.subr.mxu0 0.0
    %3659 = vmatpush1.msra.mxu0 0.0
    %3660 = vmatprep.subr.mxu0 0.0
    %3661 = vmatpush1.msra.mxu0 0.0
    %3662 = vmatprep.subr.mxu0 0.0
    %3663 = vmatpush1.msra.mxu0 0.0
    %3664 = vmatprep.subr.mxu0 0.0
    %3665 = vmatpush1.msra.mxu0 0.0
    %3666 = vmatprep.subr.mxu0 0.0
    %3667 = vmatpush1.msra.mxu0 0.0
    %3668 = vmatprep.subr.mxu0 0.0
    %3669 = vmatpush1.msra.mxu0 0.0
    %3670 = vmatprep.subr.mxu0 0.0
    %3671 = vmatpush1.msra.mxu0 0.0
    %3672 = vmatprep.subr.mxu0 0.0
    %3673 = vmatpush1.msra.mxu0 0.0
    %3674 = vmatprep.subr.mxu0 0.0
    %3675 = vmatpush1.msra.mxu0 0.0
    %3676 = vmatprep.subr.mxu0 0.0
    %3677 = vmatpush1.msra.mxu0 0.0
    %3678 = vmatprep.subr.mxu0 0.0
    %3679 = vmatpush1.msra.mxu0 0.0
    %3680 = vmatprep.subr.mxu0 0.0
    %3681 = vmatpush1.msra.mxu0 0.0
    %3682 = vmatprep.subr.mxu0 0.0
    %3683 = vmatpush1.msra.mxu0 0.0
    %3684 = vmatprep.subr.mxu0 0.0
    %3685 = vmatpush1.msra.mxu0 0.0
    %3686 = vmatprep.subr.mxu0 0.0
    %3687 = vmatpush1.msra.mxu0 0.0
    %3688 = vmatprep.subr.mxu0 0.0
    %3689 = vmatpush1.msra.mxu0 0.0
    %3690 = vmatprep.subr.mxu0 0.0
    %3691 = vmatpush1.msra.mxu0 0.0
    %3692 = vmatprep.subr.mxu0 0.0
    %3693 = vmatpush1.msra.mxu0 0.0
    %3694 = vmatprep.subr.mxu0 0.0
    %3695 = vmatpush1.msra.mxu0 0.0
    %3696 = vmatprep.subr.mxu0 0.0
    %3697 = vmatpush1.msra.mxu0 0.0
    %3698 = vmatprep.subr.mxu0 0.0
    %3699 = vmatpush1.msra.mxu0 0.0
    %3700 = vmatprep.mubr.f32.mxu0 0.0
    %3701 = vmatmul.mubr.f32.gmra.mrb[0].mxu0 %v3634
    %v3702 = vpop.f32.mrb[0].mxu0
    %v3703 = vadd.f32 %v3009, %v3702
    %v3704 = vpop.f32.mrb[0].mxu0
    %v3705 = vadd.f32 %v3013, %v3704
    %3706 = vdwg.mxu0
    %v3707 = vrot.slane %v2894, 4
    %v3709 = vrot.slane %v2899, 3
    %v3711 = vsel %vm352, %v3707, %v3709
    %v3712 = vrot.slane %v2980, 3
    %v3714 = vrot.slane %v2985, 2
    %v3716 = vsel %vm352, %v3712, %v3714
    %v3717 = vadd.f32 %v3711, %v3703
    %v3718 = vxor.u32 %v3717, 2147483648
    %v3719 = vmul.f32 %v3718, 1.442695
    %v3720 = vpow.pop %v3719
    %v3721 = vadd.f32 %v3720, 1.0
    %v3722 = vrcp.pop %v3721
    %v3723 = vmul.f32 1.0, %v3722
    %3725 = vrot.lane.b32.xlu0 %v3703, 64
    %v3726 = vpop.permute.xlu0 %3725
    %v3728 = vmul.f32 %v3723, %v3726
    %3730 = vrot.lane.b32.xlu0 %v3728, 64
    %v3731 = vpop.permute.xlu0 %3730
    %v3733 = vadd.f32 %v3711, %v3731
    %v3734 = vtanh.pop %v3733
    %v3735 = vsub.f32 1.0, %v3723
    %3737 = vrot.lane.b32.xlu0 %v3734, 96
    %v3738 = vpop.permute.xlu0 %3737
    %v3740 = vmul.f32 %v3735, %v3738
    %v3741 = vmul.f32 %v3723, %v3588
    %v3742 = vadd.f32 %v3740, %v3741
    %3743 = vrot.lane.b32.xlu0 %v3703, 32
    %v3744 = vpop.permute.xlu0 %3743
    %v3746 = vadd.f32 %v3716, %v3744
    %v3747 = vxor.u32 %v3746, 2147483648
    %v3748 = vmul.f32 %v3747, 1.442695
    %v3749 = vpow.pop %v3748
    %v3750 = vadd.f32 %v3749, 1.0
    %v3751 = vrcp.pop %v3750
    %v3752 = vmul.f32 1.0, %v3751
    %3754 = vrot.lane.b32.xlu0 %v3705, 32
    %v3755 = vpop.permute.xlu0 %3754
    %v3757 = vadd.f32 %v3716, %v3755
    %v3758 = vxor.u32 %v3757, 2147483648
    %v3759 = vmul.f32 %v3758, 1.442695
    %v3760 = vpow.pop %v3759
    %v3761 = vadd.f32 %v3760, 1.0
    %v3762 = vrcp.pop %v3761
    %v3763 = vmul.f32 1.0, %v3762
    %3764 = vrot.lane.b32.xlu0 %v3705, 96
    %v3765 = vpop.permute.xlu0 %3764
    %v3767 = vmul.f32 %v3752, %v3765
    %3769 = vrot.lane.b32.xlu0 %v3767, 64
    %v3770 = vpop.permute.xlu0 %3769
    %v3772 = vadd.f32 %v3716, %v3770
    %v3773 = vtanh.pop %v3772
    %v3774 = vsub.f32 1.0, %v3763
    %3776 = vrot.lane.b32.xlu0 %v3773, 96
    %v3777 = vpop.permute.xlu0 %3776
    %v3779 = vmul.f32 %v3774, %v3777
    %v3780 = vmul.f32 %v3763, %v3627
    %v3781 = vadd.f32 %v3779, %v3780
    %3783 = vrot.lane.b32.xlu0 %v3742, 96
    %v3784 = vpop.permute.xlu0 %3783
    %v3786 = vsel %vm1297, %v3784, %v3781
    %v3788 = vsel %vm3016, %v3786, 0
    %3790 = vmatprep.subr.mxu0 %v2989
    %3791 = vmatpush1.msra.mxu0 %v2988
    %3792 = vmatprep.subr.mxu0 %v2991
    %3793 = vmatpush1.msra.mxu0 %v2990
    %3794 = vmatprep.subr.mxu0 %v2993
    %3795 = vmatpush1.msra.mxu0 %v2992
    %3796 = vmatprep.subr.mxu0 %v2995
    %3797 = vmatpush1.msra.mxu0 %v2994
    %3798 = vmatprep.subr.mxu0 %v2997
    %3799 = vmatpush1.msra.mxu0 %v2996
    %3800 = vmatprep.subr.mxu0 %v2999
    %3801 = vmatpush1.msra.mxu0 %v2998
    %3802 = vmatprep.subr.mxu0 %v3001
    %3803 = vmatpush1.msra.mxu0 %v3000
    %3804 = vmatprep.subr.mxu0 %v3003
    %3805 = vmatpush1.msra.mxu0 %v3002
    %3806 = vmatprep.subr.mxu0 0.0
    %3807 = vmatpush1.msra.mxu0 0.0
    %3808 = vmatprep.subr.mxu0 0.0
    %3809 = vmatpush1.msra.mxu0 0.0
    %3810 = vmatprep.subr.mxu0 0.0
    %3811 = vmatpush1.msra.mxu0 0.0
    %3812 = vmatprep.subr.mxu0 0.0
    %3813 = vmatpush1.msra.mxu0 0.0
    %3814 = vmatprep.subr.mxu0 0.0
    %3815 = vmatpush1.msra.mxu0 0.0
    %3816 = vmatprep.subr.mxu0 0.0
    %3817 = vmatpush1.msra.mxu0 0.0
    %3818 = vmatprep.subr.mxu0 0.0
    %3819 = vmatpush1.msra.mxu0 0.0
    %3820 = vmatprep.subr.mxu0 0.0
    %3821 = vmatpush1.msra.mxu0 0.0
    %3822 = vmatprep.subr.mxu0 0.0
    %3823 = vmatpush1.msra.mxu0 0.0
    %3824 = vmatprep.subr.mxu0 0.0
    %3825 = vmatpush1.msra.mxu0 0.0
    %3826 = vmatprep.subr.mxu0 0.0
    %3827 = vmatpush1.msra.mxu0 0.0
    %3828 = vmatprep.subr.mxu0 0.0
    %3829 = vmatpush1.msra.mxu0 0.0
    %3830 = vmatprep.subr.mxu0 0.0
    %3831 = vmatpush1.msra.mxu0 0.0
    %3832 = vmatprep.subr.mxu0 0.0
    %3833 = vmatpush1.msra.mxu0 0.0
    %3834 = vmatprep.subr.mxu0 0.0
    %3835 = vmatpush1.msra.mxu0 0.0
    %3836 = vmatprep.subr.mxu0 0.0
    %3837 = vmatpush1.msra.mxu0 0.0
    %3838 = vmatprep.subr.mxu0 0.0
    %3839 = vmatpush1.msra.mxu0 0.0
    %3840 = vmatprep.subr.mxu0 0.0
    %3841 = vmatpush1.msra.mxu0 0.0
    %3842 = vmatprep.subr.mxu0 0.0
    %3843 = vmatpush1.msra.mxu0 0.0
    %3844 = vmatprep.subr.mxu0 0.0
    %3845 = vmatpush1.msra.mxu0 0.0
    %3846 = vmatprep.subr.mxu0 0.0
    %3847 = vmatpush1.msra.mxu0 0.0
    %3848 = vmatprep.subr.mxu0 0.0
    %3849 = vmatpush1.msra.mxu0 0.0
    %3850 = vmatprep.subr.mxu0 0.0
    %3851 = vmatpush1.msra.mxu0 0.0
    %3852 = vmatprep.subr.mxu0 0.0
    %3853 = vmatpush1.msra.mxu0 0.0
    %3854 = vmatprep.mubr.f32.mxu0 0.0
    %3855 = vmatmul.mubr.f32.gmra.mrb[0].mxu0 %v3788
    %v3856 = vpop.f32.mrb[0].mxu0
    %v3857 = vadd.f32 %v3009, %v3856
    %v3858 = vpop.f32.mrb[0].mxu0
    %v3859 = vadd.f32 %v3013, %v3858
    %3860 = vdwg.mxu0
    %v3861 = vrot.slane %v2894, 5
    %v3863 = vrot.slane %v2899, 4
    %v3865 = vsel %vm352, %v3861, %v3863
    %v3866 = vrot.slane %v2980, 2
    %v3868 = vrot.slane %v2985, 1
    %v3870 = vsel %vm352, %v3866, %v3868
    %v3871 = vadd.f32 %v3865, %v3857
    %v3872 = vxor.u32 %v3871, 2147483648
    %v3873 = vmul.f32 %v3872, 1.442695
    %v3874 = vpow.pop %v3873
    %v3875 = vadd.f32 %v3874, 1.0
    %v3876 = vrcp.pop %v3875
    %v3877 = vmul.f32 1.0, %v3876
    %3879 = vrot.lane.b32.xlu0 %v3857, 64
    %v3880 = vpop.permute.xlu0 %3879
    %v3882 = vmul.f32 %v3877, %v3880
    %3884 = vrot.lane.b32.xlu0 %v3882, 64
    %v3885 = vpop.permute.xlu0 %3884
    %v3887 = vadd.f32 %v3865, %v3885
    %v3888 = vtanh.pop %v3887
    %v3889 = vsub.f32 1.0, %v3877
    %3891 = vrot.lane.b32.xlu0 %v3888, 96
    %v3892 = vpop.permute.xlu0 %3891
    %v3894 = vmul.f32 %v3889, %v3892
    %v3895 = vmul.f32 %v3877, %v3742
    %v3896 = vadd.f32 %v3894, %v3895
    %3897 = vrot.lane.b32.xlu0 %v3857, 32
    %v3898 = vpop.permute.xlu0 %3897
    %v3900 = vadd.f32 %v3870, %v3898
    %v3901 = vxor.u32 %v3900, 2147483648
    %v3902 = vmul.f32 %v3901, 1.442695
    %v3903 = vpow.pop %v3902
    %v3904 = vadd.f32 %v3903, 1.0
    %v3905 = vrcp.pop %v3904
    %v3906 = vmul.f32 1.0, %v3905
    %3908 = vrot.lane.b32.xlu0 %v3859, 32
    %v3909 = vpop.permute.xlu0 %3908
    %v3911 = vadd.f32 %v3870, %v3909
    %v3912 = vxor.u32 %v3911, 2147483648
    %v3913 = vmul.f32 %v3912, 1.442695
    %v3914 = vpow.pop %v3913
    %v3915 = vadd.f32 %v3914, 1.0
    %v3916 = vrcp.pop %v3915
    %v3917 = vmul.f32 1.0, %v3916
    %3918 = vrot.lane.b32.xlu0 %v3859, 96
    %v3919 = vpop.permute.xlu0 %3918
    %v3921 = vmul.f32 %v3906, %v3919
    %3923 = vrot.lane.b32.xlu0 %v3921, 64
    %v3924 = vpop.permute.xlu0 %3923
    %v3926 = vadd.f32 %v3870, %v3924
    %v3927 = vtanh.pop %v3926
    %v3928 = vsub.f32 1.0, %v3917
    %3930 = vrot.lane.b32.xlu0 %v3927, 96
    %v3931 = vpop.permute.xlu0 %3930
    %v3933 = vmul.f32 %v3928, %v3931
    %v3934 = vmul.f32 %v3917, %v3781
    %v3935 = vadd.f32 %v3933, %v3934
    %3937 = vrot.lane.b32.xlu0 %v3896, 96
    %v3938 = vpop.permute.xlu0 %3937
    %v3940 = vsel %vm1297, %v3938, %v3935
    %v3942 = vsel %vm3016, %v3940, 0
    %3944 = vmatprep.subr.mxu0 %v2989
    %3945 = vmatpush1.msra.mxu0 %v2988
    %3946 = vmatprep.subr.mxu0 %v2991
    %3947 = vmatpush1.msra.mxu0 %v2990
    %3948 = vmatprep.subr.mxu0 %v2993
    %3949 = vmatpush1.msra.mxu0 %v2992
    %3950 = vmatprep.subr.mxu0 %v2995
    %3951 = vmatpush1.msra.mxu0 %v2994
    %3952 = vmatprep.subr.mxu0 %v2997
    %3953 = vmatpush1.msra.mxu0 %v2996
    %3954 = vmatprep.subr.mxu0 %v2999
    %3955 = vmatpush1.msra.mxu0 %v2998
    %3956 = vmatprep.subr.mxu0 %v3001
    %3957 = vmatpush1.msra.mxu0 %v3000
    %3958 = vmatprep.subr.mxu0 %v3003
    %3959 = vmatpush1.msra.mxu0 %v3002
    %3960 = vmatprep.subr.mxu0 0.0
    %3961 = vmatpush1.msra.mxu0 0.0
    %3962 = vmatprep.subr.mxu0 0.0
    %3963 = vmatpush1.msra.mxu0 0.0
    %3964 = vmatprep.subr.mxu0 0.0
    %3965 = vmatpush1.msra.mxu0 0.0
    %3966 = vmatprep.subr.mxu0 0.0
    %3967 = vmatpush1.msra.mxu0 0.0
    %3968 = vmatprep.subr.mxu0 0.0
    %3969 = vmatpush1.msra.mxu0 0.0
    %3970 = vmatprep.subr.mxu0 0.0
    %3971 = vmatpush1.msra.mxu0 0.0
    %3972 = vmatprep.subr.mxu0 0.0
    %3973 = vmatpush1.msra.mxu0 0.0
    %3974 = vmatprep.subr.mxu0 0.0
    %3975 = vmatpush1.msra.mxu0 0.0
    %3976 = vmatprep.subr.mxu0 0.0
    %3977 = vmatpush1.msra.mxu0 0.0
    %3978 = vmatprep.subr.mxu0 0.0
    %3979 = vmatpush1.msra.mxu0 0.0
    %3980 = vmatprep.subr.mxu0 0.0
    %3981 = vmatpush1.msra.mxu0 0.0
    %3982 = vmatprep.subr.mxu0 0.0
    %3983 = vmatpush1.msra.mxu0 0.0
    %3984 = vmatprep.subr.mxu0 0.0
    %3985 = vmatpush1.msra.mxu0 0.0
    %3986 = vmatprep.subr.mxu0 0.0
    %3987 = vmatpush1.msra.mxu0 0.0
    %3988 = vmatprep.subr.mxu0 0.0
    %3989 = vmatpush1.msra.mxu0 0.0
    %3990 = vmatprep.subr.mxu0 0.0
    %3991 = vmatpush1.msra.mxu0 0.0
    %3992 = vmatprep.subr.mxu0 0.0
    %3993 = vmatpush1.msra.mxu0 0.0
    %3994 = vmatprep.subr.mxu0 0.0
    %3995 = vmatpush1.msra.mxu0 0.0
    %3996 = vmatprep.subr.mxu0 0.0
    %3997 = vmatpush1.msra.mxu0 0.0
    %3998 = vmatprep.subr.mxu0 0.0
    %3999 = vmatpush1.msra.mxu0 0.0
    %4000 = vmatprep.subr.mxu0 0.0
    %4001 = vmatpush1.msra.mxu0 0.0
    %4002 = vmatprep.subr.mxu0 0.0
    %4003 = vmatpush1.msra.mxu0 0.0
    %4004 = vmatprep.subr.mxu0 0.0
    %4005 = vmatpush1.msra.mxu0 0.0
    %4006 = vmatprep.subr.mxu0 0.0
    %4007 = vmatpush1.msra.mxu0 0.0
    %4008 = vmatprep.mubr.f32.mxu0 0.0
    %4009 = vmatmul.mubr.f32.gmra.mrb[0].mxu0 %v3942
    %v4010 = vpop.f32.mrb[0].mxu0
    %v4011 = vadd.f32 %v3009, %v4010
    %v4012 = vpop.f32.mrb[0].mxu0
    %v4013 = vadd.f32 %v3013, %v4012
    %4014 = vdwg.mxu0
    %v4015 = vrot.slane %v2894, 6
    %v4017 = vrot.slane %v2899, 5
    %v4019 = vsel %vm352, %v4015, %v4017
    %v4020 = vrot.slane %v2980, 1
    %v4022 = vsel %vm352, %v4020, %v2985
    %v4023 = vadd.f32 %v4019, %v4011
    %v4024 = vxor.u32 %v4023, 2147483648
    %v4025 = vmul.f32 %v4024, 1.442695
    %v4026 = vpow.pop %v4025
    %v4027 = vadd.f32 %v4026, 1.0
    %v4028 = vrcp.pop %v4027
    %v4029 = vmul.f32 1.0, %v4028
    %4031 = vrot.lane.b32.xlu0 %v4011, 64
    %v4032 = vpop.permute.xlu0 %4031
    %v4034 = vmul.f32 %v4029, %v4032
    %4036 = vrot.lane.b32.xlu0 %v4034, 64
    %v4037 = vpop.permute.xlu0 %4036
    %v4039 = vadd.f32 %v4019, %v4037
    %v4040 = vtanh.pop %v4039
    %v4041 = vsub.f32 1.0, %v4029
    %4043 = vrot.lane.b32.xlu0 %v4040, 96
    %v4044 = vpop.permute.xlu0 %4043
    %v4046 = vmul.f32 %v4041, %v4044
    %v4047 = vmul.f32 %v4029, %v3896
    %v4048 = vadd.f32 %v4046, %v4047
    %4049 = vrot.lane.b32.xlu0 %v4011, 32
    %v4050 = vpop.permute.xlu0 %4049
    %v4052 = vadd.f32 %v4022, %v4050
    %v4053 = vxor.u32 %v4052, 2147483648
    %v4054 = vmul.f32 %v4053, 1.442695
    %v4055 = vpow.pop %v4054
    %v4056 = vadd.f32 %v4055, 1.0
    %v4057 = vrcp.pop %v4056
    %v4058 = vmul.f32 1.0, %v4057
    %4060 = vrot.lane.b32.xlu0 %v4013, 32
    %v4061 = vpop.permute.xlu0 %4060
    %v4063 = vadd.f32 %v4022, %v4061
    %v4064 = vxor.u32 %v4063, 2147483648
    %v4065 = vmul.f32 %v4064, 1.442695
    %v4066 = vpow.pop %v4065
    %v4067 = vadd.f32 %v4066, 1.0
    %v4068 = vrcp.pop %v4067
    %v4069 = vmul.f32 1.0, %v4068
    %4070 = vrot.lane.b32.xlu0 %v4013, 96
    %v4071 = vpop.permute.xlu0 %4070
    %v4073 = vmul.f32 %v4058, %v4071
    %4075 = vrot.lane.b32.xlu0 %v4073, 64
    %v4076 = vpop.permute.xlu0 %4075
    %v4078 = vadd.f32 %v4022, %v4076
    %v4079 = vtanh.pop %v4078
    %v4080 = vsub.f32 1.0, %v4069
    %4082 = vrot.lane.b32.xlu0 %v4079, 96
    %v4083 = vpop.permute.xlu0 %4082
    %v4085 = vmul.f32 %v4080, %v4083
    %v4086 = vmul.f32 %v4069, %v3935
    %v4087 = vadd.f32 %v4085, %v4086
    %4089 = vrot.lane.b32.xlu0 %v4048, 96
    %v4090 = vpop.permute.xlu0 %4089
    %v4092 = vsel %vm1297, %v4090, %v4087
    %v4094 = vsel %vm3016, %v4092, 0
    %4096 = vmatprep.subr.mxu0 %v2989
    %4097 = vmatpush1.msra.mxu0 %v2988
    %4098 = vmatprep.subr.mxu0 %v2991
    %4099 = vmatpush1.msra.mxu0 %v2990
    %4100 = vmatprep.subr.mxu0 %v2993
    %4101 = vmatpush1.msra.mxu0 %v2992
    %4102 = vmatprep.subr.mxu0 %v2995
    %4103 = vmatpush1.msra.mxu0 %v2994
    %4104 = vmatprep.subr.mxu0 %v2997
    %4105 = vmatpush1.msra.mxu0 %v2996
    %4106 = vmatprep.subr.mxu0 %v2999
    %4107 = vmatpush1.msra.mxu0 %v2998
    %4108 = vmatprep.subr.mxu0 %v3001
    %4109 = vmatpush1.msra.mxu0 %v3000
    %4110 = vmatprep.subr.mxu0 %v3003
    %4111 = vmatpush1.msra.mxu0 %v3002
    %4112 = vmatprep.subr.mxu0 0.0
    %4113 = vmatpush1.msra.mxu0 0.0
    %4114 = vmatprep.subr.mxu0 0.0
    %4115 = vmatpush1.msra.mxu0 0.0
    %4116 = vmatprep.subr.mxu0 0.0
    %4117 = vmatpush1.msra.mxu0 0.0
    %4118 = vmatprep.subr.mxu0 0.0
    %4119 = vmatpush1.msra.mxu0 0.0
    %4120 = vmatprep.subr.mxu0 0.0
    %4121 = vmatpush1.msra.mxu0 0.0
    %4122 = vmatprep.subr.mxu0 0.0
    %4123 = vmatpush1.msra.mxu0 0.0
    %4124 = vmatprep.subr.mxu0 0.0
    %4125 = vmatpush1.msra.mxu0 0.0
    %4126 = vmatprep.subr.mxu0 0.0
    %4127 = vmatpush1.msra.mxu0 0.0
    %4128 = vmatprep.subr.mxu0 0.0
    %4129 = vmatpush1.msra.mxu0 0.0
    %4130 = vmatprep.subr.mxu0 0.0
    %4131 = vmatpush1.msra.mxu0 0.0
    %4132 = vmatprep.subr.mxu0 0.0
    %4133 = vmatpush1.msra.mxu0 0.0
    %4134 = vmatprep.subr.mxu0 0.0
    %4135 = vmatpush1.msra.mxu0 0.0
    %4136 = vmatprep.subr.mxu0 0.0
    %4137 = vmatpush1.msra.mxu0 0.0
    %4138 = vmatprep.subr.mxu0 0.0
    %4139 = vmatpush1.msra.mxu0 0.0
    %4140 = vmatprep.subr.mxu0 0.0
    %4141 = vmatpush1.msra.mxu0 0.0
    %4142 = vmatprep.subr.mxu0 0.0
    %4143 = vmatpush1.msra.mxu0 0.0
    %4144 = vmatprep.subr.mxu0 0.0
    %4145 = vmatpush1.msra.mxu0 0.0
    %4146 = vmatprep.subr.mxu0 0.0
    %4147 = vmatpush1.msra.mxu0 0.0
    %4148 = vmatprep.subr.mxu0 0.0
    %4149 = vmatpush1.msra.mxu0 0.0
    %4150 = vmatprep.subr.mxu0 0.0
    %4151 = vmatpush1.msra.mxu0 0.0
    %4152 = vmatprep.subr.mxu0 0.0
    %4153 = vmatpush1.msra.mxu0 0.0
    %4154 = vmatprep.subr.mxu0 0.0
    %4155 = vmatpush1.msra.mxu0 0.0
    %4156 = vmatprep.subr.mxu0 0.0
    %4157 = vmatpush1.msra.mxu0 0.0
    %4158 = vmatprep.subr.mxu0 0.0
    %4159 = vmatpush1.msra.mxu0 0.0
    %4160 = vmatprep.mubr.f32.mxu0 0.0
    %4161 = vmatmul.mubr.f32.gmra.mrb[0].mxu0 %v4094
    %v4162 = vpop.f32.mrb[0].mxu0
    %v4163 = vadd.f32 %v3009, %v4162
    %v4164 = vpop.f32.mrb[0].mxu0
    %v4165 = vadd.f32 %v3013, %v4164
    %4166 = vdwg.mxu0
    %v4167 = vrot.slane %v2894, 7
    %v4169 = vrot.slane %v2899, 6
    %v4171 = vsel %vm352, %v4167, %v4169
    %v4172 = vrot.slane %v2985, 7
    %v4174 = vsel %vm352, %v2980, %v4172
    %v4175 = vadd.f32 %v4171, %v4163
    %v4176 = vxor.u32 %v4175, 2147483648
    %v4177 = vmul.f32 %v4176, 1.442695
    %v4178 = vpow.pop %v4177
    %v4179 = vadd.f32 %v4178, 1.0
    %v4180 = vrcp.pop %v4179
    %v4181 = vmul.f32 1.0, %v4180
    %4183 = vrot.lane.b32.xlu0 %v4163, 64
    %v4184 = vpop.permute.xlu0 %4183
    %v4186 = vmul.f32 %v4181, %v4184
    %4188 = vrot.lane.b32.xlu0 %v4186, 64
    %v4189 = vpop.permute.xlu0 %4188
    %v4191 = vadd.f32 %v4171, %v4189
    %v4192 = vtanh.pop %v4191
    %v4193 = vsub.f32 1.0, %v4181
    %4195 = vrot.lane.b32.xlu0 %v4192, 96
    %v4196 = vpop.permute.xlu0 %4195
    %v4198 = vmul.f32 %v4193, %v4196
    %v4199 = vmul.f32 %v4181, %v4048
    %v4200 = vadd.f32 %v4198, %v4199
    %4201 = vrot.lane.b32.xlu0 %v4163, 32
    %v4202 = vpop.permute.xlu0 %4201
    %v4204 = vadd.f32 %v4174, %v4202
    %v4205 = vxor.u32 %v4204, 2147483648
    %v4206 = vmul.f32 %v4205, 1.442695
    %v4207 = vpow.pop %v4206
    %v4208 = vadd.f32 %v4207, 1.0
    %v4209 = vrcp.pop %v4208
    %v4210 = vmul.f32 1.0, %v4209
    %4212 = vrot.lane.b32.xlu0 %v4165, 32
    %v4213 = vpop.permute.xlu0 %4212
    %v4215 = vadd.f32 %v4174, %v4213
    %v4216 = vxor.u32 %v4215, 2147483648
    %v4217 = vmul.f32 %v4216, 1.442695
    %v4218 = vpow.pop %v4217
    %v4219 = vadd.f32 %v4218, 1.0
    %v4220 = vrcp.pop %v4219
    %v4221 = vmul.f32 1.0, %v4220
    %4222 = vrot.lane.b32.xlu0 %v4165, 96
    %v4223 = vpop.permute.xlu0 %4222
    %v4225 = vmul.f32 %v4210, %v4223
    %4227 = vrot.lane.b32.xlu0 %v4225, 64
    %v4228 = vpop.permute.xlu0 %4227
    %v4230 = vadd.f32 %v4174, %v4228
    %v4231 = vtanh.pop %v4230
    %v4232 = vsub.f32 1.0, %v4221
    %4234 = vrot.lane.b32.xlu0 %v4231, 96
    %v4235 = vpop.permute.xlu0 %4234
    %v4237 = vmul.f32 %v4232, %v4235
    %v4238 = vmul.f32 %v4221, %v4087
    %v4239 = vadd.f32 %v4237, %v4238
    %v4240 = vrot.slane %v3280, 7
    %v4242 = vrot.slane %v3434, 6
    %v4244 = vrot.slane %v3588, 5
    %v4246 = vrot.slane %v3742, 4
    %v4248 = vrot.slane %v3896, 3
    %v4250 = vrot.slane %v4048, 2
    %v4253 = vrot.slane %v4200, 1
    %v4255 = vsel %vm352, %v3127, %v4240
    %v4256 = vsel %vm355, %v4255, %v4242
    %v4257 = vsel %vm358, %v4256, %v4244
    %v4258 = vsel %vm361, %v4257, %v4246
    %v4259 = vsel %vm364, %v4258, %v4248
    %v4260 = vsel %vm367, %v4259, %v4250
    %v4261 = vsel %vm370, %v4260, %v4253
    %v4263 = vrot.slane %v4087, 7
    %v4266 = vrot.slane %v3935, 6
    %v4269 = vrot.slane %v3781, 5
    %v4272 = vrot.slane %v3627, 4
    %v4275 = vrot.slane %v3473, 3
    %v4278 = vrot.slane %v3319, 2
    %v4281 = vrot.slane %v3166, 1
    %v4283 = vsel %vm352, %v4239, %v4263
    %v4284 = vsel %vm355, %v4283, %v4266
    %v4285 = vsel %vm358, %v4284, %v4269
    %v4286 = vsel %vm361, %v4285, %v4272
    %v4287 = vsel %vm364, %v4286, %v4275
    %v4288 = vsel %vm367, %v4287, %v4278
    %v4289 = vsel %vm370, %v4288, %v4281
    %4291 = vrot.lane.b32.xlu0 %v4261, 96
    %v4292 = vpop.permute.xlu0 %4291
    %v4294 = vsel %vm1297, %v4292, %v4289
    %v4295 = vrot.slane %v3127, 1
    %v4297 = vrot.slane %v3434, 7
    %v4299 = vrot.slane %v3588, 6
    %v4301 = vrot.slane %v3742, 5
    %v4303 = vrot.slane %v3896, 4
    %v4305 = vrot.slane %v4048, 3
    %v4307 = vrot.slane %v4200, 2
    %v4309 = vsel %vm352, %v4295, %v3280
    %v4310 = vsel %vm355, %v4309, %v4297
    %v4311 = vsel %vm358, %v4310, %v4299
    %v4312 = vsel %vm361, %v4311, %v4301
    %v4313 = vsel %vm364, %v4312, %v4303
    %v4314 = vsel %vm367, %v4313, %v4305
    %v4315 = vsel %vm370, %v4314, %v4307
    %v4317 = vrot.slane %v4239, 1
    %v4319 = vrot.slane %v3935, 7
    %v4321 = vrot.slane %v3781, 6
    %v4323 = vrot.slane %v3627, 5
    %v4325 = vrot.slane %v3473, 4
    %v4327 = vrot.slane %v3319, 3
    %v4329 = vrot.slane %v3166, 2
    %v4331 = vsel %vm352, %v4317, %v4087
    %v4332 = vsel %vm355, %v4331, %v4319
    %v4333 = vsel %vm358, %v4332, %v4321
    %v4334 = vsel %vm361, %v4333, %v4323
    %v4335 = vsel %vm364, %v4334, %v4325
    %v4336 = vsel %vm367, %v4335, %v4327
    %v4337 = vsel %vm370, %v4336, %v4329
    %4339 = vrot.lane.b32.xlu0 %v4315, 96
    %v4340 = vpop.permute.xlu0 %4339
    %v4342 = vsel %vm1297, %v4340, %v4337
    %v4343 = vld [vmem:[%s20] sm:$0xff]
    %v4344 = vld [vmem:[%s20 + $0x8] sm:$0xff]
    %v4345 = vld [vmem:[%s20 + $0x10] sm:$0xff]
    %v4346 = vld [vmem:[%s20 + $0x18] sm:$0xff]
    %v4347 = vld [vmem:[%s20 + $0x20] sm:$0xff]
    %v4348 = vld [vmem:[%s20 + $0x28] sm:$0xff]
    %v4349 = vld [vmem:[%s20 + $0x30] sm:$0xff]
    %v4350 = vld [vmem:[%s20 + $0x38] sm:$0xff]
    %v4351 = vld [vmem:[%s21] sm:$0x1]
    %v4353 = vlaneseq
    %v4354 = vshrl.u32 %v4353, 7
    %v4355 = vsub.s32 0, %v4354
    %v4356 = vrot.slane %v4351, %v4355
    %v4359 = vsel %vm3016, %v4294, 0
    %v4362 = vsel %vm3016, %v4342, 0
    %4364 = vmatprep.subr.mxu0 0.0
    %4365 = vmatpush1.msra.mxu0 %v4343
    %4366 = vmatprep.subr.mxu0 0.0
    %4367 = vmatpush1.msra.mxu0 %v4344
    %4368 = vmatprep.subr.mxu0 0.0
    %4369 = vmatpush1.msra.mxu0 %v4345
    %4370 = vmatprep.subr.mxu0 0.0
    %4371 = vmatpush1.msra.mxu0 %v4346
    %4372 = vmatprep.subr.mxu0 0.0
    %4373 = vmatpush1.msra.mxu0 %v4347
    %4374 = vmatprep.subr.mxu0 0.0
    %4375 = vmatpush1.msra.mxu0 %v4348
    %4376 = vmatprep.subr.mxu0 0.0
    %4377 = vmatpush1.msra.mxu0 %v4349
    %4378 = vmatprep.subr.mxu0 0.0
    %4379 = vmatpush1.msra.mxu0 %v4350
    %4380 = vmatprep.subr.mxu0 0.0
    %4381 = vmatpush1.msra.mxu0 0.0
    %4382 = vmatprep.subr.mxu0 0.0
    %4383 = vmatpush1.msra.mxu0 0.0
    %4384 = vmatprep.subr.mxu0 0.0
    %4385 = vmatpush1.msra.mxu0 0.0
    %4386 = vmatprep.subr.mxu0 0.0
    %4387 = vmatpush1.msra.mxu0 0.0
    %4388 = vmatprep.subr.mxu0 0.0
    %4389 = vmatpush1.msra.mxu0 0.0
    %4390 = vmatprep.subr.mxu0 0.0
    %4391 = vmatpush1.msra.mxu0 0.0
    %4392 = vmatprep.subr.mxu0 0.0
    %4393 = vmatpush1.msra.mxu0 0.0
    %4394 = vmatprep.subr.mxu0 0.0
    %4395 = vmatpush1.msra.mxu0 0.0
    %4396 = vmatprep.subr.mxu0 0.0
    %4397 = vmatpush1.msra.mxu0 0.0
    %4398 = vmatprep.subr.mxu0 0.0
    %4399 = vmatpush1.msra.mxu0 0.0
    %4400 = vmatprep.subr.mxu0 0.0
    %4401 = vmatpush1.msra.mxu0 0.0
    %4402 = vmatprep.subr.mxu0 0.0
    %4403 = vmatpush1.msra.mxu0 0.0
    %4404 = vmatprep.subr.mxu0 0.0
    %4405 = vmatpush1.msra.mxu0 0.0
    %4406 = vmatprep.subr.mxu0 0.0
    %4407 = vmatpush1.msra.mxu0 0.0
    %4408 = vmatprep.subr.mxu0 0.0
    %4409 = vmatpush1.msra.mxu0 0.0
    %4410 = vmatprep.subr.mxu0 0.0
    %4411 = vmatpush1.msra.mxu0 0.0
    %4412 = vmatprep.subr.mxu0 0.0
    %4413 = vmatpush1.msra.mxu0 0.0
    %4414 = vmatprep.subr.mxu0 0.0
    %4415 = vmatpush1.msra.mxu0 0.0
    %4416 = vmatprep.subr.mxu0 0.0
    %4417 = vmatpush1.msra.mxu0 0.0
    %4418 = vmatprep.subr.mxu0 0.0
    %4419 = vmatpush1.msra.mxu0 0.0
    %4420 = vmatprep.subr.mxu0 0.0
    %4421 = vmatpush1.msra.mxu0 0.0
    %4422 = vmatprep.subr.mxu0 0.0
    %4423 = vmatpush1.msra.mxu0 0.0
    %4424 = vmatprep.subr.mxu0 0.0
    %4425 = vmatpush1.msra.mxu0 0.0
    %4426 = vmatprep.subr.mxu0 0.0
    %4427 = vmatpush1.msra.mxu0 0.0
    %4428 = vmatprep.mubr.f32.mxu0 0.0
    %4429 = vmatmul.mubr.f32.gmra.mrb[0].mxu0 %v4359
    %v4430 = vpop.f32.mrb[0].mxu0
    %v4431 = vadd.f32 %v4356, %v4430
    %v4432 = vpop.f32.mrb[0].mxu0
    %4433 = vmatprep.mubr.f32.mxu0 0.0
    %4434 = vmatmul.mubr.f32.gmra.mrb[0].mxu0 %v4362
    %v4435 = vpop.f32.mrb[0].mxu0
    %v4436 = vadd.f32 %v4356, %v4435
    %v4437 = vpop.f32.mrb[0].mxu0
    %4438 = vdwg.mxu0
    %v4439 = vmul.f32 %v4431, 0.5
    %v4440 = vmul.f32 %v4436, 0.5
    %v4441 = vmul.f32 %v4431, 0.044715
    %v4442 = vmul.f32 %v4436, 0.044715
    %v4443 = vmul.f32 %v4441, %v4431
    %v4444 = vmul.f32 %v4442, %v4436
    %v4445 = vmul.f32 %v4443, %v4431
    %v4446 = vmul.f32 %v4444, %v4436
    %v4447 = vadd.f32 %v4431, %v4445
    %v4448 = vadd.f32 %v4436, %v4446
    %v4449 = vmul.f32 %v4447, 0.7978846
    %v4450 = vmul.f32 %v4448, 0.7978846
    %v4451 = vtanh.pop %v4449
    %v4452 = vtanh.pop %v4450
    %v4453 = vadd.f32 %v4451, 1.0
    %v4454 = vadd.f32 %v4452, 1.0
    %v4455 = vmul.f32 %v4439, %v4453
    %v4456 = vmul.f32 %v4440, %v4454
    %v4457 = vld [vmem:[%s22] sm:$0xff]
    %v4458 = vld [vmem:[%s22 + $0x8] sm:$0xff]
    %v4459 = vld [vmem:[%s22 + $0x10] sm:$0xff]
    %v4460 = vld [vmem:[%s22 + $0x18] sm:$0xff]
    %v4461 = vld [vmem:[%s23] sm:$0x1]
    %v4463 = vlaneseq
    %v4464 = vshrl.u32 %v4463, 7
    %v4465 = vsub.s32 0, %v4464
    %v4466 = vrot.slane %v4461, %v4465
    %v4469 = vsel %vm1297, %v4455, 0
    %v4472 = vsel %vm1297, %v4456, 0
    %4474 = vmatprep.subr.mxu0 0.0
    %4475 = vmatpush1.msra.mxu0 %v4457
    %4476 = vmatprep.subr.mxu0 0.0
    %4477 = vmatpush1.msra.mxu0 %v4458
    %4478 = vmatprep.subr.mxu0 0.0
    %4479 = vmatpush1.msra.mxu0 %v4459
    %4480 = vmatprep.subr.mxu0 0.0
    %4481 = vmatpush1.msra.mxu0 %v4460
    %4482 = vmatprep.subr.mxu0 0.0
    %4483 = vmatpush1.msra.mxu0 0.0
    %4484 = vmatprep.subr.mxu0 0.0
    %4485 = vmatpush1.msra.mxu0 0.0
    %4486 = vmatprep.subr.mxu0 0.0
    %4487 = vmatpush1.msra.mxu0 0.0
    %4488 = vmatprep.subr.mxu0 0.0
    %4489 = vmatpush1.msra.mxu0 0.0
    %4490 = vmatprep.subr.mxu0 0.0
    %4491 = vmatpush1.msra.mxu0 0.0
    %4492 = vmatprep.subr.mxu0 0.0
    %4493 = vmatpush1.msra.mxu0 0.0
    %4494 = vmatprep.subr.mxu0 0.0
    %4495 = vmatpush1.msra.mxu0 0.0
    %4496 = vmatprep.subr.mxu0 0.0
    %4497 = vmatpush1.msra.mxu0 0.0
    %4498 = vmatprep.subr.mxu0 0.0
    %4499 = vmatpush1.msra.mxu0 0.0
    %4500 = vmatprep.subr.mxu0 0.0
    %4501 = vmatpush1.msra.mxu0 0.0
    %4502 = vmatprep.subr.mxu0 0.0
    %4503 = vmatpush1.msra.mxu0 0.0
    %4504 = vmatprep.subr.mxu0 0.0
    %4505 = vmatpush1.msra.mxu0 0.0
    %4506 = vmatprep.subr.mxu0 0.0
    %4507 = vmatpush1.msra.mxu0 0.0
    %4508 = vmatprep.subr.mxu0 0.0
    %4509 = vmatpush1.msra.mxu0 0.0
    %4510 = vmatprep.subr.mxu0 0.0
    %4511 = vmatpush1.msra.mxu0 0.0
    %4512 = vmatprep.subr.mxu0 0.0
    %4513 = vmatpush1.msra.mxu0 0.0
    %4514 = vmatprep.subr.mxu0 0.0
    %4515 = vmatpush1.msra.mxu0 0.0
    %4516 = vmatprep.subr.mxu0 0.0
    %4517 = vmatpush1.msra.mxu0 0.0
    %4518 = vmatprep.subr.mxu0 0.0
    %4519 = vmatpush1.msra.mxu0 0.0
    %4520 = vmatprep.subr.mxu0 0.0
    %4521 = vmatpush1.msra.mxu0 0.0
    %4522 = vmatprep.subr.mxu0 0.0
    %4523 = vmatpush1.msra.mxu0 0.0
    %4524 = vmatprep.subr.mxu0 0.0
    %4525 = vmatpush1.msra.mxu0 0.0
    %4526 = vmatprep.subr.mxu0 0.0
    %4527 = vmatpush1.msra.mxu0 0.0
    %4528 = vmatprep.subr.mxu0 0.0
    %4529 = vmatpush1.msra.mxu0 0.0
    %4530 = vmatprep.subr.mxu0 0.0
    %4531 = vmatpush1.msra.mxu0 0.0
    %4532 = vmatprep.subr.mxu0 0.0
    %4533 = vmatpush1.msra.mxu0 0.0
    %4534 = vmatprep.subr.mxu0 0.0
    %4535 = vmatpush1.msra.mxu0 0.0
    %4536 = vmatprep.subr.mxu0 0.0
    %4537 = vmatpush1.msra.mxu0 0.0
    %4538 = vmatprep.mubr.f32.mxu0 0.0
    %4539 = vmatmul.mubr.f32.gmra.mrb[0].mxu0 %v4469
    %v4540 = vpop.f32.mrb[0].mxu0
    %v4541 = vadd.f32 %v4466, %v4540
    %v4542 = vpop.f32.mrb[0].mxu0
    %4543 = vmatprep.mubr.f32.mxu0 0.0
    %4544 = vmatmul.mubr.f32.gmra.mrb[0].mxu0 %v4472
    %v4545 = vpop.f32.mrb[0].mxu0
    %v4546 = vadd.f32 %v4466, %v4545
    %v4547 = vpop.f32.mrb[0].mxu0
    %4548 = vdwg.mxu0
    %vm4549 = vcmask 80896
    %4550 = vst.msk [vmem:[#allocation2] sm:$0xff] %vm4549, %v4541
    %s4551 = scalar_lea.vmem [#allocation2], 8
    %4552 = vst.msk [vmem:[%s4551] sm:$0xff] %vm4549, %v4546
    // Predicated region
    $region98: #{forward.1} parent=1 // pred_check
      _
    $region99: #{forward.1} parent=1 // pred_check_branch
      %4554 = sbr.rel (0) target = $region101
    $region100: #{forward.1} parent=1 // pred_region
      %s4556 = ssub.s32 256, 256
      %4557 = vsyncadd [#allocation3], %s4556
      %s4558 = sshll.u32 [#allocation2], 4
      %s4559 = int_to_ptr.vmem [resolvable:$true] %s4558
      %4564 = dma.vmem_to_hbm [thread:$0]  %s4559, 256, %s24, [#allocation3], 128, 128, 8
    $region101: #{forward.1} parent=1 // pred_fallthru
      _
    // Predicated region
    $region102: #{forward.1} parent=1 // pred_check
      _
    $region103: #{forward.1} parent=1 // pred_check_branch
      %4566 = sbr.rel (0) target = $region105
    $region104: #{forward.1} parent=1 // pred_region
      %4567 = dma.done [#allocation3], 256
    $region105: #{forward.1} parent=1 // pred_fallthru
      _
    %4568 = vsyncpa [#allocation3], 1

</llo_original>
